<compile_context>
chip_gen: v5e
topology: v5e:2x2
jax: 0.10.0
libtpu: 0.0.40
codegen_flags: <defaults>
</compile_context>

<pallas_src>
import numpy as np
import jax
import jax.numpy as jnp
from jax.experimental import pallas as pl
from jax.experimental.pallas import tpu as pltpu

NEGATIVE_SLOPE = -0.01
VMEM_LIMIT_BYTES = 64 * 1024 * 1024   # keeps real-size tiles legal on v7x too


def _round_up(x, m):
    return (x + m - 1) // m * m


# ---------------------------------------------------------------------------
# Kernel A: conv_t1 (as a forward dilated conv) fused with the 1x1 conv_t2
# ---------------------------------------------------------------------------
def _make_fused_conv1x1_kernel(K, dil, TH, Wo, Cin, Cmid, C2):
    taps = [(kh, kw) for kh in range(K) for kw in range(K)]

    def kernel(x_ref, w1_ref, w2_ref, b_ref, o_ref, acc_ref):
        # x_ref : (1, Hp, Wp, Cin)    whole padded image (bf16, reused over h)
        # w1_ref: (K, K, Cin, Cmid)   flipped / channel-transposed conv1 weight
        # w2_ref: (Cmid, C2)          1x1 conv2 weight (bf16)
        # b_ref : (1, C2)             fused bias  b1 @ W2 + b2  (f32)
        # o_ref : (1, TH, Wo, C2)     output row tile (bf16)
        # acc_ref: (TH*Wo, Cmid) f32  scratch accumulator
        h0 = pl.program_id(1) * TH
        for idx, (kh, kw) in enumerate(taps):          # 9 taps, unrolled
            xs = x_ref[0, pl.ds(h0 + kh * dil, TH), pl.ds(kw * dil, Wo), :]
            x2d = xs.reshape(TH * Wo, Cin)
            contrib = jnp.dot(x2d, w1_ref[kh, kw],
                              preferred_element_type=jnp.float32)
            if idx == 0:
                acc_ref[...] = contrib
            else:
                acc_ref[...] += contrib
        # Fused 1x1 conv (conv_t2) epilogue + fused bias.
        y = jnp.dot(acc_ref[...].astype(jnp.bfloat16), w2_ref[...],
                    preferred_element_type=jnp.float32) + b_ref[...]
        o_ref[0] = y.reshape(TH, Wo, C2).astype(o_ref.dtype)

    return kernel


def fused_conv1_conv2(xp, w1f, w2c, b_fused, *, dil, row_tile):
    """xp: (N, Hp, Wp, Cin) zero-padded bf16 input.  Returns x3 (N,Ho,Wo,C2)."""
    N, Hp, Wp, Cin = xp.shape
    K, _, _, Cmid = w1f.shape
    C2 = w2c.shape[1]
    Ho = Hp - dil * (K - 1)
    Wo = Wp - dil * (K - 1)
    TH = row_tile
    assert Ho % TH == 0, (Ho, TH)
    nH = Ho // TH

    kernel = _make_fused_conv1x1_kernel(K, dil, TH, Wo, Cin, Cmid, C2)
    return pl.pallas_call(
        kernel,
        out_shape=jax.ShapeDtypeStruct((N, Ho, Wo, C2), jnp.bfloat16),
        grid=(N, nH),
        in_specs=[
            pl.BlockSpec((1, Hp, Wp, Cin), lambda n, h: (n, 0, 0, 0)),
            pl.BlockSpec((K, K, Cin, Cmid), lambda n, h: (0, 0, 0, 0)),
            pl.BlockSpec((Cmid, C2), lambda n, h: (0, 0)),
            pl.BlockSpec((1, C2), lambda n, h: (0, 0)),
        ],
        out_specs=pl.BlockSpec((1, TH, Wo, C2), lambda n, h: (n, h, 0, 0)),
        scratch_shapes=[pltpu.VMEM((TH * Wo, Cmid), jnp.float32)],
        compiler_params=pltpu.CompilerParams(
            dimension_semantics=("parallel", "parallel"),
            vmem_limit_bytes=VMEM_LIMIT_BYTES),
    )(xp, w1f, w2c, b_fused)


# ---------------------------------------------------------------------------
# Kernel B: conv_t3 (k=3, stride=2) by polyphase decomposition + leaky ReLU
# ---------------------------------------------------------------------------
# For output parity (ph, pw):  out[2i+ph, 2j+pw] = sum over the tap subset
#   {(a, kh), (b, kw)} of  xp[i+a, j+b] @ w[kh, kw]    (xp = x3 zero-padded by 1)
_ROW_TAPS = {0: ((0, 2), (1, 0)), 1: ((1, 1),)}   # (row offset a, kh)
_COL_TAPS = {0: ((0, 2), (1, 0)), 1: ((1, 1),)}   # (col offset b, kw)


def _make_polyphase_kernel(TI, Wc, Cin, TCo, neg_slope):
    def kernel(x_ref, w_ref, b_ref, o_ref, acc_ref):
        # x_ref : (1, Hp, Wp2, Cin)        zero-padded x3 (bf16, reused)
        # w_ref : (3, 3, Cin, TCo)         channel-transposed conv_t3 weight
        # b_ref : (1, TCo)                 bias (f32)
        # o_ref : (1, 2, 2, TI, Wc, TCo)   parity-plane output tile (f32)
        # acc_ref: (TI*Wc, TCo) f32        scratch accumulator
        i0 = pl.program_id(2) * TI
        bias = b_ref[...]
        for ph in (0, 1):
            for pw in (0, 1):
                first = True
                for (a, kh) in _ROW_TAPS[ph]:
                    for (b, kw) in _COL_TAPS[pw]:
                        xs = x_ref[0, pl.ds(i0 + a, TI), pl.ds(b, Wc), :]
                        x2d = xs.reshape(TI * Wc, Cin)
                        c = jnp.dot(x2d, w_ref[kh, kw],
                                    preferred_element_type=jnp.float32)
                        if first:
                            acc_ref[...] = c
                            first = False
                        else:
                            acc_ref[...] += c
                y = acc_ref[...] + bias
                y = jnp.where(y > 0, y, y * neg_slope)     # fused leaky ReLU
                o_ref[0, ph, pw] = y.reshape(TI, Wc, TCo).astype(o_ref.dtype)

    return kernel


def polyphase_deconv3(x3, w3c, b3, *, row_tile, co_tile, neg_slope):
    """ConvTranspose2d(k=3, stride=2, pad=0) + leaky ReLU on NHWC x3 (bf16)."""
    N, H, W, Cin = x3.shape
    Cout = w3c.shape[3]
    TI = row_tile
    nI = -(-(H + 1) // TI)              # ceil: parity-row tiles
    rows_total = nI * TI                # >= H + 1 (ragged rows are dropped)
    Wc = _round_up(W + 1, 8)            # >= W + 1 (keeps reshapes layout-free)
    Hp = rows_total + 1
    Wp2 = Wc + 1
    # 1 halo row/col of zeros for the transposed conv, plus extra zeros so the
    # ragged last row/col tiles stay in bounds (their outputs are sliced off).
    xp = jnp.pad(x3, ((0, 0), (1, Hp - 1 - H), (1, Wp2 - 1 - W), (0, 0)))

    TCo = co_tile
    assert Cout % TCo == 0, (Cout, TCo)
    nCo = Cout // TCo

    kernel = _make_polyphase_kernel(TI, Wc, Cin, TCo, neg_slope)
    out = pl.pallas_call(
        kernel,
        out_shape=jax.ShapeDtypeStruct((N, 2, 2, rows_total, Wc, Cout),
                                       jnp.float32),
        grid=(N, nCo, nI),
        in_specs=[
            pl.BlockSpec((1, Hp, Wp2, Cin), lambda n, c, i: (n, 0, 0, 0)),
            pl.BlockSpec((3, 3, Cin, TCo), lambda n, c, i: (0, 0, 0, c)),
            pl.BlockSpec((1, TCo), lambda n, c, i: (0, c)),
        ],
        out_specs=pl.BlockSpec((1, 2, 2, TI, Wc, TCo),
                               lambda n, c, i: (n, 0, 0, i, 0, c)),
        scratch_shapes=[pltpu.VMEM((TI * Wc, TCo), jnp.float32)],
        compiler_params=pltpu.CompilerParams(
            dimension_semantics=("parallel", "parallel", "parallel"),
            vmem_limit_bytes=VMEM_LIMIT_BYTES),
    )(xp, w3c, b3)

    # Interleave the 4 parity planes: full[n, 2i+ph, 2j+pw, c] = planes[ph,pw][i,j]
    planes = out[:, :, :, : H + 1, : W + 1, :]          # (N, 2, 2, H+1, W+1, C)
    full = jnp.transpose(planes, (0, 3, 1, 4, 2, 5))    # (N, H+1, 2, W+1, 2, C)
    full = full.reshape(N, 2 * (H + 1), 2 * (W + 1), Cout)
    return full[:, : 2 * H + 1, : 2 * W + 1, :]


# ---------------------------------------------------------------------------
# Parameter prep (hoisted: flips / transposes / fused bias, bf16 casts)
# ---------------------------------------------------------------------------
def prepare_params(params):
    # ConvTranspose2d weight layout: (Cin, Cout, K, K)
    w1f = jnp.transpose(params["w1"][:, :, ::-1, ::-1],
                        (2, 3, 0, 1)).astype(jnp.bfloat16)     # (K,K,Cin,Cmid)
    w2m = params["w2"][:, :, 0, 0]                             # (Cmid, C2) f32
    b_fused = (params["b1"] @ w2m + params["b2"]).astype(jnp.float32)
    w3c = jnp.transpose(params["w3"], (2, 3, 0, 1)).astype(jnp.bfloat16)
    return {
        "w1f": w1f,
        "w2c": w2m.astype(jnp.bfloat16),
        "b_fused": b_fused.reshape(1, -1),
        "w3c": w3c,
        "b3": params["b3"].astype(jnp.float32).reshape(1, -1),
    }


def model_forward(x_nchw, prepped, *, row_tile1=8, row_tile3=8):
    # NCHW (PyTorch) -> NHWC bf16 for the TPU kernels.
    x = jnp.transpose(x_nchw, (0, 2, 3, 1)).astype(jnp.bfloat16)

    # conv_t1 (k=3, s=1, dil=3, pad=3) == forward dilated conv on input padded
    # by dil*(k-1) - pad = 3; fused with the 1x1 conv_t2 in one kernel.
    xp = jnp.pad(x, ((0, 0), (3, 3), (3, 3), (0, 0)))
    x3 = fused_conv1_conv2(xp, prepped["w1f"], prepped["w2c"],
                           prepped["b_fused"], dil=3, row_tile=row_tile1)

    # conv_t3 (k=3, s=2) + leaky ReLU, via polyphase (no zero-inserted tensor).
    cout3 = prepped["w3c"].shape[3]
    co_tile = 256 if cout3 % 256 == 0 else (128 if cout3 % 128 == 0 else cout3)
    y = polyphase_deconv3(x3, prepped["w3c"], prepped["b3"],
                          row_tile=row_tile3, co_tile=co_tile,
                          neg_slope=NEGATIVE_SLOPE)
    return jnp.transpose(y, (0, 3, 1, 2))                      # back to NCHW


# ---------------------------------------------------------------------------
# Pure-numpy reference of PyTorch ConvTranspose2d semantics (for verification)
# ---------------------------------------------------------------------------
def conv_transpose2d_ref(x, w, b, stride, padding, dilation):
    x, w, b = np.asarray(x), np.asarray(w), np.asarray(b)
    N, Cin, H, W = x.shape
    _, Cout, K, _ = w.shape
    Hf = (H - 1) * stride + dilation * (K - 1) + 1
    Wf = (W - 1) * stride + dilation * (K - 1) + 1
    out = np.zeros((N, Cout, Hf, Wf), np.float32)
    for kh in range(K):
        for kw in range(K):
            contrib = np.einsum("nchw,cd->ndhw", x, w[:, :, kh, kw])
            out[:, :,
                kh * dilation: kh * dilation + (H - 1) * stride + 1: stride,
                kw * dilation: kw * dilation + (W - 1) * stride + 1: stride] += contrib
    Ho = (H - 1) * stride - 2 * padding + dilation * (K - 1) + 1
    Wo = (W - 1) * stride - 2 * padding + dilation * (K - 1) + 1
    out = out[:, :, padding:padding + Ho, padding:padding + Wo]
    return out + b[None, :, None, None]


# ---------------------------------------------------------------------------
if __name__ == "__main__":
    # Small, shape-consistent analog of (16, 768, 56, 56) with 768/624/768 ch.
    N, Cin, Cmid, C2, H, W = 2, 16, 24, 16, 8, 8

    key = jax.random.PRNGKey(0)
    ks = jax.random.split(key, 7)
    x1 = jax.random.normal(ks[0], (N, Cin, H, W), jnp.float32)

    params = {
        # ConvTranspose2d weight layout: (Cin, Cout, K, K)
        "w1": 0.05 * jax.random.normal(ks[1], (Cin, Cmid, 3, 3), jnp.float32),
        "b1": 0.05 * jax.random.normal(ks[2], (Cmid,), jnp.float32),
        "w2": 0.05 * jax.random.normal(ks[3], (Cmid, C2, 1, 1), jnp.float32),
        "b2": 0.05 * jax.random.normal(ks[4], (C2,), jnp.float32),
        "w3": 0.05 * jax.random.normal(ks[5], (C2, C2, 3, 3), jnp.float32),
        "b3": 0.05 * jax.random.normal(ks[6], (C2,), jnp.float32),
    }

    prepped = prepare_params(params)
    # row tiles of 4 so the small test exercises multiple grid row-tiles
    # (use 8 at production 56x56 sizes).
    fwd = jax.jit(lambda x, p: model_forward(x, p, row_tile1=4, row_tile3=4))
    out = jax.block_until_ready(fwd(x1, prepped))

    # Verify against a direct numpy implementation of the PyTorch module.
    r2 = conv_transpose2d_ref(x1, params["w1"], params["b1"], 1, 3, 3)
    r3 = conv_transpose2d_ref(r2, params["w2"], params["b2"], 1, 0, 1)
    r4 = conv_transpose2d_ref(r3, params["w3"], params["b3"], 2, 0, 1)
    ref = np.where(r4 > 0, r4, r4 * NEGATIVE_SLOPE)

    assert out.shape == (N, C2, 2 * H + 1, 2 * W + 1), out.shape
    np.testing.assert_allclose(np.asarray(out, dtype=np.float32), ref,
                               atol=2e-2, rtol=2e-2)

    print("KERNEL_OK")
</pallas_src>

<mosaic_0001>
module attributes {stable_mosaic.version = 11 : i64} {
  func.func @kernel(%arg0: i32, %arg1: i32, %arg2: i32, %arg3: memref<1x13x17x16xbf16, #tpu.memory_space<vmem>>, %arg4: memref<3x3x16x16xbf16, #tpu.memory_space<vmem>>, %arg5: memref<1x16xf32, #tpu.memory_space<vmem>>, %arg6: memref<1x2x2x4x16x16xf32, #tpu.memory_space<vmem>>, %arg7: memref<64x16xf32, #tpu.memory_space<vmem>>) attributes {dimension_semantics = [#tpu.dimension_semantics<parallel>, #tpu.dimension_semantics<parallel>, #tpu.dimension_semantics<parallel>], iteration_bounds = array<i64: 2, 1, 3>, scalar_prefetch = 0 : i64, scratch_operands = 1 : i64, tpu.core_type = #tpu.core_type<tc>, window_params = [{transform_indices = @transform_0, window_bounds = array<i64: 1, 13, 17, 16>}, {transform_indices = @transform_1, window_bounds = array<i64: 3, 3, 16, 16>}, {transform_indices = @transform_2, window_bounds = array<i64: 1, 16>}, {transform_indices = @transform_3, window_bounds = array<i64: 1, 2, 2, 4, 16, 16>}]} {
    %c4_i32 = arith.constant 4 : i32
    %0 = arith.muli %arg2, %c4_i32 : i32
    %c0 = arith.constant 0 : index
    %c0_0 = arith.constant 0 : index
    %1 = vector.load %arg5[%c0, %c0_0] : memref<1x16xf32, #tpu.memory_space<vmem>>, vector<1x16xf32>
    %c0_i32 = arith.constant 0 : i32
    %2 = arith.addi %0, %c0_i32 : i32
    %c0_1 = arith.constant 0 : index
    %3 = arith.index_cast %2 : i32 to index
    %c0_2 = arith.constant 0 : index
    %c0_3 = arith.constant 0 : index
    %4 = vector.load %arg3[%c0_1, %3, %c0_2, %c0_3] : memref<1x13x17x16xbf16, #tpu.memory_space<vmem>>, vector<1x4x16x16xbf16>
    %5 = vector.shape_cast %4 : vector<1x4x16x16xbf16> to vector<4x16x16xbf16>
    %6 = vector.shape_cast %5 : vector<4x16x16xbf16> to vector<64x16xbf16>
    %c2 = arith.constant 2 : index
    %c2_4 = arith.constant 2 : index
    %c0_5 = arith.constant 0 : index
    %c0_6 = arith.constant 0 : index
    %7 = vector.load %arg4[%c2, %c2_4, %c0_5, %c0_6] : memref<3x3x16x16xbf16, #tpu.memory_space<vmem>>, vector<1x1x16x16xbf16>
    %8 = vector.shape_cast %7 : vector<1x1x16x16xbf16> to vector<16x16xbf16>
    %cst = arith.constant dense<0.000000e+00> : vector<64x16xf32>
    %9 = tpu.matmul %6, %8, %cst {dimension_numbers = #tpu.dot_dimension_numbers<[1], [0], [0], [1], [0, 0, 1, 1], [], []>} : vector<64x16xbf16>, vector<16x16xbf16>, vector<64x16xf32> -> vector<64x16xf32>
    %c0_7 = arith.constant 0 : index
    %c0_8 = arith.constant 0 : index
    %10 = vector.load %arg7[%c0_7, %c0_8] : memref<64x16xf32, #tpu.memory_space<vmem>>, vector<64x16xf32>
    tpu.vector_store %arg7[%c0_7, %c0_8], %9 {strides = array<i32>} : memref<64x16xf32, #tpu.memory_space<vmem>>, vector<64x16xf32>,
    %c0_i32_9 = arith.constant 0 : i32
    %11 = arith.addi %0, %c0_i32_9 : i32
    %c0_10 = arith.constant 0 : index
    %12 = arith.index_cast %11 : i32 to index
    %c1 = arith.constant 1 : index
    %c0_11 = arith.constant 0 : index
    %13 = vector.load %arg3[%c0_10, %12, %c1, %c0_11] : memref<1x13x17x16xbf16, #tpu.memory_space<vmem>>, vector<1x4x16x16xbf16>
    %14 = vector.shape_cast %13 : vector<1x4x16x16xbf16> to vector<4x16x16xbf16>
    %15 = vector.shape_cast %14 : vector<4x16x16xbf16> to vector<64x16xbf16>
    %c2_12 = arith.constant 2 : index
    %c0_13 = arith.constant 0 : index
    %c0_14 = arith.constant 0 : index
    %c0_15 = arith.constant 0 : index
    %16 = vector.load %arg4[%c2_12, %c0_13, %c0_14, %c0_15] : memref<3x3x16x16xbf16, #tpu.memory_space<vmem>>, vector<1x1x16x16xbf16>
    %17 = vector.shape_cast %16 : vector<1x1x16x16xbf16> to vector<16x16xbf16>
    %cst_16 = arith.constant dense<0.000000e+00> : vector<64x16xf32>
    %18 = tpu.matmul %15, %17, %cst_16 {dimension_numbers = #tpu.dot_dimension_numbers<[1], [0], [0], [1], [0, 0, 1, 1], [], []>} : vector<64x16xbf16>, vector<16x16xbf16>, vector<64x16xf32> -> vector<64x16xf32>
    %c0_17 = arith.constant 0 : index
    %c0_18 = arith.constant 0 : index
    %19 = vector.load %arg7[%c0_17, %c0_18] : memref<64x16xf32, #tpu.memory_space<vmem>>, vector<64x16xf32>
    %20 = arith.addf %19, %18 : vector<64x16xf32>
    %c0_19 = arith.constant 0 : index
    %c0_20 = arith.constant 0 : index
    %21 = vector.load %arg7[%c0_19, %c0_20] : memref<64x16xf32, #tpu.memory_space<vmem>>, vector<64x16xf32>
    tpu.vector_store %arg7[%c0_19, %c0_20], %20 {strides = array<i32>} : memref<64x16xf32, #tpu.memory_space<vmem>>, vector<64x16xf32>,
    %c1_i32 = arith.constant 1 : i32
    %22 = arith.addi %0, %c1_i32 : i32
    %c0_21 = arith.constant 0 : index
    %23 = arith.index_cast %22 : i32 to index
    %c0_22 = arith.constant 0 : index
    %c0_23 = arith.constant 0 : index
    %24 = vector.load %arg3[%c0_21, %23, %c0_22, %c0_23] : memref<1x13x17x16xbf16, #tpu.memory_space<vmem>>, vector<1x4x16x16xbf16>
    %25 = vector.shape_cast %24 : vector<1x4x16x16xbf16> to vector<4x16x16xbf16>
    %26 = vector.shape_cast %25 : vector<4x16x16xbf16> to vector<64x16xbf16>
    %c0_24 = arith.constant 0 : index
    %c2_25 = arith.constant 2 : index
    %c0_26 = arith.constant 0 : index
    %c0_27 = arith.constant 0 : index
    %27 = vector.load %arg4[%c0_24, %c2_25, %c0_26, %c0_27] : memref<3x3x16x16xbf16, #tpu.memory_space<vmem>>, vector<1x1x16x16xbf16>
    %28 = vector.shape_cast %27 : vector<1x1x16x16xbf16> to vector<16x16xbf16>
    %cst_28 = arith.constant dense<0.000000e+00> : vector<64x16xf32>
    %29 = tpu.matmul %26, %28, %cst_28 {dimension_numbers = #tpu.dot_dimension_numbers<[1], [0], [0], [1], [0, 0, 1, 1], [], []>} : vector<64x16xbf16>, vector<16x16xbf16>, vector<64x16xf32> -> vector<64x16xf32>
    %c0_29 = arith.constant 0 : index
    %c0_30 = arith.constant 0 : index
    %30 = vector.load %arg7[%c0_29, %c0_30] : memref<64x16xf32, #tpu.memory_space<vmem>>, vector<64x16xf32>
    %31 = arith.addf %30, %29 : vector<64x16xf32>
    %c0_31 = arith.constant 0 : index
    %c0_32 = arith.constant 0 : index
    %32 = vector.load %arg7[%c0_31, %c0_32] : memref<64x16xf32, #tpu.memory_space<vmem>>, vector<64x16xf32>
    tpu.vector_store %arg7[%c0_31, %c0_32], %31 {strides = array<i32>} : memref<64x16xf32, #tpu.memory_space<vmem>>, vector<64x16xf32>,
    %c1_i32_33 = arith.constant 1 : i32
    %33 = arith.addi %0, %c1_i32_33 : i32
    %c0_34 = arith.constant 0 : index
    %34 = arith.index_cast %33 : i32 to index
    %c1_35 = arith.constant 1 : index
    %c0_36 = arith.constant 0 : index
    %35 = vector.load %arg3[%c0_34, %34, %c1_35, %c0_36] : memref<1x13x17x16xbf16, #tpu.memory_space<vmem>>, vector<1x4x16x16xbf16>
    %36 = vector.shape_cast %35 : vector<1x4x16x16xbf16> to vector<4x16x16xbf16>
    %37 = vector.shape_cast %36 : vector<4x16x16xbf16> to vector<64x16xbf16>
    %c0_37 = arith.constant 0 : index
    %c0_38 = arith.constant 0 : index
    %c0_39 = arith.constant 0 : index
    %c0_40 = arith.constant 0 : index
    %38 = vector.load %arg4[%c0_37, %c0_38, %c0_39, %c0_40] : memref<3x3x16x16xbf16, #tpu.memory_space<vmem>>, vector<1x1x16x16xbf16>
    %39 = vector.shape_cast %38 : vector<1x1x16x16xbf16> to vector<16x16xbf16>
    %cst_41 = arith.constant dense<0.000000e+00> : vector<64x16xf32>
    %40 = tpu.matmul %37, %39, %cst_41 {dimension_numbers = #tpu.dot_dimension_numbers<[1], [0], [0], [1], [0, 0, 1, 1], [], []>} : vector<64x16xbf16>, vector<16x16xbf16>, vector<64x16xf32> -> vector<64x16xf32>
    %c0_42 = arith.constant 0 : index
    %c0_43 = arith.constant 0 : index
    %41 = vector.load %arg7[%c0_42, %c0_43] : memref<64x16xf32, #tpu.memory_space<vmem>>, vector<64x16xf32>
    %42 = arith.addf %41, %40 : vector<64x16xf32>
    %c0_44 = arith.constant 0 : index
    %c0_45 = arith.constant 0 : index
    %43 = vector.load %arg7[%c0_44, %c0_45] : memref<64x16xf32, #tpu.memory_space<vmem>>, vector<64x16xf32>
    tpu.vector_store %arg7[%c0_44, %c0_45], %42 {strides = array<i32>} : memref<64x16xf32, #tpu.memory_space<vmem>>, vector<64x16xf32>,
    %c0_46 = arith.constant 0 : index
    %c0_47 = arith.constant 0 : index
    %44 = vector.load %arg7[%c0_46, %c0_47] : memref<64x16xf32, #tpu.memory_space<vmem>>, vector<64x16xf32>
    %45 = vector.broadcast %1 : vector<1x16xf32> to vector<64x16xf32>
    %46 = arith.addf %44, %45 : vector<64x16xf32>
    %cst_48 = arith.constant 0.000000e+00 : f32
    %47 = vector.broadcast %cst_48 : f32 to vector<64x16xf32>
    %48 = arith.cmpf ogt, %46, %47 : vector<64x16xf32>
    %cst_49 = arith.constant -0.00999999977 : f32
    %49 = vector.broadcast %cst_49 : f32 to vector<64x16xf32>
    %50 = arith.mulf %46, %49 : vector<64x16xf32>
    %51 = arith.select %48, %46, %50 : vector<64x16xi1>, vector<64x16xf32>
    %52 = vector.shape_cast %51 : vector<64x16xf32> to vector<4x16x16xf32>
    %c0_50 = arith.constant 0 : index
    %c0_51 = arith.constant 0 : index
    %c0_52 = arith.constant 0 : index
    %c0_53 = arith.constant 0 : index
    %c0_54 = arith.constant 0 : index
    %c0_55 = arith.constant 0 : index
    %53 = vector.load %arg6[%c0_50, %c0_51, %c0_52, %c0_53, %c0_54, %c0_55] : memref<1x2x2x4x16x16xf32, #tpu.memory_space<vmem>>, vector<1x1x1x4x16x16xf32>
    %54 = vector.shape_cast %53 : vector<1x1x1x4x16x16xf32> to vector<4x16x16xf32>
    %55 = vector.shape_cast %52 : vector<4x16x16xf32> to vector<1x1x1x4x16x16xf32>
    tpu.vector_store %arg6[%c0_50, %c0_51, %c0_52, %c0_53, %c0_54, %c0_55], %55 {strides = array<i32>} : memref<1x2x2x4x16x16xf32, #tpu.memory_space<vmem>>, vector<1x1x1x4x16x16xf32>,
    %c0_i32_56 = arith.constant 0 : i32
    %56 = arith.addi %0, %c0_i32_56 : i32
    %c0_57 = arith.constant 0 : index
    %57 = arith.index_cast %56 : i32 to index
    %c1_58 = arith.constant 1 : index
    %c0_59 = arith.constant 0 : index
    %58 = vector.load %arg3[%c0_57, %57, %c1_58, %c0_59] : memref<1x13x17x16xbf16, #tpu.memory_space<vmem>>, vector<1x4x16x16xbf16>
    %59 = vector.shape_cast %58 : vector<1x4x16x16xbf16> to vector<4x16x16xbf16>
    %60 = vector.shape_cast %59 : vector<4x16x16xbf16> to vector<64x16xbf16>
    %c2_60 = arith.constant 2 : index
    %c1_61 = arith.constant 1 : index
    %c0_62 = arith.constant 0 : index
    %c0_63 = arith.constant 0 : index
    %61 = vector.load %arg4[%c2_60, %c1_61, %c0_62, %c0_63] : memref<3x3x16x16xbf16, #tpu.memory_space<vmem>>, vector<1x1x16x16xbf16>
    %62 = vector.shape_cast %61 : vector<1x1x16x16xbf16> to vector<16x16xbf16>
    %cst_64 = arith.constant dense<0.000000e+00> : vector<64x16xf32>
    %63 = tpu.matmul %60, %62, %cst_64 {dimension_numbers = #tpu.dot_dimension_numbers<[1], [0], [0], [1], [0, 0, 1, 1], [], []>} : vector<64x16xbf16>, vector<16x16xbf16>, vector<64x16xf32> -> vector<64x16xf32>
    %c0_65 = arith.constant 0 : index
    %c0_66 = arith.constant 0 : index
    %64 = vector.load %arg7[%c0_65, %c0_66] : memref<64x16xf32, #tpu.memory_space<vmem>>, vector<64x16xf32>
    tpu.vector_store %arg7[%c0_65, %c0_66], %63 {strides = array<i32>} : memref<64x16xf32, #tpu.memory_space<vmem>>, vector<64x16xf32>,
    %c1_i32_67 = arith.constant 1 : i32
    %65 = arith.addi %0, %c1_i32_67 : i32
    %c0_68 = arith.constant 0 : index
    %66 = arith.index_cast %65 : i32 to index
    %c1_69 = arith.constant 1 : index
    %c0_70 = arith.constant 0 : index
    %67 = vector.load %arg3[%c0_68, %66, %c1_69, %c0_70] : memref<1x13x17x16xbf16, #tpu.memory_space<vmem>>, vector<1x4x16x16xbf16>
    %68 = vector.shape_cast %67 : vector<1x4x16x16xbf16> to vector<4x16x16xbf16>
    %69 = vector.shape_cast %68 : vector<4x16x16xbf16> to vector<64x16xbf16>
    %c0_71 = arith.constant 0 : index
    %c1_72 = arith.constant 1 : index
    %c0_73 = arith.constant 0 : index
    %c0_74 = arith.constant 0 : index
    %70 = vector.load %arg4[%c0_71, %c1_72, %c0_73, %c0_74] : memref<3x3x16x16xbf16, #tpu.memory_space<vmem>>, vector<1x1x16x16xbf16>
    %71 = vector.shape_cast %70 : vector<1x1x16x16xbf16> to vector<16x16xbf16>
    %cst_75 = arith.constant dense<0.000000e+00> : vector<64x16xf32>
    %72 = tpu.matmul %69, %71, %cst_75 {dimension_numbers = #tpu.dot_dimension_numbers<[1], [0], [0], [1], [0, 0, 1, 1], [], []>} : vector<64x16xbf16>, vector<16x16xbf16>, vector<64x16xf32> -> vector<64x16xf32>
    %c0_76 = arith.constant 0 : index
    %c0_77 = arith.constant 0 : index
    %73 = vector.load %arg7[%c0_76, %c0_77] : memref<64x16xf32, #tpu.memory_space<vmem>>, vector<64x16xf32>
    %74 = arith.addf %73, %72 : vector<64x16xf32>
    %c0_78 = arith.constant 0 : index
    %c0_79 = arith.constant 0 : index
    %75 = vector.load %arg7[%c0_78, %c0_79] : memref<64x16xf32, #tpu.memory_space<vmem>>, vector<64x16xf32>
    tpu.vector_store %arg7[%c0_78, %c0_79], %74 {strides = array<i32>} : memref<64x16xf32, #tpu.memory_space<vmem>>, vector<64x16xf32>,
    %c0_80 = arith.constant 0 : index
    %c0_81 = arith.constant 0 : index
    %76 = vector.load %arg7[%c0_80, %c0_81] : memref<64x16xf32, #tpu.memory_space<vmem>>, vector<64x16xf32>
    %77 = vector.broadcast %1 : vector<1x16xf32> to vector<64x16xf32>
    %78 = arith.addf %76, %77 : vector<64x16xf32>
    %cst_82 = arith.constant 0.000000e+00 : f32
    %79 = vector.broadcast %cst_82 : f32 to vector<64x16xf32>
    %80 = arith.cmpf ogt, %78, %79 : vector<64x16xf32>
    %cst_83 = arith.constant -0.00999999977 : f32
    %81 = vector.broadcast %cst_83 : f32 to vector<64x16xf32>
    %82 = arith.mulf %78, %81 : vector<64x16xf32>
    %83 = arith.select %80, %78, %82 : vector<64x16xi1>, vector<64x16xf32>
    %84 = vector.shape_cast %83 : vector<64x16xf32> to vector<4x16x16xf32>
    %c0_84 = arith.constant 0 : index
    %c0_85 = arith.constant 0 : index
    %c1_86 = arith.constant 1 : index
    %c0_87 = arith.constant 0 : index
    %c0_88 = arith.constant 0 : index
    %c0_89 = arith.constant 0 : index
    %85 = vector.load %arg6[%c0_84, %c0_85, %c1_86, %c0_87, %c0_88, %c0_89] : memref<1x2x2x4x16x16xf32, #tpu.memory_space<vmem>>, vector<1x1x1x4x16x16xf32>
    %86 = vector.shape_cast %85 : vector<1x1x1x4x16x16xf32> to vector<4x16x16xf32>
    %87 = vector.shape_cast %84 : vector<4x16x16xf32> to vector<1x1x1x4x16x16xf32>
    tpu.vector_store %arg6[%c0_84, %c0_85, %c1_86, %c0_87, %c0_88, %c0_89], %87 {strides = array<i32>} : memref<1x2x2x4x16x16xf32, #tpu.memory_space<vmem>>, vector<1x1x1x4x16x16xf32>,
    %c1_i32_90 = arith.constant 1 : i32
    %88 = arith.addi %0, %c1_i32_90 : i32
    %c0_91 = arith.constant 0 : index
    %89 = arith.index_cast %88 : i32 to index
    %c0_92 = arith.constant 0 : index
    %c0_93 = arith.constant 0 : index
    %90 = vector.load %arg3[%c0_91, %89, %c0_92, %c0_93] : memref<1x13x17x16xbf16, #tpu.memory_space<vmem>>, vector<1x4x16x16xbf16>
    %91 = vector.shape_cast %90 : vector<1x4x16x16xbf16> to vector<4x16x16xbf16>
    %92 = vector.shape_cast %91 : vector<4x16x16xbf16> to vector<64x16xbf16>
    %c1_94 = arith.constant 1 : index
    %c2_95 = arith.constant 2 : index
    %c0_96 = arith.constant 0 : index
    %c0_97 = arith.constant 0 : index
    %93 = vector.load %arg4[%c1_94, %c2_95, %c0_96, %c0_97] : memref<3x3x16x16xbf16, #tpu.memory_space<vmem>>, vector<1x1x16x16xbf16>
    %94 = vector.shape_cast %93 : vector<1x1x16x16xbf16> to vector<16x16xbf16>
    %cst_98 = arith.constant dense<0.000000e+00> : vector<64x16xf32>
    %95 = tpu.matmul %92, %94, %cst_98 {dimension_numbers = #tpu.dot_dimension_numbers<[1], [0], [0], [1], [0, 0, 1, 1], [], []>} : vector<64x16xbf16>, vector<16x16xbf16>, vector<64x16xf32> -> vector<64x16xf32>
    %c0_99 = arith.constant 0 : index
    %c0_100 = arith.constant 0 : index
    %96 = vector.load %arg7[%c0_99, %c0_100] : memref<64x16xf32, #tpu.memory_space<vmem>>, vector<64x16xf32>
    tpu.vector_store %arg7[%c0_99, %c0_100], %95 {strides = array<i32>} : memref<64x16xf32, #tpu.memory_space<vmem>>, vector<64x16xf32>,
    %c1_i32_101 = arith.constant 1 : i32
    %97 = arith.addi %0, %c1_i32_101 : i32
    %c0_102 = arith.constant 0 : index
    %98 = arith.index_cast %97 : i32 to index
    %c1_103 = arith.constant 1 : index
    %c0_104 = arith.constant 0 : index
    %99 = vector.load %arg3[%c0_102, %98, %c1_103, %c0_104] : memref<1x13x17x16xbf16, #tpu.memory_space<vmem>>, vector<1x4x16x16xbf16>
    %100 = vector.shape_cast %99 : vector<1x4x16x16xbf16> to vector<4x16x16xbf16>
    %101 = vector.shape_cast %100 : vector<4x16x16xbf16> to vector<64x16xbf16>
    %c1_105 = arith.constant 1 : index
    %c0_106 = arith.constant 0 : index
    %c0_107 = arith.constant 0 : index
    %c0_108 = arith.constant 0 : index
    %102 = vector.load %arg4[%c1_105, %c0_106, %c0_107, %c0_108] : memref<3x3x16x16xbf16, #tpu.memory_space<vmem>>, vector<1x1x16x16xbf16>
    %103 = vector.shape_cast %102 : vector<1x1x16x16xbf16> to vector<16x16xbf16>
    %cst_109 = arith.constant dense<0.000000e+00> : vector<64x16xf32>
    %104 = tpu.matmul %101, %103, %cst_109 {dimension_numbers = #tpu.dot_dimension_numbers<[1], [0], [0], [1], [0, 0, 1, 1], [], []>} : vector<64x16xbf16>, vector<16x16xbf16>, vector<64x16xf32> -> vector<64x16xf32>
    %c0_110 = arith.constant 0 : index
    %c0_111 = arith.constant 0 : index
    %105 = vector.load %arg7[%c0_110, %c0_111] : memref<64x16xf32, #tpu.memory_space<vmem>>, vector<64x16xf32>
    %106 = arith.addf %105, %104 : vector<64x16xf32>
    %c0_112 = arith.constant 0 : index
    %c0_113 = arith.constant 0 : index
    %107 = vector.load %arg7[%c0_112, %c0_113] : memref<64x16xf32, #tpu.memory_space<vmem>>, vector<64x16xf32>
    tpu.vector_store %arg7[%c0_112, %c0_113], %106 {strides = array<i32>} : memref<64x16xf32, #tpu.memory_space<vmem>>, vector<64x16xf32>,
    %c0_114 = arith.constant 0 : index
    %c0_115 = arith.constant 0 : index
    %108 = vector.load %arg7[%c0_114, %c0_115] : memref<64x16xf32, #tpu.memory_space<vmem>>, vector<64x16xf32>
    %109 = vector.broadcast %1 : vector<1x16xf32> to vector<64x16xf32>
    %110 = arith.addf %108, %109 : vector<64x16xf32>
    %cst_116 = arith.constant 0.000000e+00 : f32
    %111 = vector.broadcast %cst_116 : f32 to vector<64x16xf32>
    %112 = arith.cmpf ogt, %110, %111 : vector<64x16xf32>
    %cst_117 = arith.constant -0.00999999977 : f32
    %113 = vector.broadcast %cst_117 : f32 to vector<64x16xf32>
    %114 = arith.mulf %110, %113 : vector<64x16xf32>
    %115 = arith.select %112, %110, %114 : vector<64x16xi1>, vector<64x16xf32>
    %116 = vector.shape_cast %115 : vector<64x16xf32> to vector<4x16x16xf32>
    %c0_118 = arith.constant 0 : index
    %c1_119 = arith.constant 1 : index
    %c0_120 = arith.constant 0 : index
    %c0_121 = arith.constant 0 : index
    %c0_122 = arith.constant 0 : index
    %c0_123 = arith.constant 0 : index
    %117 = vector.load %arg6[%c0_118, %c1_119, %c0_120, %c0_121, %c0_122, %c0_123] : memref<1x2x2x4x16x16xf32, #tpu.memory_space<vmem>>, vector<1x1x1x4x16x16xf32>
    %118 = vector.shape_cast %117 : vector<1x1x1x4x16x16xf32> to vector<4x16x16xf32>
    %119 = vector.shape_cast %116 : vector<4x16x16xf32> to vector<1x1x1x4x16x16xf32>
    tpu.vector_store %arg6[%c0_118, %c1_119, %c0_120, %c0_121, %c0_122, %c0_123], %119 {strides = array<i32>} : memref<1x2x2x4x16x16xf32, #tpu.memory_space<vmem>>, vector<1x1x1x4x16x16xf32>,
    %c1_i32_124 = arith.constant 1 : i32
    %120 = arith.addi %0, %c1_i32_124 : i32
    %c0_125 = arith.constant 0 : index
    %121 = arith.index_cast %120 : i32 to index
    %c1_126 = arith.constant 1 : index
    %c0_127 = arith.constant 0 : index
    %122 = vector.load %arg3[%c0_125, %121, %c1_126, %c0_127] : memref<1x13x17x16xbf16, #tpu.memory_space<vmem>>, vector<1x4x16x16xbf16>
    %123 = vector.shape_cast %122 : vector<1x4x16x16xbf16> to vector<4x16x16xbf16>
    %124 = vector.shape_cast %123 : vector<4x16x16xbf16> to vector<64x16xbf16>
    %c1_128 = arith.constant 1 : index
    %c1_129 = arith.constant 1 : index
    %c0_130 = arith.constant 0 : index
    %c0_131 = arith.constant 0 : index
    %125 = vector.load %arg4[%c1_128, %c1_129, %c0_130, %c0_131] : memref<3x3x16x16xbf16, #tpu.memory_space<vmem>>, vector<1x1x16x16xbf16>
    %126 = vector.shape_cast %125 : vector<1x1x16x16xbf16> to vector<16x16xbf16>
    %cst_132 = arith.constant dense<0.000000e+00> : vector<64x16xf32>
    %127 = tpu.matmul %124, %126, %cst_132 {dimension_numbers = #tpu.dot_dimension_numbers<[1], [0], [0], [1], [0, 0, 1, 1], [], []>} : vector<64x16xbf16>, vector<16x16xbf16>, vector<64x16xf32> -> vector<64x16xf32>
    %c0_133 = arith.constant 0 : index
    %c0_134 = arith.constant 0 : index
    %128 = vector.load %arg7[%c0_133, %c0_134] : memref<64x16xf32, #tpu.memory_space<vmem>>, vector<64x16xf32>
    tpu.vector_store %arg7[%c0_133, %c0_134], %127 {strides = array<i32>} : memref<64x16xf32, #tpu.memory_space<vmem>>, vector<64x16xf32>,
    %c0_135 = arith.constant 0 : index
    %c0_136 = arith.constant 0 : index
    %129 = vector.load %arg7[%c0_135, %c0_136] : memref<64x16xf32, #tpu.memory_space<vmem>>, vector<64x16xf32>
    %130 = vector.broadcast %1 : vector<1x16xf32> to vector<64x16xf32>
    %131 = arith.addf %129, %130 : vector<64x16xf32>
    %cst_137 = arith.constant 0.000000e+00 : f32
    %132 = vector.broadcast %cst_137 : f32 to vector<64x16xf32>
    %133 = arith.cmpf ogt, %131, %132 : vector<64x16xf32>
    %cst_138 = arith.constant -0.00999999977 : f32
    %134 = vector.broadcast %cst_138 : f32 to vector<64x16xf32>
    %135 = arith.mulf %131, %134 : vector<64x16xf32>
    %136 = arith.select %133, %131, %135 : vector<64x16xi1>, vector<64x16xf32>
    %137 = vector.shape_cast %136 : vector<64x16xf32> to vector<4x16x16xf32>
    %c0_139 = arith.constant 0 : index
    %c1_140 = arith.constant 1 : index
    %c1_141 = arith.constant 1 : index
    %c0_142 = arith.constant 0 : index
    %c0_143 = arith.constant 0 : index
    %c0_144 = arith.constant 0 : index
    %138 = vector.load %arg6[%c0_139, %c1_140, %c1_141, %c0_142, %c0_143, %c0_144] : memref<1x2x2x4x16x16xf32, #tpu.memory_space<vmem>>, vector<1x1x1x4x16x16xf32>
    %139 = vector.shape_cast %138 : vector<1x1x1x4x16x16xf32> to vector<4x16x16xf32>
    %140 = vector.shape_cast %137 : vector<4x16x16xf32> to vector<1x1x1x4x16x16xf32>
    tpu.vector_store %arg6[%c0_139, %c1_140, %c1_141, %c0_142, %c0_143, %c0_144], %140 {strides = array<i32>} : memref<1x2x2x4x16x16xf32, #tpu.memory_space<vmem>>, vector<1x1x1x4x16x16xf32>,
    return
  }
  func.func @transform_0(%arg0: i32, %arg1: i32, %arg2: i32) -> (i32, i32, i32, i32) {
    %c0_i32 = arith.constant 0 : i32
    %c0_i32_0 = arith.constant 0 : i32
    %c0_i32_1 = arith.constant 0 : i32
    %c0_i32_2 = arith.constant 0 : i32
    return %arg0, %c0_i32, %c0_i32_0, %c0_i32_1 : i32, i32, i32, i32
  }
  func.func @transform_1(%arg0: i32, %arg1: i32, %arg2: i32) -> (i32, i32, i32, i32) {
    %c0_i32 = arith.constant 0 : i32
    %c0_i32_0 = arith.constant 0 : i32
    %c0_i32_1 = arith.constant 0 : i32
    %c0_i32_2 = arith.constant 0 : i32
    return %c0_i32, %c0_i32_0, %c0_i32_1, %arg1 : i32, i32, i32, i32
  }
  func.func @transform_2(%arg0: i32, %arg1: i32, %arg2: i32) -> (i32, i32) {
    %c0_i32 = arith.constant 0 : i32
    %c0_i32_0 = arith.constant 0 : i32
    return %c0_i32, %arg1 : i32, i32
  }
  func.func @transform_3(%arg0: i32, %arg1: i32, %arg2: i32) -> (i32, i32, i32, i32, i32, i32) {
    %c0_i32 = arith.constant 0 : i32
    %c0_i32_0 = arith.constant 0 : i32
    %c0_i32_1 = arith.constant 0 : i32
    %c0_i32_2 = arith.constant 0 : i32
    return %arg0, %c0_i32, %c0_i32_0, %arg2, %c0_i32_1, %arg1 : i32, i32, i32, i32, i32, i32
  }
}

module attributes {stable_mosaic.version = 11 : i64} {
  func.func @kernel(%arg0: i32, %arg1: i32, %arg2: memref<1x14x14x16xbf16, #tpu.memory_space<vmem>>, %arg3: memref<3x3x16x24xbf16, #tpu.memory_space<vmem>>, %arg4: memref<24x16xbf16, #tpu.memory_space<vmem>>, %arg5: memref<1x16xf32, #tpu.memory_space<vmem>>, %arg6: memref<1x4x8x16xbf16, #tpu.memory_space<vmem>>, %arg7: memref<32x24xf32, #tpu.memory_space<vmem>>) attributes {dimension_semantics = [#tpu.dimension_semantics<parallel>, #tpu.dimension_semantics<parallel>], iteration_bounds = array<i64: 2, 2>, scalar_prefetch = 0 : i64, scratch_operands = 1 : i64, tpu.core_type = #tpu.core_type<tc>, window_params = [{transform_indices = @transform_0, window_bounds = array<i64: 1, 14, 14, 16>}, {pipeline_mode = #tpu.pipeline_mode<synchronous>, transform_indices = @transform_1, window_bounds = array<i64: 3, 3, 16, 24>}, {pipeline_mode = #tpu.pipeline_mode<synchronous>, transform_indices = @transform_2, window_bounds = array<i64: 24, 16>}, {pipeline_mode = #tpu.pipeline_mode<synchronous>, transform_indices = @transform_3, window_bounds = array<i64: 1, 16>}, {transform_indices = @transform_4, window_bounds = array<i64: 1, 4, 8, 16>}]} {
    %c4_i32 = arith.constant 4 : i32
    %0 = arith.muli %arg1, %c4_i32 : i32
    %c0_i32 = arith.constant 0 : i32
    %1 = arith.addi %0, %c0_i32 : i32
    %c0 = arith.constant 0 : index
    %2 = arith.index_cast %1 : i32 to index
    %c0_0 = arith.constant 0 : index
    %c0_1 = arith.constant 0 : index
    %3 = vector.load %arg2[%c0, %2, %c0_0, %c0_1] : memref<1x14x14x16xbf16, #tpu.memory_space<vmem>>, vector<1x4x8x16xbf16>
    %4 = vector.shape_cast %3 : vector<1x4x8x16xbf16> to vector<4x8x16xbf16>
    %5 = vector.shape_cast %4 : vector<4x8x16xbf16> to vector<32x16xbf16>
    %c0_2 = arith.constant 0 : index
    %c0_3 = arith.constant 0 : index
    %c0_4 = arith.constant 0 : index
    %c0_5 = arith.constant 0 : index
    %6 = vector.load %arg3[%c0_2, %c0_3, %c0_4, %c0_5] : memref<3x3x16x24xbf16, #tpu.memory_space<vmem>>, vector<1x1x16x24xbf16>
    %7 = vector.shape_cast %6 : vector<1x1x16x24xbf16> to vector<16x24xbf16>
    %cst = arith.constant dense<0.000000e+00> : vector<32x24xf32>
    %8 = tpu.matmul %5, %7, %cst {dimension_numbers = #tpu.dot_dimension_numbers<[1], [0], [0], [1], [0, 0, 1, 1], [], []>} : vector<32x16xbf16>, vector<16x24xbf16>, vector<32x24xf32> -> vector<32x24xf32>
    %c0_6 = arith.constant 0 : index
    %c0_7 = arith.constant 0 : index
    %9 = vector.load %arg7[%c0_6, %c0_7] : memref<32x24xf32, #tpu.memory_space<vmem>>, vector<32x24xf32>
    tpu.vector_store %arg7[%c0_6, %c0_7], %8 {strides = array<i32>} : memref<32x24xf32, #tpu.memory_space<vmem>>, vector<32x24xf32>,
    %c0_i32_8 = arith.constant 0 : i32
    %10 = arith.addi %0, %c0_i32_8 : i32
    %c0_9 = arith.constant 0 : index
    %11 = arith.index_cast %10 : i32 to index
    %c3 = arith.constant 3 : index
    %c0_10 = arith.constant 0 : index
    %12 = vector.load %arg2[%c0_9, %11, %c3, %c0_10] : memref<1x14x14x16xbf16, #tpu.memory_space<vmem>>, vector<1x4x8x16xbf16>
    %13 = vector.shape_cast %12 : vector<1x4x8x16xbf16> to vector<4x8x16xbf16>
    %14 = vector.shape_cast %13 : vector<4x8x16xbf16> to vector<32x16xbf16>
    %c0_11 = arith.constant 0 : index
    %c1 = arith.constant 1 : index
    %c0_12 = arith.constant 0 : index
    %c0_13 = arith.constant 0 : index
    %15 = vector.load %arg3[%c0_11, %c1, %c0_12, %c0_13] : memref<3x3x16x24xbf16, #tpu.memory_space<vmem>>, vector<1x1x16x24xbf16>
    %16 = vector.shape_cast %15 : vector<1x1x16x24xbf16> to vector<16x24xbf16>
    %cst_14 = arith.constant dense<0.000000e+00> : vector<32x24xf32>
    %17 = tpu.matmul %14, %16, %cst_14 {dimension_numbers = #tpu.dot_dimension_numbers<[1], [0], [0], [1], [0, 0, 1, 1], [], []>} : vector<32x16xbf16>, vector<16x24xbf16>, vector<32x24xf32> -> vector<32x24xf32>
    %c0_15 = arith.constant 0 : index
    %c0_16 = arith.constant 0 : index
    %18 = vector.load %arg7[%c0_15, %c0_16] : memref<32x24xf32, #tpu.memory_space<vmem>>, vector<32x24xf32>
    %19 = arith.addf %18, %17 : vector<32x24xf32>
    %c0_17 = arith.constant 0 : index
    %c0_18 = arith.constant 0 : index
    %20 = vector.load %arg7[%c0_17, %c0_18] : memref<32x24xf32, #tpu.memory_space<vmem>>, vector<32x24xf32>
    tpu.vector_store %arg7[%c0_17, %c0_18], %19 {strides = array<i32>} : memref<32x24xf32, #tpu.memory_space<vmem>>, vector<32x24xf32>,
    %c0_i32_19 = arith.constant 0 : i32
    %21 = arith.addi %0, %c0_i32_19 : i32
    %c0_20 = arith.constant 0 : index
    %22 = arith.index_cast %21 : i32 to index
    %c6 = arith.constant 6 : index
    %c0_21 = arith.constant 0 : index
    %23 = vector.load %arg2[%c0_20, %22, %c6, %c0_21] : memref<1x14x14x16xbf16, #tpu.memory_space<vmem>>, vector<1x4x8x16xbf16>
    %24 = vector.shape_cast %23 : vector<1x4x8x16xbf16> to vector<4x8x16xbf16>
    %25 = vector.shape_cast %24 : vector<4x8x16xbf16> to vector<32x16xbf16>
    %c0_22 = arith.constant 0 : index
    %c2 = arith.constant 2 : index
    %c0_23 = arith.constant 0 : index
    %c0_24 = arith.constant 0 : index
    %26 = vector.load %arg3[%c0_22, %c2, %c0_23, %c0_24] : memref<3x3x16x24xbf16, #tpu.memory_space<vmem>>, vector<1x1x16x24xbf16>
    %27 = vector.shape_cast %26 : vector<1x1x16x24xbf16> to vector<16x24xbf16>
    %cst_25 = arith.constant dense<0.000000e+00> : vector<32x24xf32>
    %28 = tpu.matmul %25, %27, %cst_25 {dimension_numbers = #tpu.dot_dimension_numbers<[1], [0], [0], [1], [0, 0, 1, 1], [], []>} : vector<32x16xbf16>, vector<16x24xbf16>, vector<32x24xf32> -> vector<32x24xf32>
    %c0_26 = arith.constant 0 : index
    %c0_27 = arith.constant 0 : index
    %29 = vector.load %arg7[%c0_26, %c0_27] : memref<32x24xf32, #tpu.memory_space<vmem>>, vector<32x24xf32>
    %30 = arith.addf %29, %28 : vector<32x24xf32>
    %c0_28 = arith.constant 0 : index
    %c0_29 = arith.constant 0 : index
    %31 = vector.load %arg7[%c0_28, %c0_29] : memref<32x24xf32, #tpu.memory_space<vmem>>, vector<32x24xf32>
    tpu.vector_store %arg7[%c0_28, %c0_29], %30 {strides = array<i32>} : memref<32x24xf32, #tpu.memory_space<vmem>>, vector<32x24xf32>,
    %c3_i32 = arith.constant 3 : i32
    %32 = arith.addi %0, %c3_i32 : i32
    %c0_30 = arith.constant 0 : index
    %33 = arith.index_cast %32 : i32 to index
    %c0_31 = arith.constant 0 : index
    %c0_32 = arith.constant 0 : index
    %34 = vector.load %arg2[%c0_30, %33, %c0_31, %c0_32] : memref<1x14x14x16xbf16, #tpu.memory_space<vmem>>, vector<1x4x8x16xbf16>
    %35 = vector.shape_cast %34 : vector<1x4x8x16xbf16> to vector<4x8x16xbf16>
    %36 = vector.shape_cast %35 : vector<4x8x16xbf16> to vector<32x16xbf16>
    %c1_33 = arith.constant 1 : index
    %c0_34 = arith.constant 0 : index
    %c0_35 = arith.constant 0 : index
    %c0_36 = arith.constant 0 : index
    %37 = vector.load %arg3[%c1_33, %c0_34, %c0_35, %c0_36] : memref<3x3x16x24xbf16, #tpu.memory_space<vmem>>, vector<1x1x16x24xbf16>
    %38 = vector.shape_cast %37 : vector<1x1x16x24xbf16> to vector<16x24xbf16>
    %cst_37 = arith.constant dense<0.000000e+00> : vector<32x24xf32>
    %39 = tpu.matmul %36, %38, %cst_37 {dimension_numbers = #tpu.dot_dimension_numbers<[1], [0], [0], [1], [0, 0, 1, 1], [], []>} : vector<32x16xbf16>, vector<16x24xbf16>, vector<32x24xf32> -> vector<32x24xf32>
    %c0_38 = arith.constant 0 : index
    %c0_39 = arith.constant 0 : index
    %40 = vector.load %arg7[%c0_38, %c0_39] : memref<32x24xf32, #tpu.memory_space<vmem>>, vector<32x24xf32>
    %41 = arith.addf %40, %39 : vector<32x24xf32>
    %c0_40 = arith.constant 0 : index
    %c0_41 = arith.constant 0 : index
    %42 = vector.load %arg7[%c0_40, %c0_41] : memref<32x24xf32, #tpu.memory_space<vmem>>, vector<32x24xf32>
    tpu.vector_store %arg7[%c0_40, %c0_41], %41 {strides = array<i32>} : memref<32x24xf32, #tpu.memory_space<vmem>>, vector<32x24xf32>,
    %c3_i32_42 = arith.constant 3 : i32
    %43 = arith.addi %0, %c3_i32_42 : i32
    %c0_43 = arith.constant 0 : index
    %44 = arith.index_cast %43 : i32 to index
    %c3_44 = arith.constant 3 : index
    %c0_45 = arith.constant 0 : index
    %45 = vector.load %arg2[%c0_43, %44, %c3_44, %c0_45] : memref<1x14x14x16xbf16, #tpu.memory_space<vmem>>, vector<1x4x8x16xbf16>
    %46 = vector.shape_cast %45 : vector<1x4x8x16xbf16> to vector<4x8x16xbf16>
    %47 = vector.shape_cast %46 : vector<4x8x16xbf16> to vector<32x16xbf16>
    %c1_46 = arith.constant 1 : index
    %c1_47 = arith.constant 1 : index
    %c0_48 = arith.constant 0 : index
    %c0_49 = arith.constant 0 : index
    %48 = vector.load %arg3[%c1_46, %c1_47, %c0_48, %c0_49] : memref<3x3x16x24xbf16, #tpu.memory_space<vmem>>, vector<1x1x16x24xbf16>
    %49 = vector.shape_cast %48 : vector<1x1x16x24xbf16> to vector<16x24xbf16>
    %cst_50 = arith.constant dense<0.000000e+00> : vector<32x24xf32>
    %50 = tpu.matmul %47, %49, %cst_50 {dimension_numbers = #tpu.dot_dimension_numbers<[1], [0], [0], [1], [0, 0, 1, 1], [], []>} : vector<32x16xbf16>, vector<16x24xbf16>, vector<32x24xf32> -> vector<32x24xf32>
    %c0_51 = arith.constant 0 : index
    %c0_52 = arith.constant 0 : index
    %51 = vector.load %arg7[%c0_51, %c0_52] : memref<32x24xf32, #tpu.memory_space<vmem>>, vector<32x24xf32>
    %52 = arith.addf %51, %50 : vector<32x24xf32>
    %c0_53 = arith.constant 0 : index
    %c0_54 = arith.constant 0 : index
    %53 = vector.load %arg7[%c0_53, %c0_54] : memref<32x24xf32, #tpu.memory_space<vmem>>, vector<32x24xf32>
    tpu.vector_store %arg7[%c0_53, %c0_54], %52 {strides = array<i32>} : memref<32x24xf32, #tpu.memory_space<vmem>>, vector<32x24xf32>,
    %c3_i32_55 = arith.constant 3 : i32
    %54 = arith.addi %0, %c3_i32_55 : i32
    %c0_56 = arith.constant 0 : index
    %55 = arith.index_cast %54 : i32 to index
    %c6_57 = arith.constant 6 : index
    %c0_58 = arith.constant 0 : index
    %56 = vector.load %arg2[%c0_56, %55, %c6_57, %c0_58] : memref<1x14x14x16xbf16, #tpu.memory_space<vmem>>, vector<1x4x8x16xbf16>
    %57 = vector.shape_cast %56 : vector<1x4x8x16xbf16> to vector<4x8x16xbf16>
    %58 = vector.shape_cast %57 : vector<4x8x16xbf16> to vector<32x16xbf16>
    %c1_59 = arith.constant 1 : index
    %c2_60 = arith.constant 2 : index
    %c0_61 = arith.constant 0 : index
    %c0_62 = arith.constant 0 : index
    %59 = vector.load %arg3[%c1_59, %c2_60, %c0_61, %c0_62] : memref<3x3x16x24xbf16, #tpu.memory_space<vmem>>, vector<1x1x16x24xbf16>
    %60 = vector.shape_cast %59 : vector<1x1x16x24xbf16> to vector<16x24xbf16>
    %cst_63 = arith.constant dense<0.000000e+00> : vector<32x24xf32>
    %61 = tpu.matmul %58, %60, %cst_63 {dimension_numbers = #tpu.dot_dimension_numbers<[1], [0], [0], [1], [0, 0, 1, 1], [], []>} : vector<32x16xbf16>, vector<16x24xbf16>, vector<32x24xf32> -> vector<32x24xf32>
    %c0_64 = arith.constant 0 : index
    %c0_65 = arith.constant 0 : index
    %62 = vector.load %arg7[%c0_64, %c0_65] : memref<32x24xf32, #tpu.memory_space<vmem>>, vector<32x24xf32>
    %63 = arith.addf %62, %61 : vector<32x24xf32>
    %c0_66 = arith.constant 0 : index
    %c0_67 = arith.constant 0 : index
    %64 = vector.load %arg7[%c0_66, %c0_67] : memref<32x24xf32, #tpu.memory_space<vmem>>, vector<32x24xf32>
    tpu.vector_store %arg7[%c0_66, %c0_67], %63 {strides = array<i32>} : memref<32x24xf32, #tpu.memory_space<vmem>>, vector<32x24xf32>,
    %c6_i32 = arith.constant 6 : i32
    %65 = arith.addi %0, %c6_i32 : i32
    %c0_68 = arith.constant 0 : index
    %66 = arith.index_cast %65 : i32 to index
    %c0_69 = arith.constant 0 : index
    %c0_70 = arith.constant 0 : index
    %67 = vector.load %arg2[%c0_68, %66, %c0_69, %c0_70] : memref<1x14x14x16xbf16, #tpu.memory_space<vmem>>, vector<1x4x8x16xbf16>
    %68 = vector.shape_cast %67 : vector<1x4x8x16xbf16> to vector<4x8x16xbf16>
    %69 = vector.shape_cast %68 : vector<4x8x16xbf16> to vector<32x16xbf16>
    %c2_71 = arith.constant 2 : index
    %c0_72 = arith.constant 0 : index
    %c0_73 = arith.constant 0 : index
    %c0_74 = arith.constant 0 : index
    %70 = vector.load %arg3[%c2_71, %c0_72, %c0_73, %c0_74] : memref<3x3x16x24xbf16, #tpu.memory_space<vmem>>, vector<1x1x16x24xbf16>
    %71 = vector.shape_cast %70 : vector<1x1x16x24xbf16> to vector<16x24xbf16>
    %cst_75 = arith.constant dense<0.000000e+00> : vector<32x24xf32>
    %72 = tpu.matmul %69, %71, %cst_75 {dimension_numbers = #tpu.dot_dimension_numbers<[1], [0], [0], [1], [0, 0, 1, 1], [], []>} : vector<32x16xbf16>, vector<16x24xbf16>, vector<32x24xf32> -> vector<32x24xf32>
    %c0_76 = arith.constant 0 : index
    %c0_77 = arith.constant 0 : index
    %73 = vector.load %arg7[%c0_76, %c0_77] : memref<32x24xf32, #tpu.memory_space<vmem>>, vector<32x24xf32>
    %74 = arith.addf %73, %72 : vector<32x24xf32>
    %c0_78 = arith.constant 0 : index
    %c0_79 = arith.constant 0 : index
    %75 = vector.load %arg7[%c0_78, %c0_79] : memref<32x24xf32, #tpu.memory_space<vmem>>, vector<32x24xf32>
    tpu.vector_store %arg7[%c0_78, %c0_79], %74 {strides = array<i32>} : memref<32x24xf32, #tpu.memory_space<vmem>>, vector<32x24xf32>,
    %c6_i32_80 = arith.constant 6 : i32
    %76 = arith.addi %0, %c6_i32_80 : i32
    %c0_81 = arith.constant 0 : index
    %77 = arith.index_cast %76 : i32 to index
    %c3_82 = arith.constant 3 : index
    %c0_83 = arith.constant 0 : index
    %78 = vector.load %arg2[%c0_81, %77, %c3_82, %c0_83] : memref<1x14x14x16xbf16, #tpu.memory_space<vmem>>, vector<1x4x8x16xbf16>
    %79 = vector.shape_cast %78 : vector<1x4x8x16xbf16> to vector<4x8x16xbf16>
    %80 = vector.shape_cast %79 : vector<4x8x16xbf16> to vector<32x16xbf16>
    %c2_84 = arith.constant 2 : index
    %c1_85 = arith.constant 1 : index
    %c0_86 = arith.constant 0 : index
    %c0_87 = arith.constant 0 : index
    %81 = vector.load %arg3[%c2_84, %c1_85, %c0_86, %c0_87] : memref<3x3x16x24xbf16, #tpu.memory_space<vmem>>, vector<1x1x16x24xbf16>
    %82 = vector.shape_cast %81 : vector<1x1x16x24xbf16> to vector<16x24xbf16>
    %cst_88 = arith.constant dense<0.000000e+00> : vector<32x24xf32>
    %83 = tpu.matmul %80, %82, %cst_88 {dimension_numbers = #tpu.dot_dimension_numbers<[1], [0], [0], [1], [0, 0, 1, 1], [], []>} : vector<32x16xbf16>, vector<16x24xbf16>, vector<32x24xf32> -> vector<32x24xf32>
    %c0_89 = arith.constant 0 : index
    %c0_90 = arith.constant 0 : index
    %84 = vector.load %arg7[%c0_89, %c0_90] : memref<32x24xf32, #tpu.memory_space<vmem>>, vector<32x24xf32>
    %85 = arith.addf %84, %83 : vector<32x24xf32>
    %c0_91 = arith.constant 0 : index
    %c0_92 = arith.constant 0 : index
    %86 = vector.load %arg7[%c0_91, %c0_92] : memref<32x24xf32, #tpu.memory_space<vmem>>, vector<32x24xf32>
    tpu.vector_store %arg7[%c0_91, %c0_92], %85 {strides = array<i32>} : memref<32x24xf32, #tpu.memory_space<vmem>>, vector<32x24xf32>,
    %c6_i32_93 = arith.constant 6 : i32
    %87 = arith.addi %0, %c6_i32_93 : i32
    %c0_94 = arith.constant 0 : index
    %88 = arith.index_cast %87 : i32 to index
    %c6_95 = arith.constant 6 : index
    %c0_96 = arith.constant 0 : index
    %89 = vector.load %arg2[%c0_94, %88, %c6_95, %c0_96] : memref<1x14x14x16xbf16, #tpu.memory_space<vmem>>, vector<1x4x8x16xbf16>
    %90 = vector.shape_cast %89 : vector<1x4x8x16xbf16> to vector<4x8x16xbf16>
    %91 = vector.shape_cast %90 : vector<4x8x16xbf16> to vector<32x16xbf16>
    %c2_97 = arith.constant 2 : index
    %c2_98 = arith.constant 2 : index
    %c0_99 = arith.constant 0 : index
    %c0_100 = arith.constant 0 : index
    %92 = vector.load %arg3[%c2_97, %c2_98, %c0_99, %c0_100] : memref<3x3x16x24xbf16, #tpu.memory_space<vmem>>, vector<1x1x16x24xbf16>
    %93 = vector.shape_cast %92 : vector<1x1x16x24xbf16> to vector<16x24xbf16>
    %cst_101 = arith.constant dense<0.000000e+00> : vector<32x24xf32>
    %94 = tpu.matmul %91, %93, %cst_101 {dimension_numbers = #tpu.dot_dimension_numbers<[1], [0], [0], [1], [0, 0, 1, 1], [], []>} : vector<32x16xbf16>, vector<16x24xbf16>, vector<32x24xf32> -> vector<32x24xf32>
    %c0_102 = arith.constant 0 : index
    %c0_103 = arith.constant 0 : index
    %95 = vector.load %arg7[%c0_102, %c0_103] : memref<32x24xf32, #tpu.memory_space<vmem>>, vector<32x24xf32>
    %96 = arith.addf %95, %94 : vector<32x24xf32>
    %c0_104 = arith.constant 0 : index
    %c0_105 = arith.constant 0 : index
    %97 = vector.load %arg7[%c0_104, %c0_105] : memref<32x24xf32, #tpu.memory_space<vmem>>, vector<32x24xf32>
    tpu.vector_store %arg7[%c0_104, %c0_105], %96 {strides = array<i32>} : memref<32x24xf32, #tpu.memory_space<vmem>>, vector<32x24xf32>,
    %c0_106 = arith.constant 0 : index
    %c0_107 = arith.constant 0 : index
    %98 = vector.load %arg7[%c0_106, %c0_107] : memref<32x24xf32, #tpu.memory_space<vmem>>, vector<32x24xf32>
    %99 = arith.truncf %98 : vector<32x24xf32> to vector<32x24xbf16>
    %c0_108 = arith.constant 0 : index
    %c0_109 = arith.constant 0 : index
    %100 = vector.load %arg4[%c0_108, %c0_109] : memref<24x16xbf16, #tpu.memory_space<vmem>>, vector<24x16xbf16>
    %cst_110 = arith.constant dense<0.000000e+00> : vector<32x16xf32>
    %101 = tpu.matmul %99, %100, %cst_110 {dimension_numbers = #tpu.dot_dimension_numbers<[1], [0], [0], [1], [0, 0, 1, 1], [], []>} : vector<32x24xbf16>, vector<24x16xbf16>, vector<32x16xf32> -> vector<32x16xf32>
    %c0_111 = arith.constant 0 : index
    %c0_112 = arith.constant 0 : index
    %102 = vector.load %arg5[%c0_111, %c0_112] : memref<1x16xf32, #tpu.memory_space<vmem>>, vector<1x16xf32>
    %103 = vector.broadcast %102 : vector<1x16xf32> to vector<32x16xf32>
    %104 = arith.addf %101, %103 : vector<32x16xf32>
    %105 = vector.shape_cast %104 : vector<32x16xf32> to vector<4x8x16xf32>
    %106 = arith.truncf %105 : vector<4x8x16xf32> to vector<4x8x16xbf16>
    %c0_113 = arith.constant 0 : index
    %c0_114 = arith.constant 0 : index
    %c0_115 = arith.constant 0 : index
    %c0_116 = arith.constant 0 : index
    %107 = vector.load %arg6[%c0_113, %c0_114, %c0_115, %c0_116] : memref<1x4x8x16xbf16, #tpu.memory_space<vmem>>, vector<1x4x8x16xbf16>
    %108 = vector.shape_cast %107 : vector<1x4x8x16xbf16> to vector<4x8x16xbf16>
    %109 = vector.shape_cast %106 : vector<4x8x16xbf16> to vector<1x4x8x16xbf16>
    tpu.vector_store %arg6[%c0_113, %c0_114, %c0_115, %c0_116], %109 {strides = array<i32>} : memref<1x4x8x16xbf16, #tpu.memory_space<vmem>>, vector<1x4x8x16xbf16>,
    return
  }
  func.func @transform_0(%arg0: i32, %arg1: i32) -> (i32, i32, i32, i32) {
    %c0_i32 = arith.constant 0 : i32
    %c0_i32_0 = arith.constant 0 : i32
    %c0_i32_1 = arith.constant 0 : i32
    %c0_i32_2 = arith.constant 0 : i32
    return %arg0, %c0_i32, %c0_i32_0, %c0_i32_1 : i32, i32, i32, i32
  }
  func.func @transform_1(%arg0: i32, %arg1: i32) -> (i32, i32, i32, i32) {
    %c0_i32 = arith.constant 0 : i32
    %c0_i32_0 = arith.constant 0 : i32
    %c0_i32_1 = arith.constant 0 : i32
    %c0_i32_2 = arith.constant 0 : i32
    %c0_i32_3 = arith.constant 0 : i32
    return %c0_i32, %c0_i32_0, %c0_i32_1, %c0_i32_2 : i32, i32, i32, i32
  }
  func.func @transform_2(%arg0: i32, %arg1: i32) -> (i32, i32) {
    %c0_i32 = arith.constant 0 : i32
    %c0_i32_0 = arith.constant 0 : i32
    %c0_i32_1 = arith.constant 0 : i32
    return %c0_i32, %c0_i32_0 : i32, i32
  }
  func.func @transform_3(%arg0: i32, %arg1: i32) -> (i32, i32) {
    %c0_i32 = arith.constant 0 : i32
    %c0_i32_0 = arith.constant 0 : i32
    %c0_i32_1 = arith.constant 0 : i32
    return %c0_i32, %c0_i32_0 : i32, i32
  }
  func.func @transform_4(%arg0: i32, %arg1: i32) -> (i32, i32, i32, i32) {
    %c0_i32 = arith.constant 0 : i32
    %c0_i32_0 = arith.constant 0 : i32
    %c0_i32_1 = arith.constant 0 : i32
    return %arg0, %arg1, %c0_i32, %c0_i32_0 : i32, i32, i32, i32
  }
}

</mosaic_0001>

<llo_original>
// kernel: _lambda_.2
$region0: #{_lambda_.2}
  #allocation0 [shape = 'u32[]', space=smem, size = 0x4, offset = 0x4, fixed_abs, tag = 'smem constant byte address 0x4 - core index']
  #allocation1 [shape = 'u32[72,128]{1,0:T(1,128)}', space=vmem, size = 0x9000, scoped, tag = 'internal scratch']
  #allocation2 [shape = 'f32[32,24]{1,0:T(8,128)}', space=vmem, size = 0x4000, scoped, tag = 'scratch operand']
  %s0 = inlined_call_operand.vmem [shape: bf16[2,14,14,16], index: 0, kind: input, shape index: {}]
  %s1 = inlined_call_operand.vmem [shape: bf16[3,3,16,24], index: 1, kind: input, shape index: {}]
  %s2 = inlined_call_operand.vmem [shape: bf16[24,16], index: 2, kind: input, shape index: {}]
  %s3 = inlined_call_operand.vmem [shape: f32[1,16], index: 3, kind: input, shape index: {}]
  %s4 = inlined_call_operand.vmem [shape: bf16[2,8,8,16], index: 4, kind: output, shape index: {}]
  %s5 = sld [smem:[#allocation0]]
  $region49: #{_lambda_.2} parent=0
    _
  %s7 = ssub.s32 1, %s5
  %s8 = scalar_select 0, %s7, %s5
  loop: start=0, step=1, limit=6
  $region2: #{_lambda_.2} parent=0 // loop_pre_header
    _
  $region3: #{_lambda_.2} parent=0 // loop_header
    %s10 = sphi 0, %s14
    %p11 = scmp.ge.s32.totalorder %s10, 6
    %s17 = sphi 0, %s29
    %s18 = sphi 0, %s25
    %s19 = sphi 0, %s17
    %s20 = sphi 0, %s18
    %s21 = sphi 0, %s19
    %s22 = sphi 0, %s20
    %s32 = sphi 0, %s34
    %s35 = sphi 0, %s32
    %s36 = sphi 0, %s35
    %s52 = sphi 0, %s36
    %s56 = sphi 0, %s56
    %s58 = sphi 0, %s56
    %s59 = sphi 0, %s58
    %s73 = sphi 0, %s59
    %s77 = sphi 0, %s77
    %s79 = sphi 0, %s77
    %s80 = sphi 0, %s79
    %s94 = sphi 0, %s80
    %s98 = sphi 0, %s98
    %s100 = sphi 0, %s98
    %s101 = sphi 0, %s100
    %s115 = sphi 0, %s101
    %s123 = sphi 0, %s125
    %s126 = sphi 0, %s123
    %s127 = sphi 0, %s126
    %s143 = sphi 0, %s127
  $region4: #{_lambda_.2} parent=0 // loop_header_branch
    %13 = sbr.rel (%p11) target = $region8
  $region5: #{_lambda_.2} parent=0 // loop_body
    %s15 = ssub.s32 %s10, 1
    %s16 = ssub.s32 %s10, 2
    %s23 = sadd.s32 1, %s18
    %p24 = scmp.ge.s32.totalorder %s23, 2
    %s25 = scalar_select %p24, 0, %s23
    %s26 = sadd.s32 1, %s17
    %s27 = scalar_select %p24, %s26, %s17
    %p28 = scmp.ge.s32.totalorder %s27, 2
    %s29 = scalar_select %p28, 0, %s27
    %s30 = ssub.s32 %s17, %s29
    %p31 = scmp.eq.s32.totalorder %s30, 0
    %s33 = sadd.s32 %s32, 1
    %s34 = scalar_select %p31, %s32, %s33
    %p37 = pneg %p31
    %p38 = scmp.eq.s32.totalorder %s10, 3
    %p39 = por %p37, %p38
    %p40 = scmp.ne.s32.totalorder %s32, %s35
    %p41 = scmp.eq.s32.totalorder %s10, 0
    %p42 = por %p40, %p41
    %p43 = scmp.ne.s32.totalorder %s32, %s35
    %p44 = scmp.eq.s32.totalorder %s15, 3
    %p45 = por %p43, %p44
    %p46 = scmp.ne.s32.totalorder %s35, %s36
    %p47 = scmp.eq.s32.totalorder %s15, 0
    %p48 = por %p46, %p47
    %p49 = scmp.ne.s32.totalorder %s35, %s36
    %p50 = scmp.eq.s32.totalorder %s16, 3
    %p51 = por %p49, %p50
    %p53 = scmp.ne.s32.totalorder %s36, %s52
    %p54 = scmp.eq.s32.totalorder %s16, 0
    %p55 = por %p53, %p54
    %s57 = sadd.s32 %s56, 1
    %p60 = scmp.eq.s32.totalorder %s10, 3
    %p61 = scmp.ne.s32.totalorder %s56, %s58
    %p62 = scmp.eq.s32.totalorder %s10, 0
    %p63 = por %p61, %p62
    %p64 = scmp.ne.s32.totalorder %s56, %s58
    %p65 = scmp.eq.s32.totalorder %s15, 3
    %p66 = por %p64, %p65
    %p67 = scmp.ne.s32.totalorder %s58, %s59
    %p68 = scmp.eq.s32.totalorder %s15, 0
    %p69 = por %p67, %p68
    %p70 = scmp.ne.s32.totalorder %s58, %s59
    %p71 = scmp.eq.s32.totalorder %s16, 3
    %p72 = por %p70, %p71
    %p74 = scmp.ne.s32.totalorder %s59, %s73
    %p75 = scmp.eq.s32.totalorder %s16, 0
    %p76 = por %p74, %p75
    %s78 = sadd.s32 %s77, 1
    %p81 = scmp.eq.s32.totalorder %s10, 3
    %p82 = scmp.ne.s32.totalorder %s77, %s79
    %p83 = scmp.eq.s32.totalorder %s10, 0
    %p84 = por %p82, %p83
    %p85 = scmp.ne.s32.totalorder %s77, %s79
    %p86 = scmp.eq.s32.totalorder %s15, 3
    %p87 = por %p85, %p86
    %p88 = scmp.ne.s32.totalorder %s79, %s80
    %p89 = scmp.eq.s32.totalorder %s15, 0
    %p90 = por %p88, %p89
    %p91 = scmp.ne.s32.totalorder %s79, %s80
    %p92 = scmp.eq.s32.totalorder %s16, 3
    %p93 = por %p91, %p92
    %p95 = scmp.ne.s32.totalorder %s80, %s94
    %p96 = scmp.eq.s32.totalorder %s16, 0
    %p97 = por %p95, %p96
    %s99 = sadd.s32 %s98, 1
    %p102 = scmp.eq.s32.totalorder %s10, 3
    %p103 = scmp.ne.s32.totalorder %s98, %s100
    %p104 = scmp.eq.s32.totalorder %s10, 0
    %p105 = por %p103, %p104
    %p106 = scmp.ne.s32.totalorder %s98, %s100
    %p107 = scmp.eq.s32.totalorder %s15, 3
    %p108 = por %p106, %p107
    %p109 = scmp.ne.s32.totalorder %s100, %s101
    %p110 = scmp.eq.s32.totalorder %s15, 0
    %p111 = por %p109, %p110
    %p112 = scmp.ne.s32.totalorder %s100, %s101
    %p113 = scmp.eq.s32.totalorder %s16, 3
    %p114 = por %p112, %p113
    %p116 = scmp.ne.s32.totalorder %s101, %s115
    %p117 = scmp.eq.s32.totalorder %s16, 0
    %p118 = por %p116, %p117
    %s119 = ssub.s32 %s17, %s29
    %s120 = ssub.s32 %s18, %s25
    %s121 = sor.u32 %s119, %s120
    %p122 = scmp.eq.s32.totalorder %s121, 0
    %s124 = sadd.s32 %s123, 1
    %s125 = scalar_select %p122, %s123, %s124
    %p128 = pneg %p122
    %p129 = scmp.eq.s32.totalorder %s10, 3
    %p130 = por %p128, %p129
    %p131 = scmp.ne.s32.totalorder %s123, %s126
    %p132 = scmp.eq.s32.totalorder %s10, 0
    %p133 = por %p131, %p132
    %p134 = scmp.ne.s32.totalorder %s123, %s126
    %p135 = scmp.eq.s32.totalorder %s15, 3
    %p136 = por %p134, %p135
    %p137 = scmp.ne.s32.totalorder %s126, %s127
    %p138 = scmp.eq.s32.totalorder %s15, 0
    %p139 = por %p137, %p138
    %p140 = scmp.ne.s32.totalorder %s126, %s127
    %p141 = scmp.eq.s32.totalorder %s16, 3
    %p142 = por %p140, %p141
    %p144 = scmp.ne.s32.totalorder %s127, %s143
    %p145 = scmp.eq.s32.totalorder %s16, 0
    %p146 = por %p144, %p145
    %p147 = scmp.le.s32.totalorder 1, %s10
    %p148 = scmp.lt.s32.totalorder %s10, 5
    %p149 = pnand %p147, %p148
    %p150 = pneg %p149
    // Predicated region
    $region9: #{_lambda_.2} parent=5 // pred_check
      _
    $region10: #{_lambda_.2} parent=5 // pred_check_branch
      %152 = sbr.rel (%p149) target = $region12
    $region11: #{_lambda_.2} parent=5 // pred_region
      %s153 = ssub.s32 %s10, 1
      // Predicated region
      $region13: #{_lambda_.2} parent=11 // pred_check
        %p154 = pneg %p69
      $region14: #{_lambda_.2} parent=11 // pred_check_branch
        %156 = sbr.rel (%p154) target = $region16
      $region15: #{_lambda_.2} parent=11 // pred_region
        _
      $region16: #{_lambda_.2} parent=11 // pred_fallthru
        _
      // Predicated region
      $region17: #{_lambda_.2} parent=11 // pred_check
        %p157 = pneg %p90
      $region18: #{_lambda_.2} parent=11 // pred_check_branch
        %159 = sbr.rel (%p157) target = $region20
      $region19: #{_lambda_.2} parent=11 // pred_region
        _
      $region20: #{_lambda_.2} parent=11 // pred_fallthru
        _
      // Predicated region
      $region21: #{_lambda_.2} parent=11 // pred_check
        %p160 = pneg %p111
      $region22: #{_lambda_.2} parent=11 // pred_check_branch
        %162 = sbr.rel (%p160) target = $region24
      $region23: #{_lambda_.2} parent=11 // pred_region
        _
      $region24: #{_lambda_.2} parent=11 // pred_fallthru
        _
    $region12: #{_lambda_.2} parent=5 // pred_fallthru
      _
    %p163 = scmp.lt.s32.totalorder %s10, 4
    // Predicated region
    $region25: #{_lambda_.2} parent=5 // pred_check
      %p164 = pneg %p163
    $region26: #{_lambda_.2} parent=5 // pred_check_branch
      %166 = sbr.rel (%p164) target = $region28
    $region27: #{_lambda_.2} parent=5 // pred_region
      // Predicated region
      $region29: #{_lambda_.2} parent=27 // pred_check
        %p167 = pneg %p42
      $region30: #{_lambda_.2} parent=27 // pred_check_branch
        %169 = sbr.rel (%p167) target = $region32
      $region31: #{_lambda_.2} parent=27 // pred_region
        %p170 = scmp.lt.s32.totalorder %s17, 1
        %s171 = scalar_select %p170, %s17, 1
        %s172 = smul.addr %s171, 28
        %s173 = smul.addr %s172, 4
        %s174 = scalar_lea.vmem %s0, %s173
      $region32: #{_lambda_.2} parent=27 // pred_fallthru
        _
    $region28: #{_lambda_.2} parent=5 // pred_fallthru
      _
    %p175 = scmp.le.s32.totalorder 1, %s10
    %p176 = scmp.lt.s32.totalorder %s10, 5
    %p177 = pnand %p175, %p176
    %p178 = pneg %p177
    // Predicated region
    $region33: #{_lambda_.2} parent=5 // pred_check
      _
    $region34: #{_lambda_.2} parent=5 // pred_check_branch
      %180 = sbr.rel (%p177) target = $region36
    $region35: #{_lambda_.2} parent=5 // pred_region
      %s181 = ssub.s32 %s10, 1
      %p182 = scmp.lt.s32.totalorder %s19, 1
      %s183 = scalar_select %p182, %s19, 1
      %s184 = smul.addr %s183, 28
      %s185 = smul.addr %s184, 4
      %s186 = scalar_lea.vmem %s0, %s185
      %p187 = pneg %p48
      %p188 = pneg %p45
      %p189 = pneg %p69
      %p190 = pneg %p66
      %p191 = pneg %p90
      %p192 = pneg %p87
      %p193 = pneg %p111
      %p194 = pneg %p108
      %p195 = pneg %p139
      %p196 = pneg %p136
      %s197 = smul.u32 4, %s20
      %p198 = scmp.lt.s32.totalorder %s19, 1
      %s199 = scalar_select %p198, %s19, 1
      %p200 = scmp.lt.s32.totalorder %s197, 7
      %s201 = scalar_select %p200, %s197, 7
      %s202 = smul.addr %s199, 8
      %s203 = sadd.s32 %s201, %s202
      %s204 = smul.addr %s203, 4
      %s205 = scalar_lea.vmem %s4, %s204
      %p206 = scmp.lt.s32.totalorder %s19, 1
      %s207 = scalar_select %p206, %s19, 1
      %s208 = smul.addr %s207, 28
      %s209 = smul.addr %s208, 4
      %s210 = scalar_lea.vmem %s0, %s209
      %s211 = smul.u32 4, %s20
      %p212 = scmp.lt.s32.totalorder %s19, 1
      %s213 = scalar_select %p212, %s19, 1
      %p214 = scmp.lt.s32.totalorder %s211, 7
      %s215 = scalar_select %p214, %s211, 7
      %s216 = smul.addr %s213, 8
      %s217 = sadd.s32 %s215, %s216
      %s218 = smul.addr %s217, 4
      %s219 = scalar_lea.vmem %s4, %s218
      %s220 = smul.u32 4, %s20
      %s222 = smul.u32 %s20, 4
      %s223 = smul.u32 %s222, 2
      %s224 = smul.addr %s223, 4
      %s225 = scalar_lea.vmem %s210, %s224
      %v226 = vld [vmem:[%s225] sm:$0xf]
      %v227 = vld [vmem:[%s225 + $0x8] sm:$0xf]
      %v228 = vld [vmem:[%s225 + $0x10] sm:$0xf]
      %v229 = vld [vmem:[%s225 + $0x18] sm:$0xf]
      %v230 = vld [vmem:[%s1] sm:$0xf]
      %v231 = vld [vmem:[%s1 + $0x4] sm:$0xf]
      %v236 = vunpack.c.l.b16 %v226
      %v237 = vunpack.c.l.b16 %v227
      %v238 = vunpack.c.l.b16 %v228
      %v239 = vunpack.c.l.b16 %v229
      %v240 = vpack.c.b16 %v237, %v236
      %v241 = vpack.c.b16 %v239, %v238
      %v244 = vunpack.c.l.b16 %v230
      %v245 = vunpack.c.l.b16 %v231
      %v246 = vpack.c.b16 %v245, %v244
      %vm248 = vcmask 130048
      %v250 = vsel %vm248, %v240, 0
      %v253 = vsel %vm248, %v241, 0
      %255 = vmatpush.bf16.msra.mxu0 0
      %256 = vmatpush.bf16.msra.mxu0 0
      %257 = vmatpush.bf16.msra.mxu0 0
      %258 = vmatpush.bf16.msra.mxu0 0
      %259 = vmatpush.bf16.msra.mxu0 0
      %260 = vmatpush.bf16.msra.mxu0 0
      %261 = vmatpush.bf16.msra.mxu0 0
      %262 = vmatpush.bf16.msra.mxu0 %v246
      %263 = vmatmul.bf16.gmra.mxu0 %v250
      %v264 = vpop.f32.mrf.mxu0
      %v265 = vadd.f32 0.0, %v264
      %v266 = vpop.f32.mrf.mxu0
      %v267 = vadd.f32 0.0, %v266
      %268 = vmatmul.bf16.gmra.mxu0 %v253
      %v269 = vpop.f32.mrf.mxu0
      %v270 = vadd.f32 0.0, %v269
      %v271 = vpop.f32.mrf.mxu0
      %v272 = vadd.f32 0.0, %v271
      %273 = vdwg.mxu0
      %vm274 = vcmask 195584
      %275 = vst.msk [vmem:[#allocation2] sm:$0xff] %vm274, %v265
      %276 = vst.msk [vmem:[#allocation2 + $0x8] sm:$0xff] %vm274, %v267
      %277 = vst.msk [vmem:[#allocation2 + $0x10] sm:$0xff] %vm274, %v270
      %278 = vst.msk [vmem:[#allocation2 + $0x18] sm:$0xff] %vm274, %v272
      %v279 = vld [vmem:[%s225] sm:$0xe]
      %v280 = vld [vmem:[%s225 + $0x4] sm:$0x3]
      %v281 = vld [vmem:[%s225 + $0x8] sm:$0xe]
      %v282 = vld [vmem:[%s225 + $0xc] sm:$0x3]
      %v283 = vld [vmem:[%s225 + $0x10] sm:$0xe]
      %v284 = vld [vmem:[%s225 + $0x14] sm:$0x3]
      %v285 = vld [vmem:[%s225 + $0x18] sm:$0xe]
      %v286 = vld [vmem:[%s225 + $0x1c] sm:$0x3]
      %vm287 = vsmask.f32 2304
      %vm288 = vsmask.f32 6416
      %vm289 = vmor %vm287, %vm288
      %v291 = vshrl.u32 %v279, 16
      %v293 = vrot.slane %v291, 5
      %v294 = vshll.u32 %v279, 16
      %v296 = vrot.slane %v294, 6
      %v297 = vor.u32 %v293, %v296
      %v298 = vrot.slane %v297, 4
      %v300 = vshrl.u32 %v280, 16
      %v302 = vrot.slane %v300, 5
      %v303 = vshll.u32 %v280, 16
      %v305 = vrot.slane %v303, 6
      %v306 = vor.u32 %v302, %v305
      %v307 = vsel %vm289, %v298, %v306
      %v309 = vshrl.u32 %v281, 16
      %v311 = vrot.slane %v309, 5
      %v312 = vshll.u32 %v281, 16
      %v314 = vrot.slane %v312, 6
      %v315 = vor.u32 %v311, %v314
      %v316 = vrot.slane %v315, 4
      %v318 = vshrl.u32 %v282, 16
      %v320 = vrot.slane %v318, 5
      %v321 = vshll.u32 %v282, 16
      %v323 = vrot.slane %v321, 6
      %v324 = vor.u32 %v320, %v323
      %v325 = vsel %vm289, %v316, %v324
      %v327 = vshrl.u32 %v283, 16
      %v329 = vrot.slane %v327, 5
      %v330 = vshll.u32 %v283, 16
      %v332 = vrot.slane %v330, 6
      %v333 = vor.u32 %v329, %v332
      %v334 = vrot.slane %v333, 4
      %v336 = vshrl.u32 %v284, 16
      %v338 = vrot.slane %v336, 5
      %v339 = vshll.u32 %v284, 16
      %v341 = vrot.slane %v339, 6
      %v342 = vor.u32 %v338, %v341
      %v343 = vsel %vm289, %v334, %v342
      %v345 = vshrl.u32 %v285, 16
      %v347 = vrot.slane %v345, 5
      %v348 = vshll.u32 %v285, 16
      %v350 = vrot.slane %v348, 6
      %v351 = vor.u32 %v347, %v350
      %v352 = vrot.slane %v351, 4
      %v354 = vshrl.u32 %v286, 16
      %v356 = vrot.slane %v354, 5
      %v357 = vshll.u32 %v286, 16
      %v359 = vrot.slane %v357, 6
      %v360 = vor.u32 %v356, %v359
      %v361 = vsel %vm289, %v352, %v360
      %s362 = scalar_lea.vmem %s1, 8
      %v363 = vld [vmem:[%s362] sm:$0xf]
      %v364 = vld [vmem:[%s362 + $0x4] sm:$0xf]
      %v365 = vunpack.c.l.b16 %v307
      %v366 = vunpack.c.l.b16 %v325
      %v367 = vunpack.c.l.b16 %v343
      %v368 = vunpack.c.l.b16 %v361
      %v369 = vpack.c.b16 %v366, %v365
      %v370 = vpack.c.b16 %v368, %v367
      %v373 = vunpack.c.l.b16 %v363
      %v374 = vunpack.c.l.b16 %v364
      %v375 = vpack.c.b16 %v374, %v373
      %v378 = vsel %vm248, %v369, 0
      %v381 = vsel %vm248, %v370, 0
      %383 = vmatpush.bf16.msra.mxu0 0
      %384 = vmatpush.bf16.msra.mxu0 0
      %385 = vmatpush.bf16.msra.mxu0 0
      %386 = vmatpush.bf16.msra.mxu0 0
      %387 = vmatpush.bf16.msra.mxu0 0
      %388 = vmatpush.bf16.msra.mxu0 0
      %389 = vmatpush.bf16.msra.mxu0 0
      %390 = vmatpush.bf16.msra.mxu0 %v375
      %391 = vmatmul.bf16.gmra.mxu0 %v378
      %v392 = vpop.f32.mrf.mxu0
      %v393 = vadd.f32 0.0, %v392
      %v394 = vpop.f32.mrf.mxu0
      %v395 = vadd.f32 0.0, %v394
      %396 = vmatmul.bf16.gmra.mxu0 %v381
      %v397 = vpop.f32.mrf.mxu0
      %v398 = vadd.f32 0.0, %v397
      %v399 = vpop.f32.mrf.mxu0
      %v400 = vadd.f32 0.0, %v399
      %401 = vdwg.mxu0
      %v402 = vld [vmem:[#allocation2] sm:$0xff]
      %v403 = vld [vmem:[#allocation2 + $0x8] sm:$0xff]
      %v404 = vld [vmem:[#allocation2 + $0x10] sm:$0xff]
      %v405 = vld [vmem:[#allocation2 + $0x18] sm:$0xff]
      %v406 = vadd.f32 %v402, %v393
      %v407 = vadd.f32 %v403, %v395
      %v408 = vadd.f32 %v404, %v398
      %v409 = vadd.f32 %v405, %v400
      %410 = vst.msk [vmem:[#allocation2] sm:$0xff] %vm274, %v406
      %411 = vst.msk [vmem:[#allocation2 + $0x8] sm:$0xff] %vm274, %v407
      %412 = vst.msk [vmem:[#allocation2 + $0x10] sm:$0xff] %vm274, %v408
      %413 = vst.msk [vmem:[#allocation2 + $0x18] sm:$0xff] %vm274, %v409
      %v414 = vld [vmem:[%s225] sm:$0x8]
      %v415 = vld [vmem:[%s225 + $0x4] sm:$0x7]
      %v416 = vld [vmem:[%s225 + $0x8] sm:$0x8]
      %v417 = vld [vmem:[%s225 + $0xc] sm:$0x7]
      %v418 = vld [vmem:[%s225 + $0x10] sm:$0x8]
      %v419 = vld [vmem:[%s225 + $0x14] sm:$0x7]
      %v420 = vld [vmem:[%s225 + $0x18] sm:$0x8]
      %v421 = vld [vmem:[%s225 + $0x1c] sm:$0x7]
      %vm430 = vcmask 1040384
      %vm431 = vcmask 1044484
      %vm432 = vmor %vm430, %vm431
      %v433 = vrot.slane %v414, 7
      %v434 = vrot.slane %v433, 4
      %v435 = vrot.slane %v415, 7
      %v436 = vsel %vm432, %v434, %v435
      %v437 = vrot.slane %v416, 7
      %v438 = vrot.slane %v437, 4
      %v439 = vrot.slane %v417, 7
      %v440 = vsel %vm432, %v438, %v439
      %v441 = vrot.slane %v418, 7
      %v442 = vrot.slane %v441, 4
      %v443 = vrot.slane %v419, 7
      %v444 = vsel %vm432, %v442, %v443
      %v445 = vrot.slane %v420, 7
      %v446 = vrot.slane %v445, 4
      %v447 = vrot.slane %v421, 7
      %v448 = vsel %vm432, %v446, %v447
      %s449 = scalar_lea.vmem %s1, 16
      %v450 = vld [vmem:[%s449] sm:$0xf]
      %v451 = vld [vmem:[%s449 + $0x4] sm:$0xf]
      %v452 = vunpack.c.l.b16 %v436
      %v453 = vunpack.c.l.b16 %v440
      %v454 = vunpack.c.l.b16 %v444
      %v455 = vunpack.c.l.b16 %v448
      %v456 = vpack.c.b16 %v453, %v452
      %v457 = vpack.c.b16 %v455, %v454
      %v460 = vunpack.c.l.b16 %v450
      %v461 = vunpack.c.l.b16 %v451
      %v462 = vpack.c.b16 %v461, %v460
      %v465 = vsel %vm248, %v456, 0
      %v468 = vsel %vm248, %v457, 0
      %470 = vmatpush.bf16.msra.mxu0 0
      %471 = vmatpush.bf16.msra.mxu0 0
      %472 = vmatpush.bf16.msra.mxu0 0
      %473 = vmatpush.bf16.msra.mxu0 0
      %474 = vmatpush.bf16.msra.mxu0 0
      %475 = vmatpush.bf16.msra.mxu0 0
      %476 = vmatpush.bf16.msra.mxu0 0
      %477 = vmatpush.bf16.msra.mxu0 %v462
      %478 = vmatmul.bf16.gmra.mxu0 %v465
      %v479 = vpop.f32.mrf.mxu0
      %v480 = vadd.f32 0.0, %v479
      %v481 = vpop.f32.mrf.mxu0
      %v482 = vadd.f32 0.0, %v481
      %483 = vmatmul.bf16.gmra.mxu0 %v468
      %v484 = vpop.f32.mrf.mxu0
      %v485 = vadd.f32 0.0, %v484
      %v486 = vpop.f32.mrf.mxu0
      %v487 = vadd.f32 0.0, %v486
      %488 = vdwg.mxu0
      %v489 = vld [vmem:[#allocation2] sm:$0xff]
      %v490 = vld [vmem:[#allocation2 + $0x8] sm:$0xff]
      %v491 = vld [vmem:[#allocation2 + $0x10] sm:$0xff]
      %v492 = vld [vmem:[#allocation2 + $0x18] sm:$0xff]
      %v493 = vadd.f32 %v489, %v480
      %v494 = vadd.f32 %v490, %v482
      %v495 = vadd.f32 %v491, %v485
      %v496 = vadd.f32 %v492, %v487
      %497 = vst.msk [vmem:[#allocation2] sm:$0xff] %vm274, %v493
      %498 = vst.msk [vmem:[#allocation2 + $0x8] sm:$0xff] %vm274, %v494
      %499 = vst.msk [vmem:[#allocation2 + $0x10] sm:$0xff] %vm274, %v495
      %500 = vst.msk [vmem:[#allocation2 + $0x18] sm:$0xff] %vm274, %v496
      %s501 = sadd.s32 %s222, 3
      %s502 = smul.u32 %s501, 2
      %s503 = smul.addr %s502, 4
      %s504 = scalar_lea.vmem %s210, %s503
      %v505 = vld [vmem:[%s504] sm:$0xf]
      %v506 = vld [vmem:[%s504 + $0x8] sm:$0xf]
      %v507 = vld [vmem:[%s504 + $0x10] sm:$0xf]
      %v508 = vld [vmem:[%s504 + $0x18] sm:$0xf]
      %s509 = scalar_lea.vmem %s1, 24
      %v510 = vld [vmem:[%s509] sm:$0xf]
      %v511 = vld [vmem:[%s509 + $0x4] sm:$0xf]
      %v516 = vunpack.c.l.b16 %v505
      %v517 = vunpack.c.l.b16 %v506
      %v518 = vunpack.c.l.b16 %v507
      %v519 = vunpack.c.l.b16 %v508
      %v520 = vpack.c.b16 %v517, %v516
      %v521 = vpack.c.b16 %v519, %v518
      %v524 = vunpack.c.l.b16 %v510
      %v525 = vunpack.c.l.b16 %v511
      %v526 = vpack.c.b16 %v525, %v524
      %v529 = vsel %vm248, %v520, 0
      %v532 = vsel %vm248, %v521, 0
      %534 = vmatpush.bf16.msra.mxu0 0
      %535 = vmatpush.bf16.msra.mxu0 0
      %536 = vmatpush.bf16.msra.mxu0 0
      %537 = vmatpush.bf16.msra.mxu0 0
      %538 = vmatpush.bf16.msra.mxu0 0
      %539 = vmatpush.bf16.msra.mxu0 0
      %540 = vmatpush.bf16.msra.mxu0 0
      %541 = vmatpush.bf16.msra.mxu0 %v526
      %542 = vmatmul.bf16.gmra.mxu0 %v529
      %v543 = vpop.f32.mrf.mxu0
      %v544 = vadd.f32 0.0, %v543
      %v545 = vpop.f32.mrf.mxu0
      %v546 = vadd.f32 0.0, %v545
      %547 = vmatmul.bf16.gmra.mxu0 %v532
      %v548 = vpop.f32.mrf.mxu0
      %v549 = vadd.f32 0.0, %v548
      %v550 = vpop.f32.mrf.mxu0
      %v551 = vadd.f32 0.0, %v550
      %552 = vdwg.mxu0
      %v553 = vld [vmem:[#allocation2] sm:$0xff]
      %v554 = vld [vmem:[#allocation2 + $0x8] sm:$0xff]
      %v555 = vld [vmem:[#allocation2 + $0x10] sm:$0xff]
      %v556 = vld [vmem:[#allocation2 + $0x18] sm:$0xff]
      %v557 = vadd.f32 %v553, %v544
      %v558 = vadd.f32 %v554, %v546
      %v559 = vadd.f32 %v555, %v549
      %v560 = vadd.f32 %v556, %v551
      %561 = vst.msk [vmem:[#allocation2] sm:$0xff] %vm274, %v557
      %562 = vst.msk [vmem:[#allocation2 + $0x8] sm:$0xff] %vm274, %v558
      %563 = vst.msk [vmem:[#allocation2 + $0x10] sm:$0xff] %vm274, %v559
      %564 = vst.msk [vmem:[#allocation2 + $0x18] sm:$0xff] %vm274, %v560
      %v565 = vld [vmem:[%s504] sm:$0xe]
      %v566 = vld [vmem:[%s504 + $0x4] sm:$0x3]
      %v567 = vld [vmem:[%s504 + $0x8] sm:$0xe]
      %v568 = vld [vmem:[%s504 + $0xc] sm:$0x3]
      %v569 = vld [vmem:[%s504 + $0x10] sm:$0xe]
      %v570 = vld [vmem:[%s504 + $0x14] sm:$0x3]
      %v571 = vld [vmem:[%s504 + $0x18] sm:$0xe]
      %v572 = vld [vmem:[%s504 + $0x1c] sm:$0x3]
      %v574 = vshrl.u32 %v565, 16
      %v576 = vrot.slane %v574, 5
      %v577 = vshll.u32 %v565, 16
      %v579 = vrot.slane %v577, 6
      %v580 = vor.u32 %v576, %v579
      %v581 = vrot.slane %v580, 4
      %v583 = vshrl.u32 %v566, 16
      %v585 = vrot.slane %v583, 5
      %v586 = vshll.u32 %v566, 16
      %v588 = vrot.slane %v586, 6
      %v589 = vor.u32 %v585, %v588
      %v590 = vsel %vm289, %v581, %v589
      %v592 = vshrl.u32 %v567, 16
      %v594 = vrot.slane %v592, 5
      %v595 = vshll.u32 %v567, 16
      %v597 = vrot.slane %v595, 6
      %v598 = vor.u32 %v594, %v597
      %v599 = vrot.slane %v598, 4
      %v601 = vshrl.u32 %v568, 16
      %v603 = vrot.slane %v601, 5
      %v604 = vshll.u32 %v568, 16
      %v606 = vrot.slane %v604, 6
      %v607 = vor.u32 %v603, %v606
      %v608 = vsel %vm289, %v599, %v607
      %v610 = vshrl.u32 %v569, 16
      %v612 = vrot.slane %v610, 5
      %v613 = vshll.u32 %v569, 16
      %v615 = vrot.slane %v613, 6
      %v616 = vor.u32 %v612, %v615
      %v617 = vrot.slane %v616, 4
      %v619 = vshrl.u32 %v570, 16
      %v621 = vrot.slane %v619, 5
      %v622 = vshll.u32 %v570, 16
      %v624 = vrot.slane %v622, 6
      %v625 = vor.u32 %v621, %v624
      %v626 = vsel %vm289, %v617, %v625
      %v628 = vshrl.u32 %v571, 16
      %v630 = vrot.slane %v628, 5
      %v631 = vshll.u32 %v571, 16
      %v633 = vrot.slane %v631, 6
      %v634 = vor.u32 %v630, %v633
      %v635 = vrot.slane %v634, 4
      %v637 = vshrl.u32 %v572, 16
      %v639 = vrot.slane %v637, 5
      %v640 = vshll.u32 %v572, 16
      %v642 = vrot.slane %v640, 6
      %v643 = vor.u32 %v639, %v642
      %v644 = vsel %vm289, %v635, %v643
      %s645 = scalar_lea.vmem %s1, 32
      %v646 = vld [vmem:[%s645] sm:$0xf]
      %v647 = vld [vmem:[%s645 + $0x4] sm:$0xf]
      %v648 = vunpack.c.l.b16 %v590
      %v649 = vunpack.c.l.b16 %v608
      %v650 = vunpack.c.l.b16 %v626
      %v651 = vunpack.c.l.b16 %v644
      %v652 = vpack.c.b16 %v649, %v648
      %v653 = vpack.c.b16 %v651, %v650
      %v656 = vunpack.c.l.b16 %v646
      %v657 = vunpack.c.l.b16 %v647
      %v658 = vpack.c.b16 %v657, %v656
      %v661 = vsel %vm248, %v652, 0
      %v664 = vsel %vm248, %v653, 0
      %666 = vmatpush.bf16.msra.mxu0 0
      %667 = vmatpush.bf16.msra.mxu0 0
      %668 = vmatpush.bf16.msra.mxu0 0
      %669 = vmatpush.bf16.msra.mxu0 0
      %670 = vmatpush.bf16.msra.mxu0 0
      %671 = vmatpush.bf16.msra.mxu0 0
      %672 = vmatpush.bf16.msra.mxu0 0
      %673 = vmatpush.bf16.msra.mxu0 %v658
      %674 = vmatmul.bf16.gmra.mxu0 %v661
      %v675 = vpop.f32.mrf.mxu0
      %v676 = vadd.f32 0.0, %v675
      %v677 = vpop.f32.mrf.mxu0
      %v678 = vadd.f32 0.0, %v677
      %679 = vmatmul.bf16.gmra.mxu0 %v664
      %v680 = vpop.f32.mrf.mxu0
      %v681 = vadd.f32 0.0, %v680
      %v682 = vpop.f32.mrf.mxu0
      %v683 = vadd.f32 0.0, %v682
      %684 = vdwg.mxu0
      %v685 = vld [vmem:[#allocation2] sm:$0xff]
      %v686 = vld [vmem:[#allocation2 + $0x8] sm:$0xff]
      %v687 = vld [vmem:[#allocation2 + $0x10] sm:$0xff]
      %v688 = vld [vmem:[#allocation2 + $0x18] sm:$0xff]
      %v689 = vadd.f32 %v685, %v676
      %v690 = vadd.f32 %v686, %v678
      %v691 = vadd.f32 %v687, %v681
      %v692 = vadd.f32 %v688, %v683
      %693 = vst.msk [vmem:[#allocation2] sm:$0xff] %vm274, %v689
      %694 = vst.msk [vmem:[#allocation2 + $0x8] sm:$0xff] %vm274, %v690
      %695 = vst.msk [vmem:[#allocation2 + $0x10] sm:$0xff] %vm274, %v691
      %696 = vst.msk [vmem:[#allocation2 + $0x18] sm:$0xff] %vm274, %v692
      %v697 = vld [vmem:[%s504] sm:$0x8]
      %v698 = vld [vmem:[%s504 + $0x4] sm:$0x7]
      %v699 = vld [vmem:[%s504 + $0x8] sm:$0x8]
      %v700 = vld [vmem:[%s504 + $0xc] sm:$0x7]
      %v701 = vld [vmem:[%s504 + $0x10] sm:$0x8]
      %v702 = vld [vmem:[%s504 + $0x14] sm:$0x7]
      %v703 = vld [vmem:[%s504 + $0x18] sm:$0x8]
      %v704 = vld [vmem:[%s504 + $0x1c] sm:$0x7]
      %v713 = vrot.slane %v697, 7
      %v714 = vrot.slane %v713, 4
      %v715 = vrot.slane %v698, 7
      %v716 = vsel %vm432, %v714, %v715
      %v717 = vrot.slane %v699, 7
      %v718 = vrot.slane %v717, 4
      %v719 = vrot.slane %v700, 7
      %v720 = vsel %vm432, %v718, %v719
      %v721 = vrot.slane %v701, 7
      %v722 = vrot.slane %v721, 4
      %v723 = vrot.slane %v702, 7
      %v724 = vsel %vm432, %v722, %v723
      %v725 = vrot.slane %v703, 7
      %v726 = vrot.slane %v725, 4
      %v727 = vrot.slane %v704, 7
      %v728 = vsel %vm432, %v726, %v727
      %s729 = scalar_lea.vmem %s1, 40
      %v730 = vld [vmem:[%s729] sm:$0xf]
      %v731 = vld [vmem:[%s729 + $0x4] sm:$0xf]
      %v732 = vunpack.c.l.b16 %v716
      %v733 = vunpack.c.l.b16 %v720
      %v734 = vunpack.c.l.b16 %v724
      %v735 = vunpack.c.l.b16 %v728
      %v736 = vpack.c.b16 %v733, %v732
      %v737 = vpack.c.b16 %v735, %v734
      %v740 = vunpack.c.l.b16 %v730
      %v741 = vunpack.c.l.b16 %v731
      %v742 = vpack.c.b16 %v741, %v740
      %v745 = vsel %vm248, %v736, 0
      %v748 = vsel %vm248, %v737, 0
      %750 = vmatpush.bf16.msra.mxu0 0
      %751 = vmatpush.bf16.msra.mxu0 0
      %752 = vmatpush.bf16.msra.mxu0 0
      %753 = vmatpush.bf16.msra.mxu0 0
      %754 = vmatpush.bf16.msra.mxu0 0
      %755 = vmatpush.bf16.msra.mxu0 0
      %756 = vmatpush.bf16.msra.mxu0 0
      %757 = vmatpush.bf16.msra.mxu0 %v742
      %758 = vmatmul.bf16.gmra.mxu0 %v745
      %v759 = vpop.f32.mrf.mxu0
      %v760 = vadd.f32 0.0, %v759
      %v761 = vpop.f32.mrf.mxu0
      %v762 = vadd.f32 0.0, %v761
      %763 = vmatmul.bf16.gmra.mxu0 %v748
      %v764 = vpop.f32.mrf.mxu0
      %v765 = vadd.f32 0.0, %v764
      %v766 = vpop.f32.mrf.mxu0
      %v767 = vadd.f32 0.0, %v766
      %768 = vdwg.mxu0
      %v769 = vld [vmem:[#allocation2] sm:$0xff]
      %v770 = vld [vmem:[#allocation2 + $0x8] sm:$0xff]
      %v771 = vld [vmem:[#allocation2 + $0x10] sm:$0xff]
      %v772 = vld [vmem:[#allocation2 + $0x18] sm:$0xff]
      %v773 = vadd.f32 %v769, %v760
      %v774 = vadd.f32 %v770, %v762
      %v775 = vadd.f32 %v771, %v765
      %v776 = vadd.f32 %v772, %v767
      %777 = vst.msk [vmem:[#allocation2] sm:$0xff] %vm274, %v773
      %778 = vst.msk [vmem:[#allocation2 + $0x8] sm:$0xff] %vm274, %v774
      %779 = vst.msk [vmem:[#allocation2 + $0x10] sm:$0xff] %vm274, %v775
      %780 = vst.msk [vmem:[#allocation2 + $0x18] sm:$0xff] %vm274, %v776
      %s781 = sadd.s32 %s222, 6
      %s782 = smul.u32 %s781, 2
      %s783 = smul.addr %s782, 4
      %s784 = scalar_lea.vmem %s210, %s783
      %v785 = vld [vmem:[%s784] sm:$0xf]
      %v786 = vld [vmem:[%s784 + $0x8] sm:$0xf]
      %v787 = vld [vmem:[%s784 + $0x10] sm:$0xf]
      %v788 = vld [vmem:[%s784 + $0x18] sm:$0xf]
      %s789 = scalar_lea.vmem %s1, 48
      %v790 = vld [vmem:[%s789] sm:$0xf]
      %v791 = vld [vmem:[%s789 + $0x4] sm:$0xf]
      %v796 = vunpack.c.l.b16 %v785
      %v797 = vunpack.c.l.b16 %v786
      %v798 = vunpack.c.l.b16 %v787
      %v799 = vunpack.c.l.b16 %v788
      %v800 = vpack.c.b16 %v797, %v796
      %v801 = vpack.c.b16 %v799, %v798
      %v804 = vunpack.c.l.b16 %v790
      %v805 = vunpack.c.l.b16 %v791
      %v806 = vpack.c.b16 %v805, %v804
      %v809 = vsel %vm248, %v800, 0
      %v812 = vsel %vm248, %v801, 0
      %814 = vmatpush.bf16.msra.mxu0 0
      %815 = vmatpush.bf16.msra.mxu0 0
      %816 = vmatpush.bf16.msra.mxu0 0
      %817 = vmatpush.bf16.msra.mxu0 0
      %818 = vmatpush.bf16.msra.mxu0 0
      %819 = vmatpush.bf16.msra.mxu0 0
      %820 = vmatpush.bf16.msra.mxu0 0
      %821 = vmatpush.bf16.msra.mxu0 %v806
      %822 = vmatmul.bf16.gmra.mxu0 %v809
      %v823 = vpop.f32.mrf.mxu0
      %v824 = vadd.f32 0.0, %v823
      %v825 = vpop.f32.mrf.mxu0
      %v826 = vadd.f32 0.0, %v825
      %827 = vmatmul.bf16.gmra.mxu0 %v812
      %v828 = vpop.f32.mrf.mxu0
      %v829 = vadd.f32 0.0, %v828
      %v830 = vpop.f32.mrf.mxu0
      %v831 = vadd.f32 0.0, %v830
      %832 = vdwg.mxu0
      %v833 = vld [vmem:[#allocation2] sm:$0xff]
      %v834 = vld [vmem:[#allocation2 + $0x8] sm:$0xff]
      %v835 = vld [vmem:[#allocation2 + $0x10] sm:$0xff]
      %v836 = vld [vmem:[#allocation2 + $0x18] sm:$0xff]
      %v837 = vadd.f32 %v833, %v824
      %v838 = vadd.f32 %v834, %v826
      %v839 = vadd.f32 %v835, %v829
      %v840 = vadd.f32 %v836, %v831
      %841 = vst.msk [vmem:[#allocation2] sm:$0xff] %vm274, %v837
      %842 = vst.msk [vmem:[#allocation2 + $0x8] sm:$0xff] %vm274, %v838
      %843 = vst.msk [vmem:[#allocation2 + $0x10] sm:$0xff] %vm274, %v839
      %844 = vst.msk [vmem:[#allocation2 + $0x18] sm:$0xff] %vm274, %v840
      %v845 = vld [vmem:[%s784] sm:$0xe]
      %v846 = vld [vmem:[%s784 + $0x4] sm:$0x3]
      %v847 = vld [vmem:[%s784 + $0x8] sm:$0xe]
      %v848 = vld [vmem:[%s784 + $0xc] sm:$0x3]
      %v849 = vld [vmem:[%s784 + $0x10] sm:$0xe]
      %v850 = vld [vmem:[%s784 + $0x14] sm:$0x3]
      %v851 = vld [vmem:[%s784 + $0x18] sm:$0xe]
      %v852 = vld [vmem:[%s784 + $0x1c] sm:$0x3]
      %v854 = vshrl.u32 %v845, 16
      %v856 = vrot.slane %v854, 5
      %v857 = vshll.u32 %v845, 16
      %v859 = vrot.slane %v857, 6
      %v860 = vor.u32 %v856, %v859
      %v861 = vrot.slane %v860, 4
      %v863 = vshrl.u32 %v846, 16
      %v865 = vrot.slane %v863, 5
      %v866 = vshll.u32 %v846, 16
      %v868 = vrot.slane %v866, 6
      %v869 = vor.u32 %v865, %v868
      %v870 = vsel %vm289, %v861, %v869
      %v872 = vshrl.u32 %v847, 16
      %v874 = vrot.slane %v872, 5
      %v875 = vshll.u32 %v847, 16
      %v877 = vrot.slane %v875, 6
      %v878 = vor.u32 %v874, %v877
      %v879 = vrot.slane %v878, 4
      %v881 = vshrl.u32 %v848, 16
      %v883 = vrot.slane %v881, 5
      %v884 = vshll.u32 %v848, 16
      %v886 = vrot.slane %v884, 6
      %v887 = vor.u32 %v883, %v886
      %v888 = vsel %vm289, %v879, %v887
      %v890 = vshrl.u32 %v849, 16
      %v892 = vrot.slane %v890, 5
      %v893 = vshll.u32 %v849, 16
      %v895 = vrot.slane %v893, 6
      %v896 = vor.u32 %v892, %v895
      %v897 = vrot.slane %v896, 4
      %v899 = vshrl.u32 %v850, 16
      %v901 = vrot.slane %v899, 5
      %v902 = vshll.u32 %v850, 16
      %v904 = vrot.slane %v902, 6
      %v905 = vor.u32 %v901, %v904
      %v906 = vsel %vm289, %v897, %v905
      %v908 = vshrl.u32 %v851, 16
      %v910 = vrot.slane %v908, 5
      %v911 = vshll.u32 %v851, 16
      %v913 = vrot.slane %v911, 6
      %v914 = vor.u32 %v910, %v913
      %v915 = vrot.slane %v914, 4
      %v917 = vshrl.u32 %v852, 16
      %v919 = vrot.slane %v917, 5
      %v920 = vshll.u32 %v852, 16
      %v922 = vrot.slane %v920, 6
      %v923 = vor.u32 %v919, %v922
      %v924 = vsel %vm289, %v915, %v923
      %s925 = scalar_lea.vmem %s1, 56
      %v926 = vld [vmem:[%s925] sm:$0xf]
      %v927 = vld [vmem:[%s925 + $0x4] sm:$0xf]
      %v928 = vunpack.c.l.b16 %v870
      %v929 = vunpack.c.l.b16 %v888
      %v930 = vunpack.c.l.b16 %v906
      %v931 = vunpack.c.l.b16 %v924
      %v932 = vpack.c.b16 %v929, %v928
      %v933 = vpack.c.b16 %v931, %v930
      %v936 = vunpack.c.l.b16 %v926
      %v937 = vunpack.c.l.b16 %v927
      %v938 = vpack.c.b16 %v937, %v936
      %v941 = vsel %vm248, %v932, 0
      %v944 = vsel %vm248, %v933, 0
      %946 = vmatpush.bf16.msra.mxu0 0
      %947 = vmatpush.bf16.msra.mxu0 0
      %948 = vmatpush.bf16.msra.mxu0 0
      %949 = vmatpush.bf16.msra.mxu0 0
      %950 = vmatpush.bf16.msra.mxu0 0
      %951 = vmatpush.bf16.msra.mxu0 0
      %952 = vmatpush.bf16.msra.mxu0 0
      %953 = vmatpush.bf16.msra.mxu0 %v938
      %954 = vmatmul.bf16.gmra.mxu0 %v941
      %v955 = vpop.f32.mrf.mxu0
      %v956 = vadd.f32 0.0, %v955
      %v957 = vpop.f32.mrf.mxu0
      %v958 = vadd.f32 0.0, %v957
      %959 = vmatmul.bf16.gmra.mxu0 %v944
      %v960 = vpop.f32.mrf.mxu0
      %v961 = vadd.f32 0.0, %v960
      %v962 = vpop.f32.mrf.mxu0
      %v963 = vadd.f32 0.0, %v962
      %964 = vdwg.mxu0
      %v965 = vld [vmem:[#allocation2] sm:$0xff]
      %v966 = vld [vmem:[#allocation2 + $0x8] sm:$0xff]
      %v967 = vld [vmem:[#allocation2 + $0x10] sm:$0xff]
      %v968 = vld [vmem:[#allocation2 + $0x18] sm:$0xff]
      %v969 = vadd.f32 %v965, %v956
      %v970 = vadd.f32 %v966, %v958
      %v971 = vadd.f32 %v967, %v961
      %v972 = vadd.f32 %v968, %v963
      %973 = vst.msk [vmem:[#allocation2] sm:$0xff] %vm274, %v969
      %974 = vst.msk [vmem:[#allocation2 + $0x8] sm:$0xff] %vm274, %v970
      %975 = vst.msk [vmem:[#allocation2 + $0x10] sm:$0xff] %vm274, %v971
      %976 = vst.msk [vmem:[#allocation2 + $0x18] sm:$0xff] %vm274, %v972
      %v977 = vld [vmem:[%s784] sm:$0x8]
      %v978 = vld [vmem:[%s784 + $0x4] sm:$0x7]
      %v979 = vld [vmem:[%s784 + $0x8] sm:$0x8]
      %v980 = vld [vmem:[%s784 + $0xc] sm:$0x7]
      %v981 = vld [vmem:[%s784 + $0x10] sm:$0x8]
      %v982 = vld [vmem:[%s784 + $0x14] sm:$0x7]
      %v983 = vld [vmem:[%s784 + $0x18] sm:$0x8]
      %v984 = vld [vmem:[%s784 + $0x1c] sm:$0x7]
      %v993 = vrot.slane %v977, 7
      %v994 = vrot.slane %v993, 4
      %v995 = vrot.slane %v978, 7
      %v996 = vsel %vm432, %v994, %v995
      %v997 = vrot.slane %v979, 7
      %v998 = vrot.slane %v997, 4
      %v999 = vrot.slane %v980, 7
      %v1000 = vsel %vm432, %v998, %v999
      %v1001 = vrot.slane %v981, 7
      %v1002 = vrot.slane %v1001, 4
      %v1003 = vrot.slane %v982, 7
      %v1004 = vsel %vm432, %v1002, %v1003
      %v1005 = vrot.slane %v983, 7
      %v1006 = vrot.slane %v1005, 4
      %v1007 = vrot.slane %v984, 7
      %v1008 = vsel %vm432, %v1006, %v1007
      %s1009 = scalar_lea.vmem %s1, 64
      %v1010 = vld [vmem:[%s1009] sm:$0xf]
      %v1011 = vld [vmem:[%s1009 + $0x4] sm:$0xf]
      %v1012 = vunpack.c.l.b16 %v996
      %v1013 = vunpack.c.l.b16 %v1000
      %v1014 = vunpack.c.l.b16 %v1004
      %v1015 = vunpack.c.l.b16 %v1008
      %v1016 = vpack.c.b16 %v1013, %v1012
      %v1017 = vpack.c.b16 %v1015, %v1014
      %v1020 = vunpack.c.l.b16 %v1010
      %v1021 = vunpack.c.l.b16 %v1011
      %v1022 = vpack.c.b16 %v1021, %v1020
      %v1025 = vsel %vm248, %v1016, 0
      %v1028 = vsel %vm248, %v1017, 0
      %1030 = vmatpush.bf16.msra.mxu0 0
      %1031 = vmatpush.bf16.msra.mxu0 0
      %1032 = vmatpush.bf16.msra.mxu0 0
      %1033 = vmatpush.bf16.msra.mxu0 0
      %1034 = vmatpush.bf16.msra.mxu0 0
      %1035 = vmatpush.bf16.msra.mxu0 0
      %1036 = vmatpush.bf16.msra.mxu0 0
      %1037 = vmatpush.bf16.msra.mxu0 %v1022
      %1038 = vmatmul.bf16.gmra.mxu0 %v1025
      %v1039 = vpop.f32.mrf.mxu0
      %v1040 = vadd.f32 0.0, %v1039
      %v1041 = vpop.f32.mrf.mxu0
      %v1042 = vadd.f32 0.0, %v1041
      %1043 = vmatmul.bf16.gmra.mxu0 %v1028
      %v1044 = vpop.f32.mrf.mxu0
      %v1045 = vadd.f32 0.0, %v1044
      %v1046 = vpop.f32.mrf.mxu0
      %v1047 = vadd.f32 0.0, %v1046
      %1048 = vdwg.mxu0
      %v1049 = vld [vmem:[#allocation2] sm:$0xff]
      %v1050 = vld [vmem:[#allocation2 + $0x8] sm:$0xff]
      %v1051 = vld [vmem:[#allocation2 + $0x10] sm:$0xff]
      %v1052 = vld [vmem:[#allocation2 + $0x18] sm:$0xff]
      %v1053 = vadd.f32 %v1049, %v1040
      %v1054 = vadd.f32 %v1050, %v1042
      %v1055 = vadd.f32 %v1051, %v1045
      %v1056 = vadd.f32 %v1052, %v1047
      %1057 = vst.msk [vmem:[#allocation2] sm:$0xff] %vm274, %v1053
      %1058 = vst.msk [vmem:[#allocation2 + $0x8] sm:$0xff] %vm274, %v1054
      %1059 = vst.msk [vmem:[#allocation2 + $0x10] sm:$0xff] %vm274, %v1055
      %1060 = vst.msk [vmem:[#allocation2 + $0x18] sm:$0xff] %vm274, %v1056
      %v1061 = vld [vmem:[#allocation2] sm:$0xff]
      %v1062 = vld [vmem:[#allocation2 + $0x8] sm:$0xff]
      %v1063 = vld [vmem:[#allocation2 + $0x10] sm:$0xff]
      %v1064 = vld [vmem:[#allocation2 + $0x18] sm:$0xff]
      %v1065 = vpack.c.bf16 %v1062, %v1061
      %v1066 = vpack.c.bf16 %v1064, %v1063
      %v1067 = vld [vmem:[%s2] sm:$0xf]
      %v1068 = vld [vmem:[%s2 + $0x4] sm:$0xf]
      %v1069 = vld [vmem:[%s2 + $0x8] sm:$0xf]
      %v1070 = vld [vmem:[%s3] sm:$0x1]
      %v1072 = vperm.slane %v1070, 0
      %v1077 = vunpack.c.l.b16 %v1067
      %v1078 = vunpack.c.l.b16 %v1068
      %v1079 = vunpack.c.l.b16 %v1069
      %v1080 = vpack.c.b16 %v1078, %v1077
      %v1081 = vpack.c.b16 %v1079, %v1079
      %v1084 = vsel %vm274, %v1065, 0
      %v1087 = vsel %vm274, %v1066, 0
      %vm1089 = vcmask 1043456
      %v1091 = vsel %vm1089, %v1081, 0
      %1093 = vmatpush.bf16.msra.mxu0 0
      %1094 = vmatpush.bf16.msra.mxu0 0
      %1095 = vmatpush.bf16.msra.mxu0 0
      %1096 = vmatpush.bf16.msra.mxu0 0
      %1097 = vmatpush.bf16.msra.mxu0 0
      %1098 = vmatpush.bf16.msra.mxu0 0
      %1099 = vmatpush.bf16.msra.mxu0 %v1091
      %1100 = vmatpush.bf16.msra.mxu0 %v1080
      %1101 = vmatmul.bf16.gmra.mxu0 %v1084
      %v1102 = vpop.f32.mrf.mxu0
      %v1103 = vadd.f32 %v1072, %v1102
      %v1104 = vpop.f32.mrf.mxu0
      %v1105 = vadd.f32 %v1072, %v1104
      %1106 = vmatmul.bf16.gmra.mxu0 %v1087
      %v1107 = vpop.f32.mrf.mxu0
      %v1108 = vadd.f32 %v1072, %v1107
      %v1109 = vpop.f32.mrf.mxu0
      %v1110 = vadd.f32 %v1072, %v1109
      %1111 = vdwg.mxu0
      %v1112 = vpack.c.bf16 %v1103, %v1103
      %v1113 = vpack.c.bf16 %v1105, %v1105
      %v1114 = vpack.c.bf16 %v1108, %v1108
      %v1115 = vpack.c.bf16 %v1110, %v1110
      %vm1116 = vcmask 125952
      %1117 = vst.msk [vmem:[%s219] sm:$0xf] %vm1116, %v1112
      %1118 = vst.msk [vmem:[%s219 + $0x4] sm:$0xf] %vm1116, %v1113
      %1119 = vst.msk [vmem:[%s219 + $0x8] sm:$0xf] %vm1116, %v1114
      %1120 = vst.msk [vmem:[%s219 + $0xc] sm:$0xf] %vm1116, %v1115
      %s1121 = smul.u32 4, %s20
      %p1122 = scmp.lt.s32.totalorder %s19, 1
      %s1123 = scalar_select %p1122, %s19, 1
      %p1124 = scmp.lt.s32.totalorder %s1121, 7
      %s1125 = scalar_select %p1124, %s1121, 7
      %s1126 = smul.addr %s1123, 8
      %s1127 = sadd.s32 %s1125, %s1126
      %s1128 = smul.addr %s1127, 4
      %s1129 = scalar_lea.vmem %s4, %s1128
      // Predicated region
      $region37: #{_lambda_.2} parent=35 // pred_check
        %p1130 = pneg %p136
      $region38: #{_lambda_.2} parent=35 // pred_check_branch
        %1132 = sbr.rel (%p1130) target = $region40
      $region39: #{_lambda_.2} parent=35 // pred_region
        %s1133 = smul.u32 4, %s20
      $region40: #{_lambda_.2} parent=35 // pred_fallthru
        _
    $region36: #{_lambda_.2} parent=5 // pred_fallthru
      _
    %p1134 = scmp.le.s32.totalorder 2, %s10
    // Predicated region
    $region41: #{_lambda_.2} parent=5 // pred_check
      %p1135 = pneg %p1134
    $region42: #{_lambda_.2} parent=5 // pred_check_branch
      %1137 = sbr.rel (%p1135) target = $region44
    $region43: #{_lambda_.2} parent=5 // pred_region
      %s1138 = ssub.s32 %s10, 2
      // Predicated region
      $region45: #{_lambda_.2} parent=43 // pred_check
        %p1139 = pneg %p142
      $region46: #{_lambda_.2} parent=43 // pred_check_branch
        %1141 = sbr.rel (%p1139) target = $region48
      $region47: #{_lambda_.2} parent=43 // pred_region
        %s1142 = smul.u32 4, %s22
        %p1143 = scmp.lt.s32.totalorder %s21, 1
        %s1144 = scalar_select %p1143, %s21, 1
        %p1145 = scmp.lt.s32.totalorder %s1142, 7
        %s1146 = scalar_select %p1145, %s1142, 7
        %s1147 = smul.addr %s1144, 8
        %s1148 = sadd.s32 %s1146, %s1147
        %s1149 = smul.addr %s1148, 4
        %s1150 = scalar_lea.vmem %s4, %s1149
      $region48: #{_lambda_.2} parent=43 // pred_fallthru
        _
    $region44: #{_lambda_.2} parent=5 // pred_fallthru
      _
  $region6: #{_lambda_.2} parent=0 // loop_footer
    %s14 = sadd.s32 1, %s10
  $region7: #{_lambda_.2} parent=0 // loop_footer_branch
    %9 = sbr.rel target = $region3
  $region8: #{_lambda_.2} parent=0 // loop_exit
    _

// kernel: _lambda_.3
$region0: #{_lambda_.3}
  #allocation0 [shape = 'u32[]', space=smem, size = 0x4, offset = 0x4, fixed_abs, tag = 'smem constant byte address 0x4 - core index']
  #allocation1 [shape = 'u32[72,128]{1,0:T(1,128)}', space=vmem, size = 0x9000, scoped, tag = 'internal scratch']
  #allocation2 [shape = 'f32[64,16]{1,0:T(8,128)}', space=vmem, size = 0x8000, scoped, tag = 'scratch operand']
  %s0 = inlined_call_operand.vmem [shape: bf16[2,13,17,16], index: 0, kind: input, shape index: {}]
  %s1 = inlined_call_operand.vmem [shape: bf16[3,3,16,16], index: 1, kind: input, shape index: {}]
  %s2 = inlined_call_operand.vmem [shape: f32[1,16], index: 2, kind: input, shape index: {}]
  %s3 = inlined_call_operand.vmem [shape: f32[2,2,2,12,16,16], index: 3, kind: output, shape index: {}]
  %s4 = sld [smem:[#allocation0]]
  $region79: #{_lambda_.3} parent=0
    _
  %s6 = ssub.s32 1, %s4
  %s7 = scalar_select 0, %s6, %s4
  $region1: #{_lambda_.3} parent=0
    #allocation3 [shape = 'u8[262144]{0}', space=vmem, size = 0x40000, scoped, tag = 'output window, operand 0']
    loop: start=0, step=1, limit=8
    $region2: #{_lambda_.3} parent=1 // loop_pre_header
      _
    $region3: #{_lambda_.3} parent=1 // loop_header
      %s9 = sphi 0, %s13
      %p10 = scmp.ge.s32.totalorder %s9, 8
      %s16 = sphi 0, %s35
      %s17 = sphi 0, %s31
      %s18 = sphi 0, %s27
      %s19 = sphi 0, %s16
      %s20 = sphi 0, %s17
      %s21 = sphi 0, %s18
      %s22 = sphi 0, %s19
      %s23 = sphi 0, %s20
      %s24 = sphi 0, %s21
      %s38 = sphi 0, %s40
      %s41 = sphi 0, %s38
      %s42 = sphi 0, %s41
      %s58 = sphi 0, %s42
      %s64 = sphi 0, %s66
      %s67 = sphi 0, %s64
      %s68 = sphi 0, %s67
      %s84 = sphi 0, %s68
      %s90 = sphi 0, %s92
      %s93 = sphi 0, %s90
      %s94 = sphi 0, %s93
      %s110 = sphi 0, %s94
      %s120 = sphi 0, %s122
      %s123 = sphi 0, %s120
      %s124 = sphi 0, %s123
      %s140 = sphi 0, %s124
    $region4: #{_lambda_.3} parent=1 // loop_header_branch
      %12 = sbr.rel (%p10) target = $region8
    $region5: #{_lambda_.3} parent=1 // loop_body
      %s14 = ssub.s32 %s9, 1
      %s15 = ssub.s32 %s9, 2
      %s25 = sadd.s32 1, %s18
      %p26 = scmp.ge.s32.totalorder %s25, 3
      %s27 = scalar_select %p26, 0, %s25
      %s28 = sadd.s32 1, %s17
      %s29 = scalar_select %p26, %s28, %s17
      %p30 = scmp.ge.s32.totalorder %s29, 1
      %s31 = scalar_select %p30, 0, %s29
      %s32 = sadd.s32 1, %s16
      %s33 = scalar_select %p30, %s32, %s16
      %p34 = scmp.ge.s32.totalorder %s33, 2
      %s35 = scalar_select %p34, 0, %s33
      %s36 = ssub.s32 %s16, %s35
      %p37 = scmp.eq.s32.totalorder %s36, 0
      %s39 = sadd.s32 %s38, 1
      %s40 = scalar_select %p37, %s38, %s39
      %p43 = pneg %p37
      %p44 = scmp.eq.s32.totalorder %s9, 5
      %p45 = por %p43, %p44
      %p46 = scmp.ne.s32.totalorder %s38, %s41
      %p47 = scmp.eq.s32.totalorder %s9, 0
      %p48 = por %p46, %p47
      %p49 = scmp.ne.s32.totalorder %s38, %s41
      %p50 = scmp.eq.s32.totalorder %s14, 5
      %p51 = por %p49, %p50
      %p52 = scmp.ne.s32.totalorder %s41, %s42
      %p53 = scmp.eq.s32.totalorder %s14, 0
      %p54 = por %p52, %p53
      %p55 = scmp.ne.s32.totalorder %s41, %s42
      %p56 = scmp.eq.s32.totalorder %s15, 5
      %p57 = por %p55, %p56
      %p59 = scmp.ne.s32.totalorder %s42, %s58
      %p60 = scmp.eq.s32.totalorder %s15, 0
      %p61 = por %p59, %p60
      %s62 = ssub.s32 %s17, %s31
      %p63 = scmp.eq.s32.totalorder %s62, 0
      %s65 = sadd.s32 %s64, 1
      %s66 = scalar_select %p63, %s64, %s65
      %p69 = pneg %p63
      %p70 = scmp.eq.s32.totalorder %s9, 5
      %p71 = por %p69, %p70
      %p72 = scmp.ne.s32.totalorder %s64, %s67
      %p73 = scmp.eq.s32.totalorder %s9, 0
      %p74 = por %p72, %p73
      %p75 = scmp.ne.s32.totalorder %s64, %s67
      %p76 = scmp.eq.s32.totalorder %s14, 5
      %p77 = por %p75, %p76
      %p78 = scmp.ne.s32.totalorder %s67, %s68
      %p79 = scmp.eq.s32.totalorder %s14, 0
      %p80 = por %p78, %p79
      %p81 = scmp.ne.s32.totalorder %s67, %s68
      %p82 = scmp.eq.s32.totalorder %s15, 5
      %p83 = por %p81, %p82
      %p85 = scmp.ne.s32.totalorder %s68, %s84
      %p86 = scmp.eq.s32.totalorder %s15, 0
      %p87 = por %p85, %p86
      %s88 = ssub.s32 %s17, %s31
      %p89 = scmp.eq.s32.totalorder %s88, 0
      %s91 = sadd.s32 %s90, 1
      %s92 = scalar_select %p89, %s90, %s91
      %p95 = pneg %p89
      %p96 = scmp.eq.s32.totalorder %s9, 5
      %p97 = por %p95, %p96
      %p98 = scmp.ne.s32.totalorder %s90, %s93
      %p99 = scmp.eq.s32.totalorder %s9, 0
      %p100 = por %p98, %p99
      %p101 = scmp.ne.s32.totalorder %s90, %s93
      %p102 = scmp.eq.s32.totalorder %s14, 5
      %p103 = por %p101, %p102
      %p104 = scmp.ne.s32.totalorder %s93, %s94
      %p105 = scmp.eq.s32.totalorder %s14, 0
      %p106 = por %p104, %p105
      %p107 = scmp.ne.s32.totalorder %s93, %s94
      %p108 = scmp.eq.s32.totalorder %s15, 5
      %p109 = por %p107, %p108
      %p111 = scmp.ne.s32.totalorder %s94, %s110
      %p112 = scmp.eq.s32.totalorder %s15, 0
      %p113 = por %p111, %p112
      %s114 = ssub.s32 %s16, %s35
      %s115 = ssub.s32 %s18, %s27
      %s116 = sor.u32 %s114, %s115
      %s117 = ssub.s32 %s17, %s31
      %s118 = sor.u32 %s116, %s117
      %p119 = scmp.eq.s32.totalorder %s118, 0
      %s121 = sadd.s32 %s120, 1
      %s122 = scalar_select %p119, %s120, %s121
      %p125 = pneg %p119
      %p126 = scmp.eq.s32.totalorder %s9, 5
      %p127 = por %p125, %p126
      %p128 = scmp.ne.s32.totalorder %s120, %s123
      %p129 = scmp.eq.s32.totalorder %s9, 0
      %p130 = por %p128, %p129
      %p131 = scmp.ne.s32.totalorder %s120, %s123
      %p132 = scmp.eq.s32.totalorder %s14, 5
      %p133 = por %p131, %p132
      %p134 = scmp.ne.s32.totalorder %s123, %s124
      %p135 = scmp.eq.s32.totalorder %s14, 0
      %p136 = por %p134, %p135
      %p137 = scmp.ne.s32.totalorder %s123, %s124
      %p138 = scmp.eq.s32.totalorder %s15, 5
      %p139 = por %p137, %p138
      %p141 = scmp.ne.s32.totalorder %s124, %s140
      %p142 = scmp.eq.s32.totalorder %s15, 0
      %p143 = por %p141, %p142
      %p144 = scmp.le.s32.totalorder 1, %s9
      %p145 = scmp.lt.s32.totalorder %s9, 7
      %p146 = pnand %p144, %p145
      %p147 = pneg %p146
      // Predicated region
      $region9: #{_lambda_.3} parent=5 // pred_check
        _
      $region10: #{_lambda_.3} parent=5 // pred_check_branch
        %149 = sbr.rel (%p146) target = $region12
      $region11: #{_lambda_.3} parent=5 // pred_region
        %s150 = ssub.s32 %s9, 1
        // Predicated region
        $region13: #{_lambda_.3} parent=11 // pred_check
          %p151 = pneg %p80
        $region14: #{_lambda_.3} parent=11 // pred_check_branch
          %153 = sbr.rel (%p151) target = $region16
        $region15: #{_lambda_.3} parent=11 // pred_region
          %p154 = scmp.lt.s32.totalorder %s20, 0
          %s155 = scalar_select %p154, %s20, 0
          %s156 = smul.addr %s155, 4
          %s157 = scalar_lea.vmem %s1, %s156
        $region16: #{_lambda_.3} parent=11 // pred_fallthru
          _
        // Predicated region
        $region17: #{_lambda_.3} parent=11 // pred_check
          %p158 = pneg %p106
        $region18: #{_lambda_.3} parent=11 // pred_check_branch
          %160 = sbr.rel (%p158) target = $region20
        $region19: #{_lambda_.3} parent=11 // pred_region
          %p161 = scmp.lt.s32.totalorder %s20, 0
          %s162 = scalar_select %p161, %s20, 0
          %s163 = scalar_lea.vmem %s2, %s162
        $region20: #{_lambda_.3} parent=11 // pred_fallthru
          _
      $region12: #{_lambda_.3} parent=5 // pred_fallthru
        _
      %p164 = scmp.lt.s32.totalorder %s9, 6
      // Predicated region
      $region21: #{_lambda_.3} parent=5 // pred_check
        %p165 = pneg %p164
      $region22: #{_lambda_.3} parent=5 // pred_check_branch
        %167 = sbr.rel (%p165) target = $region24
      $region23: #{_lambda_.3} parent=5 // pred_region
        // Predicated region
        $region25: #{_lambda_.3} parent=23 // pred_check
          %p168 = pneg %p48
        $region26: #{_lambda_.3} parent=23 // pred_check_branch
          %170 = sbr.rel (%p168) target = $region28
        $region27: #{_lambda_.3} parent=23 // pred_region
          %p171 = scmp.lt.s32.totalorder %s16, 1
          %s172 = scalar_select %p171, %s16, 1
          %s173 = smul.addr %s172, 39
          %s174 = smul.addr %s173, 4
          %s175 = scalar_lea.vmem %s0, %s174
        $region28: #{_lambda_.3} parent=23 // pred_fallthru
          _
      $region24: #{_lambda_.3} parent=5 // pred_fallthru
        _
      %p176 = scmp.le.s32.totalorder 1, %s9
      %p177 = scmp.lt.s32.totalorder %s9, 7
      %p178 = pnand %p176, %p177
      %p179 = pneg %p178
      // Predicated region
      $region29: #{_lambda_.3} parent=5 // pred_check
        _
      $region30: #{_lambda_.3} parent=5 // pred_check_branch
        %181 = sbr.rel (%p178) target = $region32
      $region31: #{_lambda_.3} parent=5 // pred_region
        %s182 = ssub.s32 %s9, 1
        %p183 = scmp.lt.s32.totalorder %s19, 1
        %s184 = scalar_select %p183, %s19, 1
        %s185 = smul.addr %s184, 39
        %s186 = smul.addr %s185, 4
        %s187 = scalar_lea.vmem %s0, %s186
        %p188 = pneg %p54
        %p189 = pneg %p51
        %p190 = scmp.lt.s32.totalorder %s20, 0
        %s191 = scalar_select %p190, %s20, 0
        %s192 = smul.addr %s191, 4
        %s193 = scalar_lea.vmem %s1, %s192
        %p194 = pneg %p80
        %p195 = pneg %p77
        %p196 = scmp.lt.s32.totalorder %s20, 0
        %s197 = scalar_select %p196, %s20, 0
        %s198 = scalar_lea.vmem %s2, %s197
        %p199 = pneg %p106
        %p200 = pneg %p103
        %p201 = pneg %p136
        %p202 = pneg %p133
        %s203 = sand.u32 %s123, 1
        %s204 = sand.u32 %s123, 1
        %s205 = smul.addr %s204, 256
        %s206 = scalar_lea.vmem [#allocation3], %s205
        %p207 = scmp.lt.s32.totalorder %s19, 1
        %s208 = scalar_select %p207, %s19, 1
        %s209 = smul.addr %s208, 39
        %s210 = smul.addr %s209, 4
        %s211 = scalar_lea.vmem %s0, %s210
        %p212 = scmp.lt.s32.totalorder %s20, 0
        %s213 = scalar_select %p212, %s20, 0
        %s214 = smul.addr %s213, 4
        %s215 = scalar_lea.vmem %s1, %s214
        %p216 = scmp.lt.s32.totalorder %s20, 0
        %s217 = scalar_select %p216, %s20, 0
        %s218 = scalar_lea.vmem %s2, %s217
        %s219 = smul.u32 4, %s21
        %s221 = smul.u32 %s21, 4
        %v222 = vld [vmem:[%s218] sm:$0x1]
        %s223 = smul.u32 %s221, 3
        %s224 = smul.addr %s223, 4
        %s225 = scalar_lea.vmem %s211, %s224
        %v226 = vld [vmem:[%s225] sm:$0xf]
        %v227 = vld [vmem:[%s225 + $0x4] sm:$0xf]
        %v228 = vld [vmem:[%s225 + $0xc] sm:$0xf]
        %v229 = vld [vmem:[%s225 + $0x10] sm:$0xf]
        %v230 = vld [vmem:[%s225 + $0x18] sm:$0xf]
        %v231 = vld [vmem:[%s225 + $0x1c] sm:$0xf]
        %v232 = vld [vmem:[%s225 + $0x24] sm:$0xf]
        %v233 = vld [vmem:[%s225 + $0x28] sm:$0xf]
        %s234 = scalar_lea.vmem %s215, 64
        %v235 = vld [vmem:[%s234] sm:$0xf]
        %v236 = vld [vmem:[%s234 + $0x4] sm:$0xf]
        %v245 = vunpack.c.l.b16 %v226
        %v246 = vunpack.c.l.b16 %v227
        %v247 = vunpack.c.l.b16 %v228
        %v248 = vunpack.c.l.b16 %v229
        %v249 = vunpack.c.l.b16 %v230
        %v250 = vunpack.c.l.b16 %v231
        %v251 = vunpack.c.l.b16 %v232
        %v252 = vunpack.c.l.b16 %v233
        %v253 = vpack.c.b16 %v246, %v245
        %v254 = vpack.c.b16 %v248, %v247
        %v255 = vpack.c.b16 %v250, %v249
        %v256 = vpack.c.b16 %v252, %v251
        %v259 = vunpack.c.l.b16 %v235
        %v260 = vunpack.c.l.b16 %v236
        %v261 = vpack.c.b16 %v260, %v259
        %vm263 = vcmask 130048
        %v265 = vsel %vm263, %v253, 0
        %v268 = vsel %vm263, %v254, 0
        %v271 = vsel %vm263, %v255, 0
        %v274 = vsel %vm263, %v256, 0
        %276 = vmatpush.bf16.msra.mxu0 0
        %277 = vmatpush.bf16.msra.mxu0 0
        %278 = vmatpush.bf16.msra.mxu0 0
        %279 = vmatpush.bf16.msra.mxu0 0
        %280 = vmatpush.bf16.msra.mxu0 0
        %281 = vmatpush.bf16.msra.mxu0 0
        %282 = vmatpush.bf16.msra.mxu0 0
        %283 = vmatpush.bf16.msra.mxu0 %v261
        %284 = vmatmul.bf16.gmra.mxu0 %v265
        %v285 = vpop.f32.mrf.mxu0
        %v286 = vadd.f32 0.0, %v285
        %v287 = vpop.f32.mrf.mxu0
        %v288 = vadd.f32 0.0, %v287
        %289 = vmatmul.bf16.gmra.mxu0 %v268
        %v290 = vpop.f32.mrf.mxu0
        %v291 = vadd.f32 0.0, %v290
        %v292 = vpop.f32.mrf.mxu0
        %v293 = vadd.f32 0.0, %v292
        %294 = vmatmul.bf16.gmra.mxu0 %v271
        %v295 = vpop.f32.mrf.mxu0
        %v296 = vadd.f32 0.0, %v295
        %v297 = vpop.f32.mrf.mxu0
        %v298 = vadd.f32 0.0, %v297
        %299 = vmatmul.bf16.gmra.mxu0 %v274
        %v300 = vpop.f32.mrf.mxu0
        %v301 = vadd.f32 0.0, %v300
        %v302 = vpop.f32.mrf.mxu0
        %v303 = vadd.f32 0.0, %v302
        %304 = vdwg.mxu0
        %305 = vst.msk [vmem:[#allocation2] sm:$0xff] %vm263, %v286
        %306 = vst.msk [vmem:[#allocation2 + $0x8] sm:$0xff] %vm263, %v288
        %307 = vst.msk [vmem:[#allocation2 + $0x10] sm:$0xff] %vm263, %v291
        %308 = vst.msk [vmem:[#allocation2 + $0x18] sm:$0xff] %vm263, %v293
        %309 = vst.msk [vmem:[#allocation2 + $0x20] sm:$0xff] %vm263, %v296
        %310 = vst.msk [vmem:[#allocation2 + $0x28] sm:$0xff] %vm263, %v298
        %311 = vst.msk [vmem:[#allocation2 + $0x30] sm:$0xff] %vm263, %v301
        %312 = vst.msk [vmem:[#allocation2 + $0x38] sm:$0xff] %vm263, %v303
        %v313 = vld [vmem:[%s225] sm:$0xf]
        %v314 = vld [vmem:[%s225 + $0x4] sm:$0xf]
        %v315 = vld [vmem:[%s225 + $0x8] sm:$0x1]
        %v316 = vld [vmem:[%s225 + $0xc] sm:$0xf]
        %v317 = vld [vmem:[%s225 + $0x10] sm:$0xf]
        %v318 = vld [vmem:[%s225 + $0x14] sm:$0x1]
        %v319 = vld [vmem:[%s225 + $0x18] sm:$0xf]
        %v320 = vld [vmem:[%s225 + $0x1c] sm:$0xf]
        %v321 = vld [vmem:[%s225 + $0x20] sm:$0x1]
        %v322 = vld [vmem:[%s225 + $0x24] sm:$0xf]
        %v323 = vld [vmem:[%s225 + $0x28] sm:$0xf]
        %v324 = vld [vmem:[%s225 + $0x2c] sm:$0x1]
        %vm325 = vsmask.f32 3328
        %vm326 = vsmask.f32 7440
        %vm327 = vmor %vm325, %vm326
        %v329 = vshrl.u32 %v313, 16
        %v331 = vrot.slane %v329, 4
        %v332 = vshll.u32 %v313, 16
        %v334 = vrot.slane %v332, 5
        %v335 = vor.u32 %v331, %v334
        %v336 = vrot.slane %v335, 4
        %v338 = vshll.u32 %v314, 16
        %v340 = vrot.slane %v338, 5
        %v341 = vsel %vm327, %v336, %v340
        %v342 = vshrl.u32 %v314, 16
        %v344 = vrot.slane %v342, 4
        %v345 = vor.u32 %v344, %v340
        %v346 = vrot.slane %v345, 4
        %v348 = vshll.u32 %v315, 16
        %v350 = vrot.slane %v348, 5
        %v351 = vsel %vm327, %v346, %v350
        %v353 = vshrl.u32 %v316, 16
        %v355 = vrot.slane %v353, 4
        %v356 = vshll.u32 %v316, 16
        %v358 = vrot.slane %v356, 5
        %v359 = vor.u32 %v355, %v358
        %v360 = vrot.slane %v359, 4
        %v362 = vshll.u32 %v317, 16
        %v364 = vrot.slane %v362, 5
        %v365 = vsel %vm327, %v360, %v364
        %v366 = vshrl.u32 %v317, 16
        %v368 = vrot.slane %v366, 4
        %v369 = vor.u32 %v368, %v364
        %v370 = vrot.slane %v369, 4
        %v372 = vshll.u32 %v318, 16
        %v374 = vrot.slane %v372, 5
        %v375 = vsel %vm327, %v370, %v374
        %v377 = vshrl.u32 %v319, 16
        %v379 = vrot.slane %v377, 4
        %v380 = vshll.u32 %v319, 16
        %v382 = vrot.slane %v380, 5
        %v383 = vor.u32 %v379, %v382
        %v384 = vrot.slane %v383, 4
        %v386 = vshll.u32 %v320, 16
        %v388 = vrot.slane %v386, 5
        %v389 = vsel %vm327, %v384, %v388
        %v390 = vshrl.u32 %v320, 16
        %v392 = vrot.slane %v390, 4
        %v393 = vor.u32 %v392, %v388
        %v394 = vrot.slane %v393, 4
        %v396 = vshll.u32 %v321, 16
        %v398 = vrot.slane %v396, 5
        %v399 = vsel %vm327, %v394, %v398
        %v401 = vshrl.u32 %v322, 16
        %v403 = vrot.slane %v401, 4
        %v404 = vshll.u32 %v322, 16
        %v406 = vrot.slane %v404, 5
        %v407 = vor.u32 %v403, %v406
        %v408 = vrot.slane %v407, 4
        %v410 = vshll.u32 %v323, 16
        %v412 = vrot.slane %v410, 5
        %v413 = vsel %vm327, %v408, %v412
        %v414 = vshrl.u32 %v323, 16
        %v416 = vrot.slane %v414, 4
        %v417 = vor.u32 %v416, %v412
        %v418 = vrot.slane %v417, 4
        %v420 = vshll.u32 %v324, 16
        %v422 = vrot.slane %v420, 5
        %v423 = vsel %vm327, %v418, %v422
        %s424 = scalar_lea.vmem %s215, 48
        %v425 = vld [vmem:[%s424] sm:$0xf]
        %v426 = vld [vmem:[%s424 + $0x4] sm:$0xf]
        %v427 = vunpack.c.l.b16 %v341
        %v428 = vunpack.c.l.b16 %v351
        %v429 = vunpack.c.l.b16 %v365
        %v430 = vunpack.c.l.b16 %v375
        %v431 = vunpack.c.l.b16 %v389
        %v432 = vunpack.c.l.b16 %v399
        %v433 = vunpack.c.l.b16 %v413
        %v434 = vunpack.c.l.b16 %v423
        %v435 = vpack.c.b16 %v428, %v427
        %v436 = vpack.c.b16 %v430, %v429
        %v437 = vpack.c.b16 %v432, %v431
        %v438 = vpack.c.b16 %v434, %v433
        %v441 = vunpack.c.l.b16 %v425
        %v442 = vunpack.c.l.b16 %v426
        %v443 = vpack.c.b16 %v442, %v441
        %v446 = vsel %vm263, %v435, 0
        %v449 = vsel %vm263, %v436, 0
        %v452 = vsel %vm263, %v437, 0
        %v455 = vsel %vm263, %v438, 0
        %457 = vmatpush.bf16.msra.mxu0 0
        %458 = vmatpush.bf16.msra.mxu0 0
        %459 = vmatpush.bf16.msra.mxu0 0
        %460 = vmatpush.bf16.msra.mxu0 0
        %461 = vmatpush.bf16.msra.mxu0 0
        %462 = vmatpush.bf16.msra.mxu0 0
        %463 = vmatpush.bf16.msra.mxu0 0
        %464 = vmatpush.bf16.msra.mxu0 %v443
        %465 = vmatmul.bf16.gmra.mxu0 %v446
        %v466 = vpop.f32.mrf.mxu0
        %v467 = vadd.f32 0.0, %v466
        %v468 = vpop.f32.mrf.mxu0
        %v469 = vadd.f32 0.0, %v468
        %470 = vmatmul.bf16.gmra.mxu0 %v449
        %v471 = vpop.f32.mrf.mxu0
        %v472 = vadd.f32 0.0, %v471
        %v473 = vpop.f32.mrf.mxu0
        %v474 = vadd.f32 0.0, %v473
        %475 = vmatmul.bf16.gmra.mxu0 %v452
        %v476 = vpop.f32.mrf.mxu0
        %v477 = vadd.f32 0.0, %v476
        %v478 = vpop.f32.mrf.mxu0
        %v479 = vadd.f32 0.0, %v478
        %480 = vmatmul.bf16.gmra.mxu0 %v455
        %v481 = vpop.f32.mrf.mxu0
        %v482 = vadd.f32 0.0, %v481
        %v483 = vpop.f32.mrf.mxu0
        %v484 = vadd.f32 0.0, %v483
        %485 = vdwg.mxu0
        %v486 = vld [vmem:[#allocation2] sm:$0xff]
        %v487 = vld [vmem:[#allocation2 + $0x8] sm:$0xff]
        %v488 = vld [vmem:[#allocation2 + $0x10] sm:$0xff]
        %v489 = vld [vmem:[#allocation2 + $0x18] sm:$0xff]
        %v490 = vld [vmem:[#allocation2 + $0x20] sm:$0xff]
        %v491 = vld [vmem:[#allocation2 + $0x28] sm:$0xff]
        %v492 = vld [vmem:[#allocation2 + $0x30] sm:$0xff]
        %v493 = vld [vmem:[#allocation2 + $0x38] sm:$0xff]
        %v494 = vadd.f32 %v486, %v467
        %v495 = vadd.f32 %v487, %v469
        %v496 = vadd.f32 %v488, %v472
        %v497 = vadd.f32 %v489, %v474
        %v498 = vadd.f32 %v490, %v477
        %v499 = vadd.f32 %v491, %v479
        %v500 = vadd.f32 %v492, %v482
        %v501 = vadd.f32 %v493, %v484
        %502 = vst.msk [vmem:[#allocation2] sm:$0xff] %vm263, %v494
        %503 = vst.msk [vmem:[#allocation2 + $0x8] sm:$0xff] %vm263, %v495
        %504 = vst.msk [vmem:[#allocation2 + $0x10] sm:$0xff] %vm263, %v496
        %505 = vst.msk [vmem:[#allocation2 + $0x18] sm:$0xff] %vm263, %v497
        %506 = vst.msk [vmem:[#allocation2 + $0x20] sm:$0xff] %vm263, %v498
        %507 = vst.msk [vmem:[#allocation2 + $0x28] sm:$0xff] %vm263, %v499
        %508 = vst.msk [vmem:[#allocation2 + $0x30] sm:$0xff] %vm263, %v500
        %509 = vst.msk [vmem:[#allocation2 + $0x38] sm:$0xff] %vm263, %v501
        %s510 = sadd.s32 %s221, 1
        %s511 = smul.u32 %s510, 3
        %s512 = smul.addr %s511, 4
        %s513 = scalar_lea.vmem %s211, %s512
        %v514 = vld [vmem:[%s513] sm:$0xf]
        %v515 = vld [vmem:[%s513 + $0x4] sm:$0xf]
        %v516 = vld [vmem:[%s513 + $0xc] sm:$0xf]
        %v517 = vld [vmem:[%s513 + $0x10] sm:$0xf]
        %v518 = vld [vmem:[%s513 + $0x18] sm:$0xf]
        %v519 = vld [vmem:[%s513 + $0x1c] sm:$0xf]
        %v520 = vld [vmem:[%s513 + $0x24] sm:$0xf]
        %v521 = vld [vmem:[%s513 + $0x28] sm:$0xf]
        %s522 = scalar_lea.vmem %s215, 16
        %v523 = vld [vmem:[%s522] sm:$0xf]
        %v524 = vld [vmem:[%s522 + $0x4] sm:$0xf]
        %v533 = vunpack.c.l.b16 %v514
        %v534 = vunpack.c.l.b16 %v515
        %v535 = vunpack.c.l.b16 %v516
        %v536 = vunpack.c.l.b16 %v517
        %v537 = vunpack.c.l.b16 %v518
        %v538 = vunpack.c.l.b16 %v519
        %v539 = vunpack.c.l.b16 %v520
        %v540 = vunpack.c.l.b16 %v521
        %v541 = vpack.c.b16 %v534, %v533
        %v542 = vpack.c.b16 %v536, %v535
        %v543 = vpack.c.b16 %v538, %v537
        %v544 = vpack.c.b16 %v540, %v539
        %v547 = vunpack.c.l.b16 %v523
        %v548 = vunpack.c.l.b16 %v524
        %v549 = vpack.c.b16 %v548, %v547
        %v552 = vsel %vm263, %v541, 0
        %v555 = vsel %vm263, %v542, 0
        %v558 = vsel %vm263, %v543, 0
        %v561 = vsel %vm263, %v544, 0
        %563 = vmatpush.bf16.msra.mxu0 0
        %564 = vmatpush.bf16.msra.mxu0 0
        %565 = vmatpush.bf16.msra.mxu0 0
        %566 = vmatpush.bf16.msra.mxu0 0
        %567 = vmatpush.bf16.msra.mxu0 0
        %568 = vmatpush.bf16.msra.mxu0 0
        %569 = vmatpush.bf16.msra.mxu0 0
        %570 = vmatpush.bf16.msra.mxu0 %v549
        %571 = vmatmul.bf16.gmra.mxu0 %v552
        %v572 = vpop.f32.mrf.mxu0
        %v573 = vadd.f32 0.0, %v572
        %v574 = vpop.f32.mrf.mxu0
        %v575 = vadd.f32 0.0, %v574
        %576 = vmatmul.bf16.gmra.mxu0 %v555
        %v577 = vpop.f32.mrf.mxu0
        %v578 = vadd.f32 0.0, %v577
        %v579 = vpop.f32.mrf.mxu0
        %v580 = vadd.f32 0.0, %v579
        %581 = vmatmul.bf16.gmra.mxu0 %v558
        %v582 = vpop.f32.mrf.mxu0
        %v583 = vadd.f32 0.0, %v582
        %v584 = vpop.f32.mrf.mxu0
        %v585 = vadd.f32 0.0, %v584
        %586 = vmatmul.bf16.gmra.mxu0 %v561
        %v587 = vpop.f32.mrf.mxu0
        %v588 = vadd.f32 0.0, %v587
        %v589 = vpop.f32.mrf.mxu0
        %v590 = vadd.f32 0.0, %v589
        %591 = vdwg.mxu0
        %v592 = vld [vmem:[#allocation2] sm:$0xff]
        %v593 = vld [vmem:[#allocation2 + $0x8] sm:$0xff]
        %v594 = vld [vmem:[#allocation2 + $0x10] sm:$0xff]
        %v595 = vld [vmem:[#allocation2 + $0x18] sm:$0xff]
        %v596 = vld [vmem:[#allocation2 + $0x20] sm:$0xff]
        %v597 = vld [vmem:[#allocation2 + $0x28] sm:$0xff]
        %v598 = vld [vmem:[#allocation2 + $0x30] sm:$0xff]
        %v599 = vld [vmem:[#allocation2 + $0x38] sm:$0xff]
        %v600 = vadd.f32 %v592, %v573
        %v601 = vadd.f32 %v593, %v575
        %v602 = vadd.f32 %v594, %v578
        %v603 = vadd.f32 %v595, %v580
        %v604 = vadd.f32 %v596, %v583
        %v605 = vadd.f32 %v597, %v585
        %v606 = vadd.f32 %v598, %v588
        %v607 = vadd.f32 %v599, %v590
        %608 = vst.msk [vmem:[#allocation2] sm:$0xff] %vm263, %v600
        %609 = vst.msk [vmem:[#allocation2 + $0x8] sm:$0xff] %vm263, %v601
        %610 = vst.msk [vmem:[#allocation2 + $0x10] sm:$0xff] %vm263, %v602
        %611 = vst.msk [vmem:[#allocation2 + $0x18] sm:$0xff] %vm263, %v603
        %612 = vst.msk [vmem:[#allocation2 + $0x20] sm:$0xff] %vm263, %v604
        %613 = vst.msk [vmem:[#allocation2 + $0x28] sm:$0xff] %vm263, %v605
        %614 = vst.msk [vmem:[#allocation2 + $0x30] sm:$0xff] %vm263, %v606
        %615 = vst.msk [vmem:[#allocation2 + $0x38] sm:$0xff] %vm263, %v607
        %v616 = vld [vmem:[%s513] sm:$0xf]
        %v617 = vld [vmem:[%s513 + $0x4] sm:$0xf]
        %v618 = vld [vmem:[%s513 + $0x8] sm:$0x1]
        %v619 = vld [vmem:[%s513 + $0xc] sm:$0xf]
        %v620 = vld [vmem:[%s513 + $0x10] sm:$0xf]
        %v621 = vld [vmem:[%s513 + $0x14] sm:$0x1]
        %v622 = vld [vmem:[%s513 + $0x18] sm:$0xf]
        %v623 = vld [vmem:[%s513 + $0x1c] sm:$0xf]
        %v624 = vld [vmem:[%s513 + $0x20] sm:$0x1]
        %v625 = vld [vmem:[%s513 + $0x24] sm:$0xf]
        %v626 = vld [vmem:[%s513 + $0x28] sm:$0xf]
        %v627 = vld [vmem:[%s513 + $0x2c] sm:$0x1]
        %v629 = vshrl.u32 %v616, 16
        %v631 = vrot.slane %v629, 4
        %v632 = vshll.u32 %v616, 16
        %v634 = vrot.slane %v632, 5
        %v635 = vor.u32 %v631, %v634
        %v636 = vrot.slane %v635, 4
        %v638 = vshll.u32 %v617, 16
        %v640 = vrot.slane %v638, 5
        %v641 = vsel %vm327, %v636, %v640
        %v642 = vshrl.u32 %v617, 16
        %v644 = vrot.slane %v642, 4
        %v645 = vor.u32 %v644, %v640
        %v646 = vrot.slane %v645, 4
        %v648 = vshll.u32 %v618, 16
        %v650 = vrot.slane %v648, 5
        %v651 = vsel %vm327, %v646, %v650
        %v653 = vshrl.u32 %v619, 16
        %v655 = vrot.slane %v653, 4
        %v656 = vshll.u32 %v619, 16
        %v658 = vrot.slane %v656, 5
        %v659 = vor.u32 %v655, %v658
        %v660 = vrot.slane %v659, 4
        %v662 = vshll.u32 %v620, 16
        %v664 = vrot.slane %v662, 5
        %v665 = vsel %vm327, %v660, %v664
        %v666 = vshrl.u32 %v620, 16
        %v668 = vrot.slane %v666, 4
        %v669 = vor.u32 %v668, %v664
        %v670 = vrot.slane %v669, 4
        %v672 = vshll.u32 %v621, 16
        %v674 = vrot.slane %v672, 5
        %v675 = vsel %vm327, %v670, %v674
        %v677 = vshrl.u32 %v622, 16
        %v679 = vrot.slane %v677, 4
        %v680 = vshll.u32 %v622, 16
        %v682 = vrot.slane %v680, 5
        %v683 = vor.u32 %v679, %v682
        %v684 = vrot.slane %v683, 4
        %v686 = vshll.u32 %v623, 16
        %v688 = vrot.slane %v686, 5
        %v689 = vsel %vm327, %v684, %v688
        %v690 = vshrl.u32 %v623, 16
        %v692 = vrot.slane %v690, 4
        %v693 = vor.u32 %v692, %v688
        %v694 = vrot.slane %v693, 4
        %v696 = vshll.u32 %v624, 16
        %v698 = vrot.slane %v696, 5
        %v699 = vsel %vm327, %v694, %v698
        %v701 = vshrl.u32 %v625, 16
        %v703 = vrot.slane %v701, 4
        %v704 = vshll.u32 %v625, 16
        %v706 = vrot.slane %v704, 5
        %v707 = vor.u32 %v703, %v706
        %v708 = vrot.slane %v707, 4
        %v710 = vshll.u32 %v626, 16
        %v712 = vrot.slane %v710, 5
        %v713 = vsel %vm327, %v708, %v712
        %v714 = vshrl.u32 %v626, 16
        %v716 = vrot.slane %v714, 4
        %v717 = vor.u32 %v716, %v712
        %v718 = vrot.slane %v717, 4
        %v720 = vshll.u32 %v627, 16
        %v722 = vrot.slane %v720, 5
        %v723 = vsel %vm327, %v718, %v722
        %v724 = vld [vmem:[%s215] sm:$0xf]
        %v725 = vld [vmem:[%s215 + $0x4] sm:$0xf]
        %v726 = vunpack.c.l.b16 %v641
        %v727 = vunpack.c.l.b16 %v651
        %v728 = vunpack.c.l.b16 %v665
        %v729 = vunpack.c.l.b16 %v675
        %v730 = vunpack.c.l.b16 %v689
        %v731 = vunpack.c.l.b16 %v699
        %v732 = vunpack.c.l.b16 %v713
        %v733 = vunpack.c.l.b16 %v723
        %v734 = vpack.c.b16 %v727, %v726
        %v735 = vpack.c.b16 %v729, %v728
        %v736 = vpack.c.b16 %v731, %v730
        %v737 = vpack.c.b16 %v733, %v732
        %v740 = vunpack.c.l.b16 %v724
        %v741 = vunpack.c.l.b16 %v725
        %v742 = vpack.c.b16 %v741, %v740
        %v745 = vsel %vm263, %v734, 0
        %v748 = vsel %vm263, %v735, 0
        %v751 = vsel %vm263, %v736, 0
        %v754 = vsel %vm263, %v737, 0
        %756 = vmatpush.bf16.msra.mxu0 0
        %757 = vmatpush.bf16.msra.mxu0 0
        %758 = vmatpush.bf16.msra.mxu0 0
        %759 = vmatpush.bf16.msra.mxu0 0
        %760 = vmatpush.bf16.msra.mxu0 0
        %761 = vmatpush.bf16.msra.mxu0 0
        %762 = vmatpush.bf16.msra.mxu0 0
        %763 = vmatpush.bf16.msra.mxu0 %v742
        %764 = vmatmul.bf16.gmra.mxu0 %v745
        %v765 = vpop.f32.mrf.mxu0
        %v766 = vadd.f32 0.0, %v765
        %v767 = vpop.f32.mrf.mxu0
        %v768 = vadd.f32 0.0, %v767
        %769 = vmatmul.bf16.gmra.mxu0 %v748
        %v770 = vpop.f32.mrf.mxu0
        %v771 = vadd.f32 0.0, %v770
        %v772 = vpop.f32.mrf.mxu0
        %v773 = vadd.f32 0.0, %v772
        %774 = vmatmul.bf16.gmra.mxu0 %v751
        %v775 = vpop.f32.mrf.mxu0
        %v776 = vadd.f32 0.0, %v775
        %v777 = vpop.f32.mrf.mxu0
        %v778 = vadd.f32 0.0, %v777
        %779 = vmatmul.bf16.gmra.mxu0 %v754
        %v780 = vpop.f32.mrf.mxu0
        %v781 = vadd.f32 0.0, %v780
        %v782 = vpop.f32.mrf.mxu0
        %v783 = vadd.f32 0.0, %v782
        %784 = vdwg.mxu0
        %v785 = vld [vmem:[#allocation2] sm:$0xff]
        %v786 = vld [vmem:[#allocation2 + $0x8] sm:$0xff]
        %v787 = vld [vmem:[#allocation2 + $0x10] sm:$0xff]
        %v788 = vld [vmem:[#allocation2 + $0x18] sm:$0xff]
        %v789 = vld [vmem:[#allocation2 + $0x20] sm:$0xff]
        %v790 = vld [vmem:[#allocation2 + $0x28] sm:$0xff]
        %v791 = vld [vmem:[#allocation2 + $0x30] sm:$0xff]
        %v792 = vld [vmem:[#allocation2 + $0x38] sm:$0xff]
        %v793 = vadd.f32 %v785, %v766
        %v794 = vadd.f32 %v786, %v768
        %v795 = vadd.f32 %v787, %v771
        %v796 = vadd.f32 %v788, %v773
        %v797 = vadd.f32 %v789, %v776
        %v798 = vadd.f32 %v790, %v778
        %v799 = vadd.f32 %v791, %v781
        %v800 = vadd.f32 %v792, %v783
        %801 = vst.msk [vmem:[#allocation2] sm:$0xff] %vm263, %v793
        %802 = vst.msk [vmem:[#allocation2 + $0x8] sm:$0xff] %vm263, %v794
        %803 = vst.msk [vmem:[#allocation2 + $0x10] sm:$0xff] %vm263, %v795
        %804 = vst.msk [vmem:[#allocation2 + $0x18] sm:$0xff] %vm263, %v796
        %805 = vst.msk [vmem:[#allocation2 + $0x20] sm:$0xff] %vm263, %v797
        %806 = vst.msk [vmem:[#allocation2 + $0x28] sm:$0xff] %vm263, %v798
        %807 = vst.msk [vmem:[#allocation2 + $0x30] sm:$0xff] %vm263, %v799
        %808 = vst.msk [vmem:[#allocation2 + $0x38] sm:$0xff] %vm263, %v800
        %v809 = vld [vmem:[#allocation2] sm:$0xff]
        %v810 = vld [vmem:[#allocation2 + $0x8] sm:$0xff]
        %v811 = vld [vmem:[#allocation2 + $0x10] sm:$0xff]
        %v812 = vld [vmem:[#allocation2 + $0x18] sm:$0xff]
        %v813 = vld [vmem:[#allocation2 + $0x20] sm:$0xff]
        %v814 = vld [vmem:[#allocation2 + $0x28] sm:$0xff]
        %v815 = vld [vmem:[#allocation2 + $0x30] sm:$0xff]
        %v816 = vld [vmem:[#allocation2 + $0x38] sm:$0xff]
        %v818 = vperm.slane %v222, 0
        %v820 = vadd.f32 %v809, %v818
        %v821 = vadd.f32 %v810, %v818
        %v822 = vadd.f32 %v811, %v818
        %v823 = vadd.f32 %v812, %v818
        %v824 = vadd.f32 %v813, %v818
        %v825 = vadd.f32 %v814, %v818
        %v826 = vadd.f32 %v815, %v818
        %v827 = vadd.f32 %v816, %v818
        %vm828 = vcmp.gt.f32.partialorder %v820, 0.0
        %vm829 = vcmp.gt.f32.partialorder %v821, 0.0
        %vm830 = vcmp.gt.f32.partialorder %v822, 0.0
        %vm831 = vcmp.gt.f32.partialorder %v823, 0.0
        %vm832 = vcmp.gt.f32.partialorder %v824, 0.0
        %vm833 = vcmp.gt.f32.partialorder %v825, 0.0
        %vm834 = vcmp.gt.f32.partialorder %v826, 0.0
        %vm835 = vcmp.gt.f32.partialorder %v827, 0.0
        %v836 = vmul.f32 %v820, -0.01
        %v837 = vmul.f32 %v821, -0.01
        %v838 = vmul.f32 %v822, -0.01
        %v839 = vmul.f32 %v823, -0.01
        %v840 = vmul.f32 %v824, -0.01
        %v841 = vmul.f32 %v825, -0.01
        %v842 = vmul.f32 %v826, -0.01
        %v843 = vmul.f32 %v827, -0.01
        %v844 = vsel %vm828, %v820, %v836
        %v845 = vsel %vm829, %v821, %v837
        %v846 = vsel %vm830, %v822, %v838
        %v847 = vsel %vm831, %v823, %v839
        %v848 = vsel %vm832, %v824, %v840
        %v849 = vsel %vm833, %v825, %v841
        %v850 = vsel %vm834, %v826, %v842
        %v851 = vsel %vm835, %v827, %v843
        %852 = vst.msk [vmem:[%s206] sm:$0xff] %vm263, %v844
        %853 = vst.msk [vmem:[%s206 + $0x8] sm:$0xff] %vm263, %v845
        %854 = vst.msk [vmem:[%s206 + $0x10] sm:$0xff] %vm263, %v846
        %855 = vst.msk [vmem:[%s206 + $0x18] sm:$0xff] %vm263, %v847
        %856 = vst.msk [vmem:[%s206 + $0x20] sm:$0xff] %vm263, %v848
        %857 = vst.msk [vmem:[%s206 + $0x28] sm:$0xff] %vm263, %v849
        %858 = vst.msk [vmem:[%s206 + $0x30] sm:$0xff] %vm263, %v850
        %859 = vst.msk [vmem:[%s206 + $0x38] sm:$0xff] %vm263, %v851
        %v860 = vld [vmem:[%s225] sm:$0xf]
        %v861 = vld [vmem:[%s225 + $0x4] sm:$0xf]
        %v862 = vld [vmem:[%s225 + $0x8] sm:$0x1]
        %v863 = vld [vmem:[%s225 + $0xc] sm:$0xf]
        %v864 = vld [vmem:[%s225 + $0x10] sm:$0xf]
        %v865 = vld [vmem:[%s225 + $0x14] sm:$0x1]
        %v866 = vld [vmem:[%s225 + $0x18] sm:$0xf]
        %v867 = vld [vmem:[%s225 + $0x1c] sm:$0xf]
        %v868 = vld [vmem:[%s225 + $0x20] sm:$0x1]
        %v869 = vld [vmem:[%s225 + $0x24] sm:$0xf]
        %v870 = vld [vmem:[%s225 + $0x28] sm:$0xf]
        %v871 = vld [vmem:[%s225 + $0x2c] sm:$0x1]
        %v873 = vshrl.u32 %v860, 16
        %v875 = vrot.slane %v873, 4
        %v876 = vshll.u32 %v860, 16
        %v878 = vrot.slane %v876, 5
        %v879 = vor.u32 %v875, %v878
        %v880 = vrot.slane %v879, 4
        %v882 = vshll.u32 %v861, 16
        %v884 = vrot.slane %v882, 5
        %v885 = vsel %vm327, %v880, %v884
        %v886 = vshrl.u32 %v861, 16
        %v888 = vrot.slane %v886, 4
        %v889 = vor.u32 %v888, %v884
        %v890 = vrot.slane %v889, 4
        %v892 = vshll.u32 %v862, 16
        %v894 = vrot.slane %v892, 5
        %v895 = vsel %vm327, %v890, %v894
        %v897 = vshrl.u32 %v863, 16
        %v899 = vrot.slane %v897, 4
        %v900 = vshll.u32 %v863, 16
        %v902 = vrot.slane %v900, 5
        %v903 = vor.u32 %v899, %v902
        %v904 = vrot.slane %v903, 4
        %v906 = vshll.u32 %v864, 16
        %v908 = vrot.slane %v906, 5
        %v909 = vsel %vm327, %v904, %v908
        %v910 = vshrl.u32 %v864, 16
        %v912 = vrot.slane %v910, 4
        %v913 = vor.u32 %v912, %v908
        %v914 = vrot.slane %v913, 4
        %v916 = vshll.u32 %v865, 16
        %v918 = vrot.slane %v916, 5
        %v919 = vsel %vm327, %v914, %v918
        %v921 = vshrl.u32 %v866, 16
        %v923 = vrot.slane %v921, 4
        %v924 = vshll.u32 %v866, 16
        %v926 = vrot.slane %v924, 5
        %v927 = vor.u32 %v923, %v926
        %v928 = vrot.slane %v927, 4
        %v930 = vshll.u32 %v867, 16
        %v932 = vrot.slane %v930, 5
        %v933 = vsel %vm327, %v928, %v932
        %v934 = vshrl.u32 %v867, 16
        %v936 = vrot.slane %v934, 4
        %v937 = vor.u32 %v936, %v932
        %v938 = vrot.slane %v937, 4
        %v940 = vshll.u32 %v868, 16
        %v942 = vrot.slane %v940, 5
        %v943 = vsel %vm327, %v938, %v942
        %v945 = vshrl.u32 %v869, 16
        %v947 = vrot.slane %v945, 4
        %v948 = vshll.u32 %v869, 16
        %v950 = vrot.slane %v948, 5
        %v951 = vor.u32 %v947, %v950
        %v952 = vrot.slane %v951, 4
        %v954 = vshll.u32 %v870, 16
        %v956 = vrot.slane %v954, 5
        %v957 = vsel %vm327, %v952, %v956
        %v958 = vshrl.u32 %v870, 16
        %v960 = vrot.slane %v958, 4
        %v961 = vor.u32 %v960, %v956
        %v962 = vrot.slane %v961, 4
        %v964 = vshll.u32 %v871, 16
        %v966 = vrot.slane %v964, 5
        %v967 = vsel %vm327, %v962, %v966
        %s968 = scalar_lea.vmem %s215, 56
        %v969 = vld [vmem:[%s968] sm:$0xf]
        %v970 = vld [vmem:[%s968 + $0x4] sm:$0xf]
        %v971 = vunpack.c.l.b16 %v885
        %v972 = vunpack.c.l.b16 %v895
        %v973 = vunpack.c.l.b16 %v909
        %v974 = vunpack.c.l.b16 %v919
        %v975 = vunpack.c.l.b16 %v933
        %v976 = vunpack.c.l.b16 %v943
        %v977 = vunpack.c.l.b16 %v957
        %v978 = vunpack.c.l.b16 %v967
        %v979 = vpack.c.b16 %v972, %v971
        %v980 = vpack.c.b16 %v974, %v973
        %v981 = vpack.c.b16 %v976, %v975
        %v982 = vpack.c.b16 %v978, %v977
        %v985 = vunpack.c.l.b16 %v969
        %v986 = vunpack.c.l.b16 %v970
        %v987 = vpack.c.b16 %v986, %v985
        %v990 = vsel %vm263, %v979, 0
        %v993 = vsel %vm263, %v980, 0
        %v996 = vsel %vm263, %v981, 0
        %v999 = vsel %vm263, %v982, 0
        %1001 = vmatpush.bf16.msra.mxu0 0
        %1002 = vmatpush.bf16.msra.mxu0 0
        %1003 = vmatpush.bf16.msra.mxu0 0
        %1004 = vmatpush.bf16.msra.mxu0 0
        %1005 = vmatpush.bf16.msra.mxu0 0
        %1006 = vmatpush.bf16.msra.mxu0 0
        %1007 = vmatpush.bf16.msra.mxu0 0
        %1008 = vmatpush.bf16.msra.mxu0 %v987
        %1009 = vmatmul.bf16.gmra.mxu0 %v990
        %v1010 = vpop.f32.mrf.mxu0
        %v1011 = vadd.f32 0.0, %v1010
        %v1012 = vpop.f32.mrf.mxu0
        %v1013 = vadd.f32 0.0, %v1012
        %1014 = vmatmul.bf16.gmra.mxu0 %v993
        %v1015 = vpop.f32.mrf.mxu0
        %v1016 = vadd.f32 0.0, %v1015
        %v1017 = vpop.f32.mrf.mxu0
        %v1018 = vadd.f32 0.0, %v1017
        %1019 = vmatmul.bf16.gmra.mxu0 %v996
        %v1020 = vpop.f32.mrf.mxu0
        %v1021 = vadd.f32 0.0, %v1020
        %v1022 = vpop.f32.mrf.mxu0
        %v1023 = vadd.f32 0.0, %v1022
        %1024 = vmatmul.bf16.gmra.mxu0 %v999
        %v1025 = vpop.f32.mrf.mxu0
        %v1026 = vadd.f32 0.0, %v1025
        %v1027 = vpop.f32.mrf.mxu0
        %v1028 = vadd.f32 0.0, %v1027
        %1029 = vdwg.mxu0
        %1030 = vst.msk [vmem:[#allocation2] sm:$0xff] %vm263, %v1011
        %1031 = vst.msk [vmem:[#allocation2 + $0x8] sm:$0xff] %vm263, %v1013
        %1032 = vst.msk [vmem:[#allocation2 + $0x10] sm:$0xff] %vm263, %v1016
        %1033 = vst.msk [vmem:[#allocation2 + $0x18] sm:$0xff] %vm263, %v1018
        %1034 = vst.msk [vmem:[#allocation2 + $0x20] sm:$0xff] %vm263, %v1021
        %1035 = vst.msk [vmem:[#allocation2 + $0x28] sm:$0xff] %vm263, %v1023
        %1036 = vst.msk [vmem:[#allocation2 + $0x30] sm:$0xff] %vm263, %v1026
        %1037 = vst.msk [vmem:[#allocation2 + $0x38] sm:$0xff] %vm263, %v1028
        %v1038 = vld [vmem:[%s513] sm:$0xf]
        %v1039 = vld [vmem:[%s513 + $0x4] sm:$0xf]
        %v1040 = vld [vmem:[%s513 + $0x8] sm:$0x1]
        %v1041 = vld [vmem:[%s513 + $0xc] sm:$0xf]
        %v1042 = vld [vmem:[%s513 + $0x10] sm:$0xf]
        %v1043 = vld [vmem:[%s513 + $0x14] sm:$0x1]
        %v1044 = vld [vmem:[%s513 + $0x18] sm:$0xf]
        %v1045 = vld [vmem:[%s513 + $0x1c] sm:$0xf]
        %v1046 = vld [vmem:[%s513 + $0x20] sm:$0x1]
        %v1047 = vld [vmem:[%s513 + $0x24] sm:$0xf]
        %v1048 = vld [vmem:[%s513 + $0x28] sm:$0xf]
        %v1049 = vld [vmem:[%s513 + $0x2c] sm:$0x1]
        %v1051 = vshrl.u32 %v1038, 16
        %v1053 = vrot.slane %v1051, 4
        %v1054 = vshll.u32 %v1038, 16
        %v1056 = vrot.slane %v1054, 5
        %v1057 = vor.u32 %v1053, %v1056
        %v1058 = vrot.slane %v1057, 4
        %v1060 = vshll.u32 %v1039, 16
        %v1062 = vrot.slane %v1060, 5
        %v1063 = vsel %vm327, %v1058, %v1062
        %v1064 = vshrl.u32 %v1039, 16
        %v1066 = vrot.slane %v1064, 4
        %v1067 = vor.u32 %v1066, %v1062
        %v1068 = vrot.slane %v1067, 4
        %v1070 = vshll.u32 %v1040, 16
        %v1072 = vrot.slane %v1070, 5
        %v1073 = vsel %vm327, %v1068, %v1072
        %v1075 = vshrl.u32 %v1041, 16
        %v1077 = vrot.slane %v1075, 4
        %v1078 = vshll.u32 %v1041, 16
        %v1080 = vrot.slane %v1078, 5
        %v1081 = vor.u32 %v1077, %v1080
        %v1082 = vrot.slane %v1081, 4
        %v1084 = vshll.u32 %v1042, 16
        %v1086 = vrot.slane %v1084, 5
        %v1087 = vsel %vm327, %v1082, %v1086
        %v1088 = vshrl.u32 %v1042, 16
        %v1090 = vrot.slane %v1088, 4
        %v1091 = vor.u32 %v1090, %v1086
        %v1092 = vrot.slane %v1091, 4
        %v1094 = vshll.u32 %v1043, 16
        %v1096 = vrot.slane %v1094, 5
        %v1097 = vsel %vm327, %v1092, %v1096
        %v1099 = vshrl.u32 %v1044, 16
        %v1101 = vrot.slane %v1099, 4
        %v1102 = vshll.u32 %v1044, 16
        %v1104 = vrot.slane %v1102, 5
        %v1105 = vor.u32 %v1101, %v1104
        %v1106 = vrot.slane %v1105, 4
        %v1108 = vshll.u32 %v1045, 16
        %v1110 = vrot.slane %v1108, 5
        %v1111 = vsel %vm327, %v1106, %v1110
        %v1112 = vshrl.u32 %v1045, 16
        %v1114 = vrot.slane %v1112, 4
        %v1115 = vor.u32 %v1114, %v1110
        %v1116 = vrot.slane %v1115, 4
        %v1118 = vshll.u32 %v1046, 16
        %v1120 = vrot.slane %v1118, 5
        %v1121 = vsel %vm327, %v1116, %v1120
        %v1123 = vshrl.u32 %v1047, 16
        %v1125 = vrot.slane %v1123, 4
        %v1126 = vshll.u32 %v1047, 16
        %v1128 = vrot.slane %v1126, 5
        %v1129 = vor.u32 %v1125, %v1128
        %v1130 = vrot.slane %v1129, 4
        %v1132 = vshll.u32 %v1048, 16
        %v1134 = vrot.slane %v1132, 5
        %v1135 = vsel %vm327, %v1130, %v1134
        %v1136 = vshrl.u32 %v1048, 16
        %v1138 = vrot.slane %v1136, 4
        %v1139 = vor.u32 %v1138, %v1134
        %v1140 = vrot.slane %v1139, 4
        %v1142 = vshll.u32 %v1049, 16
        %v1144 = vrot.slane %v1142, 5
        %v1145 = vsel %vm327, %v1140, %v1144
        %s1146 = scalar_lea.vmem %s215, 8
        %v1147 = vld [vmem:[%s1146] sm:$0xf]
        %v1148 = vld [vmem:[%s1146 + $0x4] sm:$0xf]
        %v1149 = vunpack.c.l.b16 %v1063
        %v1150 = vunpack.c.l.b16 %v1073
        %v1151 = vunpack.c.l.b16 %v1087
        %v1152 = vunpack.c.l.b16 %v1097
        %v1153 = vunpack.c.l.b16 %v1111
        %v1154 = vunpack.c.l.b16 %v1121
        %v1155 = vunpack.c.l.b16 %v1135
        %v1156 = vunpack.c.l.b16 %v1145
        %v1157 = vpack.c.b16 %v1150, %v1149
        %v1158 = vpack.c.b16 %v1152, %v1151
        %v1159 = vpack.c.b16 %v1154, %v1153
        %v1160 = vpack.c.b16 %v1156, %v1155
        %v1163 = vunpack.c.l.b16 %v1147
        %v1164 = vunpack.c.l.b16 %v1148
        %v1165 = vpack.c.b16 %v1164, %v1163
        %v1168 = vsel %vm263, %v1157, 0
        %v1171 = vsel %vm263, %v1158, 0
        %v1174 = vsel %vm263, %v1159, 0
        %v1177 = vsel %vm263, %v1160, 0
        %1179 = vmatpush.bf16.msra.mxu0 0
        %1180 = vmatpush.bf16.msra.mxu0 0
        %1181 = vmatpush.bf16.msra.mxu0 0
        %1182 = vmatpush.bf16.msra.mxu0 0
        %1183 = vmatpush.bf16.msra.mxu0 0
        %1184 = vmatpush.bf16.msra.mxu0 0
        %1185 = vmatpush.bf16.msra.mxu0 0
        %1186 = vmatpush.bf16.msra.mxu0 %v1165
        %1187 = vmatmul.bf16.gmra.mxu0 %v1168
        %v1188 = vpop.f32.mrf.mxu0
        %v1189 = vadd.f32 0.0, %v1188
        %v1190 = vpop.f32.mrf.mxu0
        %v1191 = vadd.f32 0.0, %v1190
        %1192 = vmatmul.bf16.gmra.mxu0 %v1171
        %v1193 = vpop.f32.mrf.mxu0
        %v1194 = vadd.f32 0.0, %v1193
        %v1195 = vpop.f32.mrf.mxu0
        %v1196 = vadd.f32 0.0, %v1195
        %1197 = vmatmul.bf16.gmra.mxu0 %v1174
        %v1198 = vpop.f32.mrf.mxu0
        %v1199 = vadd.f32 0.0, %v1198
        %v1200 = vpop.f32.mrf.mxu0
        %v1201 = vadd.f32 0.0, %v1200
        %1202 = vmatmul.bf16.gmra.mxu0 %v1177
        %v1203 = vpop.f32.mrf.mxu0
        %v1204 = vadd.f32 0.0, %v1203
        %v1205 = vpop.f32.mrf.mxu0
        %v1206 = vadd.f32 0.0, %v1205
        %1207 = vdwg.mxu0
        %v1208 = vld [vmem:[#allocation2] sm:$0xff]
        %v1209 = vld [vmem:[#allocation2 + $0x8] sm:$0xff]
        %v1210 = vld [vmem:[#allocation2 + $0x10] sm:$0xff]
        %v1211 = vld [vmem:[#allocation2 + $0x18] sm:$0xff]
        %v1212 = vld [vmem:[#allocation2 + $0x20] sm:$0xff]
        %v1213 = vld [vmem:[#allocation2 + $0x28] sm:$0xff]
        %v1214 = vld [vmem:[#allocation2 + $0x30] sm:$0xff]
        %v1215 = vld [vmem:[#allocation2 + $0x38] sm:$0xff]
        %v1216 = vadd.f32 %v1208, %v1189
        %v1217 = vadd.f32 %v1209, %v1191
        %v1218 = vadd.f32 %v1210, %v1194
        %v1219 = vadd.f32 %v1211, %v1196
        %v1220 = vadd.f32 %v1212, %v1199
        %v1221 = vadd.f32 %v1213, %v1201
        %v1222 = vadd.f32 %v1214, %v1204
        %v1223 = vadd.f32 %v1215, %v1206
        %1224 = vst.msk [vmem:[#allocation2] sm:$0xff] %vm263, %v1216
        %1225 = vst.msk [vmem:[#allocation2 + $0x8] sm:$0xff] %vm263, %v1217
        %1226 = vst.msk [vmem:[#allocation2 + $0x10] sm:$0xff] %vm263, %v1218
        %1227 = vst.msk [vmem:[#allocation2 + $0x18] sm:$0xff] %vm263, %v1219
        %1228 = vst.msk [vmem:[#allocation2 + $0x20] sm:$0xff] %vm263, %v1220
        %1229 = vst.msk [vmem:[#allocation2 + $0x28] sm:$0xff] %vm263, %v1221
        %1230 = vst.msk [vmem:[#allocation2 + $0x30] sm:$0xff] %vm263, %v1222
        %1231 = vst.msk [vmem:[#allocation2 + $0x38] sm:$0xff] %vm263, %v1223
        %v1232 = vld [vmem:[#allocation2] sm:$0xff]
        %v1233 = vld [vmem:[#allocation2 + $0x8] sm:$0xff]
        %v1234 = vld [vmem:[#allocation2 + $0x10] sm:$0xff]
        %v1235 = vld [vmem:[#allocation2 + $0x18] sm:$0xff]
        %v1236 = vld [vmem:[#allocation2 + $0x20] sm:$0xff]
        %v1237 = vld [vmem:[#allocation2 + $0x28] sm:$0xff]
        %v1238 = vld [vmem:[#allocation2 + $0x30] sm:$0xff]
        %v1239 = vld [vmem:[#allocation2 + $0x38] sm:$0xff]
        %v1240 = vadd.f32 %v1232, %v818
        %v1241 = vadd.f32 %v1233, %v818
        %v1242 = vadd.f32 %v1234, %v818
        %v1243 = vadd.f32 %v1235, %v818
        %v1244 = vadd.f32 %v1236, %v818
        %v1245 = vadd.f32 %v1237, %v818
        %v1246 = vadd.f32 %v1238, %v818
        %v1247 = vadd.f32 %v1239, %v818
        %vm1248 = vcmp.gt.f32.partialorder %v1240, 0.0
        %vm1249 = vcmp.gt.f32.partialorder %v1241, 0.0
        %vm1250 = vcmp.gt.f32.partialorder %v1242, 0.0
        %vm1251 = vcmp.gt.f32.partialorder %v1243, 0.0
        %vm1252 = vcmp.gt.f32.partialorder %v1244, 0.0
        %vm1253 = vcmp.gt.f32.partialorder %v1245, 0.0
        %vm1254 = vcmp.gt.f32.partialorder %v1246, 0.0
        %vm1255 = vcmp.gt.f32.partialorder %v1247, 0.0
        %v1256 = vmul.f32 %v1240, -0.01
        %v1257 = vmul.f32 %v1241, -0.01
        %v1258 = vmul.f32 %v1242, -0.01
        %v1259 = vmul.f32 %v1243, -0.01
        %v1260 = vmul.f32 %v1244, -0.01
        %v1261 = vmul.f32 %v1245, -0.01
        %v1262 = vmul.f32 %v1246, -0.01
        %v1263 = vmul.f32 %v1247, -0.01
        %v1264 = vsel %vm1248, %v1240, %v1256
        %v1265 = vsel %vm1249, %v1241, %v1257
        %v1266 = vsel %vm1250, %v1242, %v1258
        %v1267 = vsel %vm1251, %v1243, %v1259
        %v1268 = vsel %vm1252, %v1244, %v1260
        %v1269 = vsel %vm1253, %v1245, %v1261
        %v1270 = vsel %vm1254, %v1246, %v1262
        %v1271 = vsel %vm1255, %v1247, %v1263
        %s1272 = scalar_lea.vmem %s206, 64 [#allocation3]
        %1273 = vst.msk [vmem:[%s1272] sm:$0xff] %vm263, %v1264
        %1274 = vst.msk [vmem:[%s1272 + $0x8] sm:$0xff] %vm263, %v1265
        %1275 = vst.msk [vmem:[%s1272 + $0x10] sm:$0xff] %vm263, %v1266
        %1276 = vst.msk [vmem:[%s1272 + $0x18] sm:$0xff] %vm263, %v1267
        %1277 = vst.msk [vmem:[%s1272 + $0x20] sm:$0xff] %vm263, %v1268
        %1278 = vst.msk [vmem:[%s1272 + $0x28] sm:$0xff] %vm263, %v1269
        %1279 = vst.msk [vmem:[%s1272 + $0x30] sm:$0xff] %vm263, %v1270
        %1280 = vst.msk [vmem:[%s1272 + $0x38] sm:$0xff] %vm263, %v1271
        %v1281 = vld [vmem:[%s513] sm:$0xf]
        %v1282 = vld [vmem:[%s513 + $0x4] sm:$0xf]
        %v1283 = vld [vmem:[%s513 + $0xc] sm:$0xf]
        %v1284 = vld [vmem:[%s513 + $0x10] sm:$0xf]
        %v1285 = vld [vmem:[%s513 + $0x18] sm:$0xf]
        %v1286 = vld [vmem:[%s513 + $0x1c] sm:$0xf]
        %v1287 = vld [vmem:[%s513 + $0x24] sm:$0xf]
        %v1288 = vld [vmem:[%s513 + $0x28] sm:$0xf]
        %s1289 = scalar_lea.vmem %s215, 40
        %v1290 = vld [vmem:[%s1289] sm:$0xf]
        %v1291 = vld [vmem:[%s1289 + $0x4] sm:$0xf]
        %v1300 = vunpack.c.l.b16 %v1281
        %v1301 = vunpack.c.l.b16 %v1282
        %v1302 = vunpack.c.l.b16 %v1283
        %v1303 = vunpack.c.l.b16 %v1284
        %v1304 = vunpack.c.l.b16 %v1285
        %v1305 = vunpack.c.l.b16 %v1286
        %v1306 = vunpack.c.l.b16 %v1287
        %v1307 = vunpack.c.l.b16 %v1288
        %v1308 = vpack.c.b16 %v1301, %v1300
        %v1309 = vpack.c.b16 %v1303, %v1302
        %v1310 = vpack.c.b16 %v1305, %v1304
        %v1311 = vpack.c.b16 %v1307, %v1306
        %v1314 = vunpack.c.l.b16 %v1290
        %v1315 = vunpack.c.l.b16 %v1291
        %v1316 = vpack.c.b16 %v1315, %v1314
        %v1319 = vsel %vm263, %v1308, 0
        %v1322 = vsel %vm263, %v1309, 0
        %v1325 = vsel %vm263, %v1310, 0
        %v1328 = vsel %vm263, %v1311, 0
        %1330 = vmatpush.bf16.msra.mxu0 0
        %1331 = vmatpush.bf16.msra.mxu0 0
        %1332 = vmatpush.bf16.msra.mxu0 0
        %1333 = vmatpush.bf16.msra.mxu0 0
        %1334 = vmatpush.bf16.msra.mxu0 0
        %1335 = vmatpush.bf16.msra.mxu0 0
        %1336 = vmatpush.bf16.msra.mxu0 0
        %1337 = vmatpush.bf16.msra.mxu0 %v1316
        %1338 = vmatmul.bf16.gmra.mxu0 %v1319
        %v1339 = vpop.f32.mrf.mxu0
        %v1340 = vadd.f32 0.0, %v1339
        %v1341 = vpop.f32.mrf.mxu0
        %v1342 = vadd.f32 0.0, %v1341
        %1343 = vmatmul.bf16.gmra.mxu0 %v1322
        %v1344 = vpop.f32.mrf.mxu0
        %v1345 = vadd.f32 0.0, %v1344
        %v1346 = vpop.f32.mrf.mxu0
        %v1347 = vadd.f32 0.0, %v1346
        %1348 = vmatmul.bf16.gmra.mxu0 %v1325
        %v1349 = vpop.f32.mrf.mxu0
        %v1350 = vadd.f32 0.0, %v1349
        %v1351 = vpop.f32.mrf.mxu0
        %v1352 = vadd.f32 0.0, %v1351
        %1353 = vmatmul.bf16.gmra.mxu0 %v1328
        %v1354 = vpop.f32.mrf.mxu0
        %v1355 = vadd.f32 0.0, %v1354
        %v1356 = vpop.f32.mrf.mxu0
        %v1357 = vadd.f32 0.0, %v1356
        %1358 = vdwg.mxu0
        %1359 = vst.msk [vmem:[#allocation2] sm:$0xff] %vm263, %v1340
        %1360 = vst.msk [vmem:[#allocation2 + $0x8] sm:$0xff] %vm263, %v1342
        %1361 = vst.msk [vmem:[#allocation2 + $0x10] sm:$0xff] %vm263, %v1345
        %1362 = vst.msk [vmem:[#allocation2 + $0x18] sm:$0xff] %vm263, %v1347
        %1363 = vst.msk [vmem:[#allocation2 + $0x20] sm:$0xff] %vm263, %v1350
        %1364 = vst.msk [vmem:[#allocation2 + $0x28] sm:$0xff] %vm263, %v1352
        %1365 = vst.msk [vmem:[#allocation2 + $0x30] sm:$0xff] %vm263, %v1355
        %1366 = vst.msk [vmem:[#allocation2 + $0x38] sm:$0xff] %vm263, %v1357
        %v1367 = vld [vmem:[%s513] sm:$0xf]
        %v1368 = vld [vmem:[%s513 + $0x4] sm:$0xf]
        %v1369 = vld [vmem:[%s513 + $0x8] sm:$0x1]
        %v1370 = vld [vmem:[%s513 + $0xc] sm:$0xf]
        %v1371 = vld [vmem:[%s513 + $0x10] sm:$0xf]
        %v1372 = vld [vmem:[%s513 + $0x14] sm:$0x1]
        %v1373 = vld [vmem:[%s513 + $0x18] sm:$0xf]
        %v1374 = vld [vmem:[%s513 + $0x1c] sm:$0xf]
        %v1375 = vld [vmem:[%s513 + $0x20] sm:$0x1]
        %v1376 = vld [vmem:[%s513 + $0x24] sm:$0xf]
        %v1377 = vld [vmem:[%s513 + $0x28] sm:$0xf]
        %v1378 = vld [vmem:[%s513 + $0x2c] sm:$0x1]
        %v1380 = vshrl.u32 %v1367, 16
        %v1382 = vrot.slane %v1380, 4
        %v1383 = vshll.u32 %v1367, 16
        %v1385 = vrot.slane %v1383, 5
        %v1386 = vor.u32 %v1382, %v1385
        %v1387 = vrot.slane %v1386, 4
        %v1389 = vshll.u32 %v1368, 16
        %v1391 = vrot.slane %v1389, 5
        %v1392 = vsel %vm327, %v1387, %v1391
        %v1393 = vshrl.u32 %v1368, 16
        %v1395 = vrot.slane %v1393, 4
        %v1396 = vor.u32 %v1395, %v1391
        %v1397 = vrot.slane %v1396, 4
        %v1399 = vshll.u32 %v1369, 16
        %v1401 = vrot.slane %v1399, 5
        %v1402 = vsel %vm327, %v1397, %v1401
        %v1404 = vshrl.u32 %v1370, 16
        %v1406 = vrot.slane %v1404, 4
        %v1407 = vshll.u32 %v1370, 16
        %v1409 = vrot.slane %v1407, 5
        %v1410 = vor.u32 %v1406, %v1409
        %v1411 = vrot.slane %v1410, 4
        %v1413 = vshll.u32 %v1371, 16
        %v1415 = vrot.slane %v1413, 5
        %v1416 = vsel %vm327, %v1411, %v1415
        %v1417 = vshrl.u32 %v1371, 16
        %v1419 = vrot.slane %v1417, 4
        %v1420 = vor.u32 %v1419, %v1415
        %v1421 = vrot.slane %v1420, 4
        %v1423 = vshll.u32 %v1372, 16
        %v1425 = vrot.slane %v1423, 5
        %v1426 = vsel %vm327, %v1421, %v1425
        %v1428 = vshrl.u32 %v1373, 16
        %v1430 = vrot.slane %v1428, 4
        %v1431 = vshll.u32 %v1373, 16
        %v1433 = vrot.slane %v1431, 5
        %v1434 = vor.u32 %v1430, %v1433
        %v1435 = vrot.slane %v1434, 4
        %v1437 = vshll.u32 %v1374, 16
        %v1439 = vrot.slane %v1437, 5
        %v1440 = vsel %vm327, %v1435, %v1439
        %v1441 = vshrl.u32 %v1374, 16
        %v1443 = vrot.slane %v1441, 4
        %v1444 = vor.u32 %v1443, %v1439
        %v1445 = vrot.slane %v1444, 4
        %v1447 = vshll.u32 %v1375, 16
        %v1449 = vrot.slane %v1447, 5
        %v1450 = vsel %vm327, %v1445, %v1449
        %v1452 = vshrl.u32 %v1376, 16
        %v1454 = vrot.slane %v1452, 4
        %v1455 = vshll.u32 %v1376, 16
        %v1457 = vrot.slane %v1455, 5
        %v1458 = vor.u32 %v1454, %v1457
        %v1459 = vrot.slane %v1458, 4
        %v1461 = vshll.u32 %v1377, 16
        %v1463 = vrot.slane %v1461, 5
        %v1464 = vsel %vm327, %v1459, %v1463
        %v1465 = vshrl.u32 %v1377, 16
        %v1467 = vrot.slane %v1465, 4
        %v1468 = vor.u32 %v1467, %v1463
        %v1469 = vrot.slane %v1468, 4
        %v1471 = vshll.u32 %v1378, 16
        %v1473 = vrot.slane %v1471, 5
        %v1474 = vsel %vm327, %v1469, %v1473
        %s1475 = scalar_lea.vmem %s215, 24
        %v1476 = vld [vmem:[%s1475] sm:$0xf]
        %v1477 = vld [vmem:[%s1475 + $0x4] sm:$0xf]
        %v1478 = vunpack.c.l.b16 %v1392
        %v1479 = vunpack.c.l.b16 %v1402
        %v1480 = vunpack.c.l.b16 %v1416
        %v1481 = vunpack.c.l.b16 %v1426
        %v1482 = vunpack.c.l.b16 %v1440
        %v1483 = vunpack.c.l.b16 %v1450
        %v1484 = vunpack.c.l.b16 %v1464
        %v1485 = vunpack.c.l.b16 %v1474
        %v1486 = vpack.c.b16 %v1479, %v1478
        %v1487 = vpack.c.b16 %v1481, %v1480
        %v1488 = vpack.c.b16 %v1483, %v1482
        %v1489 = vpack.c.b16 %v1485, %v1484
        %v1492 = vunpack.c.l.b16 %v1476
        %v1493 = vunpack.c.l.b16 %v1477
        %v1494 = vpack.c.b16 %v1493, %v1492
        %v1497 = vsel %vm263, %v1486, 0
        %v1500 = vsel %vm263, %v1487, 0
        %v1503 = vsel %vm263, %v1488, 0
        %v1506 = vsel %vm263, %v1489, 0
        %1508 = vmatpush.bf16.msra.mxu0 0
        %1509 = vmatpush.bf16.msra.mxu0 0
        %1510 = vmatpush.bf16.msra.mxu0 0
        %1511 = vmatpush.bf16.msra.mxu0 0
        %1512 = vmatpush.bf16.msra.mxu0 0
        %1513 = vmatpush.bf16.msra.mxu0 0
        %1514 = vmatpush.bf16.msra.mxu0 0
        %1515 = vmatpush.bf16.msra.mxu0 %v1494
        %1516 = vmatmul.bf16.gmra.mxu0 %v1497
        %v1517 = vpop.f32.mrf.mxu0
        %v1518 = vadd.f32 0.0, %v1517
        %v1519 = vpop.f32.mrf.mxu0
        %v1520 = vadd.f32 0.0, %v1519
        %1521 = vmatmul.bf16.gmra.mxu0 %v1500
        %v1522 = vpop.f32.mrf.mxu0
        %v1523 = vadd.f32 0.0, %v1522
        %v1524 = vpop.f32.mrf.mxu0
        %v1525 = vadd.f32 0.0, %v1524
        %1526 = vmatmul.bf16.gmra.mxu0 %v1503
        %v1527 = vpop.f32.mrf.mxu0
        %v1528 = vadd.f32 0.0, %v1527
        %v1529 = vpop.f32.mrf.mxu0
        %v1530 = vadd.f32 0.0, %v1529
        %1531 = vmatmul.bf16.gmra.mxu0 %v1506
        %v1532 = vpop.f32.mrf.mxu0
        %v1533 = vadd.f32 0.0, %v1532
        %v1534 = vpop.f32.mrf.mxu0
        %v1535 = vadd.f32 0.0, %v1534
        %1536 = vdwg.mxu0
        %v1537 = vld [vmem:[#allocation2] sm:$0xff]
        %v1538 = vld [vmem:[#allocation2 + $0x8] sm:$0xff]
        %v1539 = vld [vmem:[#allocation2 + $0x10] sm:$0xff]
        %v1540 = vld [vmem:[#allocation2 + $0x18] sm:$0xff]
        %v1541 = vld [vmem:[#allocation2 + $0x20] sm:$0xff]
        %v1542 = vld [vmem:[#allocation2 + $0x28] sm:$0xff]
        %v1543 = vld [vmem:[#allocation2 + $0x30] sm:$0xff]
        %v1544 = vld [vmem:[#allocation2 + $0x38] sm:$0xff]
        %v1545 = vadd.f32 %v1537, %v1518
        %v1546 = vadd.f32 %v1538, %v1520
        %v1547 = vadd.f32 %v1539, %v1523
        %v1548 = vadd.f32 %v1540, %v1525
        %v1549 = vadd.f32 %v1541, %v1528
        %v1550 = vadd.f32 %v1542, %v1530
        %v1551 = vadd.f32 %v1543, %v1533
        %v1552 = vadd.f32 %v1544, %v1535
        %1553 = vst.msk [vmem:[#allocation2] sm:$0xff] %vm263, %v1545
        %1554 = vst.msk [vmem:[#allocation2 + $0x8] sm:$0xff] %vm263, %v1546
        %1555 = vst.msk [vmem:[#allocation2 + $0x10] sm:$0xff] %vm263, %v1547
        %1556 = vst.msk [vmem:[#allocation2 + $0x18] sm:$0xff] %vm263, %v1548
        %1557 = vst.msk [vmem:[#allocation2 + $0x20] sm:$0xff] %vm263, %v1549
        %1558 = vst.msk [vmem:[#allocation2 + $0x28] sm:$0xff] %vm263, %v1550
        %1559 = vst.msk [vmem:[#allocation2 + $0x30] sm:$0xff] %vm263, %v1551
        %1560 = vst.msk [vmem:[#allocation2 + $0x38] sm:$0xff] %vm263, %v1552
        %v1561 = vld [vmem:[#allocation2] sm:$0xff]
        %v1562 = vld [vmem:[#allocation2 + $0x8] sm:$0xff]
        %v1563 = vld [vmem:[#allocation2 + $0x10] sm:$0xff]
        %v1564 = vld [vmem:[#allocation2 + $0x18] sm:$0xff]
        %v1565 = vld [vmem:[#allocation2 + $0x20] sm:$0xff]
        %v1566 = vld [vmem:[#allocation2 + $0x28] sm:$0xff]
        %v1567 = vld [vmem:[#allocation2 + $0x30] sm:$0xff]
        %v1568 = vld [vmem:[#allocation2 + $0x38] sm:$0xff]
        %v1569 = vadd.f32 %v1561, %v818
        %v1570 = vadd.f32 %v1562, %v818
        %v1571 = vadd.f32 %v1563, %v818
        %v1572 = vadd.f32 %v1564, %v818
        %v1573 = vadd.f32 %v1565, %v818
        %v1574 = vadd.f32 %v1566, %v818
        %v1575 = vadd.f32 %v1567, %v818
        %v1576 = vadd.f32 %v1568, %v818
        %vm1577 = vcmp.gt.f32.partialorder %v1569, 0.0
        %vm1578 = vcmp.gt.f32.partialorder %v1570, 0.0
        %vm1579 = vcmp.gt.f32.partialorder %v1571, 0.0
        %vm1580 = vcmp.gt.f32.partialorder %v1572, 0.0
        %vm1581 = vcmp.gt.f32.partialorder %v1573, 0.0
        %vm1582 = vcmp.gt.f32.partialorder %v1574, 0.0
        %vm1583 = vcmp.gt.f32.partialorder %v1575, 0.0
        %vm1584 = vcmp.gt.f32.partialorder %v1576, 0.0
        %v1585 = vmul.f32 %v1569, -0.01
        %v1586 = vmul.f32 %v1570, -0.01
        %v1587 = vmul.f32 %v1571, -0.01
        %v1588 = vmul.f32 %v1572, -0.01
        %v1589 = vmul.f32 %v1573, -0.01
        %v1590 = vmul.f32 %v1574, -0.01
        %v1591 = vmul.f32 %v1575, -0.01
        %v1592 = vmul.f32 %v1576, -0.01
        %v1593 = vsel %vm1577, %v1569, %v1585
        %v1594 = vsel %vm1578, %v1570, %v1586
        %v1595 = vsel %vm1579, %v1571, %v1587
        %v1596 = vsel %vm1580, %v1572, %v1588
        %v1597 = vsel %vm1581, %v1573, %v1589
        %v1598 = vsel %vm1582, %v1574, %v1590
        %v1599 = vsel %vm1583, %v1575, %v1591
        %v1600 = vsel %vm1584, %v1576, %v1592
        %s1601 = scalar_lea.vmem %s206, 128 [#allocation3]
        %1602 = vst.msk [vmem:[%s1601] sm:$0xff] %vm263, %v1593
        %1603 = vst.msk [vmem:[%s1601 + $0x8] sm:$0xff] %vm263, %v1594
        %1604 = vst.msk [vmem:[%s1601 + $0x10] sm:$0xff] %vm263, %v1595
        %1605 = vst.msk [vmem:[%s1601 + $0x18] sm:$0xff] %vm263, %v1596
        %1606 = vst.msk [vmem:[%s1601 + $0x20] sm:$0xff] %vm263, %v1597
        %1607 = vst.msk [vmem:[%s1601 + $0x28] sm:$0xff] %vm263, %v1598
        %1608 = vst.msk [vmem:[%s1601 + $0x30] sm:$0xff] %vm263, %v1599
        %1609 = vst.msk [vmem:[%s1601 + $0x38] sm:$0xff] %vm263, %v1600
        %v1610 = vld [vmem:[%s513] sm:$0xf]
        %v1611 = vld [vmem:[%s513 + $0x4] sm:$0xf]
        %v1612 = vld [vmem:[%s513 + $0x8] sm:$0x1]
        %v1613 = vld [vmem:[%s513 + $0xc] sm:$0xf]
        %v1614 = vld [vmem:[%s513 + $0x10] sm:$0xf]
        %v1615 = vld [vmem:[%s513 + $0x14] sm:$0x1]
        %v1616 = vld [vmem:[%s513 + $0x18] sm:$0xf]
        %v1617 = vld [vmem:[%s513 + $0x1c] sm:$0xf]
        %v1618 = vld [vmem:[%s513 + $0x20] sm:$0x1]
        %v1619 = vld [vmem:[%s513 + $0x24] sm:$0xf]
        %v1620 = vld [vmem:[%s513 + $0x28] sm:$0xf]
        %v1621 = vld [vmem:[%s513 + $0x2c] sm:$0x1]
        %v1623 = vshrl.u32 %v1610, 16
        %v1625 = vrot.slane %v1623, 4
        %v1626 = vshll.u32 %v1610, 16
        %v1628 = vrot.slane %v1626, 5
        %v1629 = vor.u32 %v1625, %v1628
        %v1630 = vrot.slane %v1629, 4
        %v1632 = vshll.u32 %v1611, 16
        %v1634 = vrot.slane %v1632, 5
        %v1635 = vsel %vm327, %v1630, %v1634
        %v1636 = vshrl.u32 %v1611, 16
        %v1638 = vrot.slane %v1636, 4
        %v1639 = vor.u32 %v1638, %v1634
        %v1640 = vrot.slane %v1639, 4
        %v1642 = vshll.u32 %v1612, 16
        %v1644 = vrot.slane %v1642, 5
        %v1645 = vsel %vm327, %v1640, %v1644
        %v1647 = vshrl.u32 %v1613, 16
        %v1649 = vrot.slane %v1647, 4
        %v1650 = vshll.u32 %v1613, 16
        %v1652 = vrot.slane %v1650, 5
        %v1653 = vor.u32 %v1649, %v1652
        %v1654 = vrot.slane %v1653, 4
        %v1656 = vshll.u32 %v1614, 16
        %v1658 = vrot.slane %v1656, 5
        %v1659 = vsel %vm327, %v1654, %v1658
        %v1660 = vshrl.u32 %v1614, 16
        %v1662 = vrot.slane %v1660, 4
        %v1663 = vor.u32 %v1662, %v1658
        %v1664 = vrot.slane %v1663, 4
        %v1666 = vshll.u32 %v1615, 16
        %v1668 = vrot.slane %v1666, 5
        %v1669 = vsel %vm327, %v1664, %v1668
        %v1671 = vshrl.u32 %v1616, 16
        %v1673 = vrot.slane %v1671, 4
        %v1674 = vshll.u32 %v1616, 16
        %v1676 = vrot.slane %v1674, 5
        %v1677 = vor.u32 %v1673, %v1676
        %v1678 = vrot.slane %v1677, 4
        %v1680 = vshll.u32 %v1617, 16
        %v1682 = vrot.slane %v1680, 5
        %v1683 = vsel %vm327, %v1678, %v1682
        %v1684 = vshrl.u32 %v1617, 16
        %v1686 = vrot.slane %v1684, 4
        %v1687 = vor.u32 %v1686, %v1682
        %v1688 = vrot.slane %v1687, 4
        %v1690 = vshll.u32 %v1618, 16
        %v1692 = vrot.slane %v1690, 5
        %v1693 = vsel %vm327, %v1688, %v1692
        %v1695 = vshrl.u32 %v1619, 16
        %v1697 = vrot.slane %v1695, 4
        %v1698 = vshll.u32 %v1619, 16
        %v1700 = vrot.slane %v1698, 5
        %v1701 = vor.u32 %v1697, %v1700
        %v1702 = vrot.slane %v1701, 4
        %v1704 = vshll.u32 %v1620, 16
        %v1706 = vrot.slane %v1704, 5
        %v1707 = vsel %vm327, %v1702, %v1706
        %v1708 = vshrl.u32 %v1620, 16
        %v1710 = vrot.slane %v1708, 4
        %v1711 = vor.u32 %v1710, %v1706
        %v1712 = vrot.slane %v1711, 4
        %v1714 = vshll.u32 %v1621, 16
        %v1716 = vrot.slane %v1714, 5
        %v1717 = vsel %vm327, %v1712, %v1716
        %s1718 = scalar_lea.vmem %s215, 32
        %v1719 = vld [vmem:[%s1718] sm:$0xf]
        %v1720 = vld [vmem:[%s1718 + $0x4] sm:$0xf]
        %v1721 = vunpack.c.l.b16 %v1635
        %v1722 = vunpack.c.l.b16 %v1645
        %v1723 = vunpack.c.l.b16 %v1659
        %v1724 = vunpack.c.l.b16 %v1669
        %v1725 = vunpack.c.l.b16 %v1683
        %v1726 = vunpack.c.l.b16 %v1693
        %v1727 = vunpack.c.l.b16 %v1707
        %v1728 = vunpack.c.l.b16 %v1717
        %v1729 = vpack.c.b16 %v1722, %v1721
        %v1730 = vpack.c.b16 %v1724, %v1723
        %v1731 = vpack.c.b16 %v1726, %v1725
        %v1732 = vpack.c.b16 %v1728, %v1727
        %v1735 = vunpack.c.l.b16 %v1719
        %v1736 = vunpack.c.l.b16 %v1720
        %v1737 = vpack.c.b16 %v1736, %v1735
        %v1740 = vsel %vm263, %v1729, 0
        %v1743 = vsel %vm263, %v1730, 0
        %v1746 = vsel %vm263, %v1731, 0
        %v1749 = vsel %vm263, %v1732, 0
        %1751 = vmatpush.bf16.msra.mxu0 0
        %1752 = vmatpush.bf16.msra.mxu0 0
        %1753 = vmatpush.bf16.msra.mxu0 0
        %1754 = vmatpush.bf16.msra.mxu0 0
        %1755 = vmatpush.bf16.msra.mxu0 0
        %1756 = vmatpush.bf16.msra.mxu0 0
        %1757 = vmatpush.bf16.msra.mxu0 0
        %1758 = vmatpush.bf16.msra.mxu0 %v1737
        %1759 = vmatmul.bf16.gmra.mxu0 %v1740
        %v1760 = vpop.f32.mrf.mxu0
        %v1761 = vadd.f32 0.0, %v1760
        %v1762 = vpop.f32.mrf.mxu0
        %v1763 = vadd.f32 0.0, %v1762
        %1764 = vmatmul.bf16.gmra.mxu0 %v1743
        %v1765 = vpop.f32.mrf.mxu0
        %v1766 = vadd.f32 0.0, %v1765
        %v1767 = vpop.f32.mrf.mxu0
        %v1768 = vadd.f32 0.0, %v1767
        %1769 = vmatmul.bf16.gmra.mxu0 %v1746
        %v1770 = vpop.f32.mrf.mxu0
        %v1771 = vadd.f32 0.0, %v1770
        %v1772 = vpop.f32.mrf.mxu0
        %v1773 = vadd.f32 0.0, %v1772
        %1774 = vmatmul.bf16.gmra.mxu0 %v1749
        %v1775 = vpop.f32.mrf.mxu0
        %v1776 = vadd.f32 0.0, %v1775
        %v1777 = vpop.f32.mrf.mxu0
        %v1778 = vadd.f32 0.0, %v1777
        %1779 = vdwg.mxu0
        %1780 = vst.msk [vmem:[#allocation2] sm:$0xff] %vm263, %v1761
        %1781 = vst.msk [vmem:[#allocation2 + $0x8] sm:$0xff] %vm263, %v1763
        %1782 = vst.msk [vmem:[#allocation2 + $0x10] sm:$0xff] %vm263, %v1766
        %1783 = vst.msk [vmem:[#allocation2 + $0x18] sm:$0xff] %vm263, %v1768
        %1784 = vst.msk [vmem:[#allocation2 + $0x20] sm:$0xff] %vm263, %v1771
        %1785 = vst.msk [vmem:[#allocation2 + $0x28] sm:$0xff] %vm263, %v1773
        %1786 = vst.msk [vmem:[#allocation2 + $0x30] sm:$0xff] %vm263, %v1776
        %1787 = vst.msk [vmem:[#allocation2 + $0x38] sm:$0xff] %vm263, %v1778
        %v1788 = vld [vmem:[#allocation2] sm:$0xff]
        %v1789 = vld [vmem:[#allocation2 + $0x8] sm:$0xff]
        %v1790 = vld [vmem:[#allocation2 + $0x10] sm:$0xff]
        %v1791 = vld [vmem:[#allocation2 + $0x18] sm:$0xff]
        %v1792 = vld [vmem:[#allocation2 + $0x20] sm:$0xff]
        %v1793 = vld [vmem:[#allocation2 + $0x28] sm:$0xff]
        %v1794 = vld [vmem:[#allocation2 + $0x30] sm:$0xff]
        %v1795 = vld [vmem:[#allocation2 + $0x38] sm:$0xff]
        %v1796 = vadd.f32 %v1788, %v818
        %v1797 = vadd.f32 %v1789, %v818
        %v1798 = vadd.f32 %v1790, %v818
        %v1799 = vadd.f32 %v1791, %v818
        %v1800 = vadd.f32 %v1792, %v818
        %v1801 = vadd.f32 %v1793, %v818
        %v1802 = vadd.f32 %v1794, %v818
        %v1803 = vadd.f32 %v1795, %v818
        %vm1804 = vcmp.gt.f32.partialorder %v1796, 0.0
        %vm1805 = vcmp.gt.f32.partialorder %v1797, 0.0
        %vm1806 = vcmp.gt.f32.partialorder %v1798, 0.0
        %vm1807 = vcmp.gt.f32.partialorder %v1799, 0.0
        %vm1808 = vcmp.gt.f32.partialorder %v1800, 0.0
        %vm1809 = vcmp.gt.f32.partialorder %v1801, 0.0
        %vm1810 = vcmp.gt.f32.partialorder %v1802, 0.0
        %vm1811 = vcmp.gt.f32.partialorder %v1803, 0.0
        %v1812 = vmul.f32 %v1796, -0.01
        %v1813 = vmul.f32 %v1797, -0.01
        %v1814 = vmul.f32 %v1798, -0.01
        %v1815 = vmul.f32 %v1799, -0.01
        %v1816 = vmul.f32 %v1800, -0.01
        %v1817 = vmul.f32 %v1801, -0.01
        %v1818 = vmul.f32 %v1802, -0.01
        %v1819 = vmul.f32 %v1803, -0.01
        %v1820 = vsel %vm1804, %v1796, %v1812
        %v1821 = vsel %vm1805, %v1797, %v1813
        %v1822 = vsel %vm1806, %v1798, %v1814
        %v1823 = vsel %vm1807, %v1799, %v1815
        %v1824 = vsel %vm1808, %v1800, %v1816
        %v1825 = vsel %vm1809, %v1801, %v1817
        %v1826 = vsel %vm1810, %v1802, %v1818
        %v1827 = vsel %vm1811, %v1803, %v1819
        %s1828 = scalar_lea.vmem %s206, 192 [#allocation3]
        %1829 = vst.msk [vmem:[%s1828] sm:$0xff] %vm263, %v1820
        %1830 = vst.msk [vmem:[%s1828 + $0x8] sm:$0xff] %vm263, %v1821
        %1831 = vst.msk [vmem:[%s1828 + $0x10] sm:$0xff] %vm263, %v1822
        %1832 = vst.msk [vmem:[%s1828 + $0x18] sm:$0xff] %vm263, %v1823
        %1833 = vst.msk [vmem:[%s1828 + $0x20] sm:$0xff] %vm263, %v1824
        %1834 = vst.msk [vmem:[%s1828 + $0x28] sm:$0xff] %vm263, %v1825
        %1835 = vst.msk [vmem:[%s1828 + $0x30] sm:$0xff] %vm263, %v1826
        %1836 = vst.msk [vmem:[%s1828 + $0x38] sm:$0xff] %vm263, %v1827
        %s1837 = sand.u32 %s123, 1
        %s1838 = sand.u32 %s123, 1
        %s1839 = smul.addr %s1838, 256
        %s1840 = scalar_lea.vmem [#allocation3], %s1839
        // Predicated region
        $region33: #{_lambda_.3} parent=31 // pred_check
          %p1841 = pneg %p133
        $region34: #{_lambda_.3} parent=31 // pred_check_branch
          %1843 = sbr.rel (%p1841) target = $region36
        $region35: #{_lambda_.3} parent=31 // pred_region
          %s1844 = smul.u32 4, %s21
          %s1845 = smul.addr %s1844, 2
          %s1846 = sadd.s32 %s20, %s1845
          %s1847 = smul.addr %s19, 96
          %s1848 = sadd.s32 %s1846, %s1847
          %s1849 = smul.addr %s1848, 8
          %s1850 = scalar_lea.vmem %s3, %s1849
          // Predicated region
          $region37: #{_lambda_.3} parent=35 // pred_check
            _
          $region38: #{_lambda_.3} parent=35 // pred_check_branch
            %1852 = sbr.rel (0) target = $region40
          $region39: #{_lambda_.3} parent=35 // pred_region
            // Predicated region
            $region41: #{_lambda_.3} parent=39 // pred_check
              _
            $region42: #{_lambda_.3} parent=39 // pred_check_branch
              %1854 = sbr.rel (0) target = $region44
            $region43: #{_lambda_.3} parent=39 // pred_region
              // Predicated region
              $region56: #{_lambda_.3} parent=43 // pred_check
                _
              $region57: #{_lambda_.3} parent=43 // pred_check_branch
                %1932 = sbr.rel (0) target = $region59
              $region58: #{_lambda_.3} parent=43 // pred_region
                loop: start=0, step=1, limit=1
                $region60: #{_lambda_.3} parent=58 // loop_pre_header
                  _
                $region61: #{_lambda_.3} parent=58 // loop_header
                  %s1934 = sphi 0, %s1938
                  %p1935 = scmp.ge.s32.totalorder %s1934, 1
                  %s1939 = sphi %s1840, %s1840
                  %s1940 = sphi %s1850, %s1850
                $region62: #{_lambda_.3} parent=58 // loop_header_branch
                  %1937 = sbr.rel (%p1935) target = $region66
                $region63: #{_lambda_.3} parent=58 // loop_body
                  %v1941 = vld [vmem:[%s1939] sm:$0xff]
                  %1942 = vst [vmem:[%s1940] sm:$0xff] %v1941
                  %v1943 = vld [vmem:[%s1939 + $0x8] sm:$0xff]
                  %1944 = vst [vmem:[%s1940 + $0x8] sm:$0xff] %v1943
                  %v1945 = vld [vmem:[%s1939 + $0x10] sm:$0xff]
                  %1946 = vst [vmem:[%s1940 + $0x10] sm:$0xff] %v1945
                  %v1947 = vld [vmem:[%s1939 + $0x18] sm:$0xff]
                  %1948 = vst [vmem:[%s1940 + $0x18] sm:$0xff] %v1947
                  %v1949 = vld [vmem:[%s1939 + $0x20] sm:$0xff]
                  %1950 = vst [vmem:[%s1940 + $0x20] sm:$0xff] %v1949
                  %v1951 = vld [vmem:[%s1939 + $0x28] sm:$0xff]
                  %1952 = vst [vmem:[%s1940 + $0x28] sm:$0xff] %v1951
                  %v1953 = vld [vmem:[%s1939 + $0x30] sm:$0xff]
                  %1954 = vst [vmem:[%s1940 + $0x30] sm:$0xff] %v1953
                  %v1955 = vld [vmem:[%s1939 + $0x38] sm:$0xff]
                  %1956 = vst [vmem:[%s1940 + $0x38] sm:$0xff] %v1955
                  %v1957 = vld [vmem:[%s1939 + $0x40] sm:$0xff]
                  %1958 = vst [vmem:[%s1940 + $0xc0] sm:$0xff] %v1957
                  %v1959 = vld [vmem:[%s1939 + $0x48] sm:$0xff]
                  %1960 = vst [vmem:[%s1940 + $0xc8] sm:$0xff] %v1959
                  %v1961 = vld [vmem:[%s1939 + $0x50] sm:$0xff]
                  %1962 = vst [vmem:[%s1940 + $0xd0] sm:$0xff] %v1961
                  %v1963 = vld [vmem:[%s1939 + $0x58] sm:$0xff]
                  %1964 = vst [vmem:[%s1940 + $0xd8] sm:$0xff] %v1963
                  %v1965 = vld [vmem:[%s1939 + $0x60] sm:$0xff]
                  %1966 = vst [vmem:[%s1940 + $0xe0] sm:$0xff] %v1965
                  %v1967 = vld [vmem:[%s1939 + $0x68] sm:$0xff]
                  %1968 = vst [vmem:[%s1940 + $0xe8] sm:$0xff] %v1967
                  %v1969 = vld [vmem:[%s1939 + $0x70] sm:$0xff]
                  %1970 = vst [vmem:[%s1940 + $0xf0] sm:$0xff] %v1969
                  %v1971 = vld [vmem:[%s1939 + $0x78] sm:$0xff]
                  %1972 = vst [vmem:[%s1940 + $0xf8] sm:$0xff] %v1971
                  %v1973 = vld [vmem:[%s1939 + $0x80] sm:$0xff]
                  %1974 = vst [vmem:[%s1940 + $0x180] sm:$0xff] %v1973
                  %v1975 = vld [vmem:[%s1939 + $0x88] sm:$0xff]
                  %1976 = vst [vmem:[%s1940 + $0x188] sm:$0xff] %v1975
                  %v1977 = vld [vmem:[%s1939 + $0x90] sm:$0xff]
                  %1978 = vst [vmem:[%s1940 + $0x190] sm:$0xff] %v1977
                  %v1979 = vld [vmem:[%s1939 + $0x98] sm:$0xff]
                  %1980 = vst [vmem:[%s1940 + $0x198] sm:$0xff] %v1979
                  %v1981 = vld [vmem:[%s1939 + $0xa0] sm:$0xff]
                  %1982 = vst [vmem:[%s1940 + $0x1a0] sm:$0xff] %v1981
                  %v1983 = vld [vmem:[%s1939 + $0xa8] sm:$0xff]
                  %1984 = vst [vmem:[%s1940 + $0x1a8] sm:$0xff] %v1983
                  %v1985 = vld [vmem:[%s1939 + $0xb0] sm:$0xff]
                  %1986 = vst [vmem:[%s1940 + $0x1b0] sm:$0xff] %v1985
                  %v1987 = vld [vmem:[%s1939 + $0xb8] sm:$0xff]
                  %1988 = vst [vmem:[%s1940 + $0x1b8] sm:$0xff] %v1987
                  %v1989 = vld [vmem:[%s1939 + $0xc0] sm:$0xff]
                  %1990 = vst [vmem:[%s1940 + $0x240] sm:$0xff] %v1989
                  %v1991 = vld [vmem:[%s1939 + $0xc8] sm:$0xff]
                  %1992 = vst [vmem:[%s1940 + $0x248] sm:$0xff] %v1991
                  %v1993 = vld [vmem:[%s1939 + $0xd0] sm:$0xff]
                  %1994 = vst [vmem:[%s1940 + $0x250] sm:$0xff] %v1993
                  %v1995 = vld [vmem:[%s1939 + $0xd8] sm:$0xff]
                  %1996 = vst [vmem:[%s1940 + $0x258] sm:$0xff] %v1995
                  %v1997 = vld [vmem:[%s1939 + $0xe0] sm:$0xff]
                  %1998 = vst [vmem:[%s1940 + $0x260] sm:$0xff] %v1997
                  %v1999 = vld [vmem:[%s1939 + $0xe8] sm:$0xff]
                  %2000 = vst [vmem:[%s1940 + $0x268] sm:$0xff] %v1999
                  %v2001 = vld [vmem:[%s1939 + $0xf0] sm:$0xff]
                  %2002 = vst [vmem:[%s1940 + $0x270] sm:$0xff] %v2001
                  %v2003 = vld [vmem:[%s1939 + $0xf8] sm:$0xff]
                  %2004 = vst [vmem:[%s1940 + $0x278] sm:$0xff] %v2003
                $region64: #{_lambda_.3} parent=58 // loop_footer
                  %s1938 = sadd.s32 1, %s1934
                $region65: #{_lambda_.3} parent=58 // loop_footer_branch
                  %1933 = sbr.rel target = $region61
                $region66: #{_lambda_.3} parent=58 // loop_exit
                  _
              $region59: #{_lambda_.3} parent=43 // pred_fallthru
                _
              // Predicated region
              $region67: #{_lambda_.3} parent=43 // pred_check
                _
              $region68: #{_lambda_.3} parent=43 // pred_check_branch
                %2006 = sbr.rel target = $region70
              $region69: #{_lambda_.3} parent=43 // pred_region
                _
              $region70: #{_lambda_.3} parent=43 // pred_fallthru
                _
            $region44: #{_lambda_.3} parent=39 // pred_fallthru
              _
            // Predicated region
            $region45: #{_lambda_.3} parent=39 // pred_check
              _
            $region46: #{_lambda_.3} parent=39 // pred_check_branch
              %1856 = sbr.rel target = $region48
            $region47: #{_lambda_.3} parent=39 // pred_region
              %s1858 = ssub.s32 256, 1
              loop: start=0, step=1, limit=1
              $region49: #{_lambda_.3} parent=47 // loop_pre_header
                _
              $region50: #{_lambda_.3} parent=47 // loop_header
                %s1860 = sphi 0, %s1864
                %p1861 = scmp.ge.s32.totalorder %s1860, 1
                %s1865 = sphi %s1840, %s1840
                %s1866 = sphi %s1850, %s1850
              $region51: #{_lambda_.3} parent=47 // loop_header_branch
                %1863 = sbr.rel (%p1861) target = $region55
              $region52: #{_lambda_.3} parent=47 // loop_body
                %v1867 = vld [vmem:[%s1865] sm:%s1858]
                %1868 = vst [vmem:[%s1866] sm:%s1858] %v1867
                %v1869 = vld [vmem:[%s1865 + $0x8] sm:%s1858]
                %1870 = vst [vmem:[%s1866 + $0x8] sm:%s1858] %v1869
                %v1871 = vld [vmem:[%s1865 + $0x10] sm:%s1858]
                %1872 = vst [vmem:[%s1866 + $0x10] sm:%s1858] %v1871
                %v1873 = vld [vmem:[%s1865 + $0x18] sm:%s1858]
                %1874 = vst [vmem:[%s1866 + $0x18] sm:%s1858] %v1873
                %v1875 = vld [vmem:[%s1865 + $0x20] sm:%s1858]
                %1876 = vst [vmem:[%s1866 + $0x20] sm:%s1858] %v1875
                %v1877 = vld [vmem:[%s1865 + $0x28] sm:%s1858]
                %1878 = vst [vmem:[%s1866 + $0x28] sm:%s1858] %v1877
                %v1879 = vld [vmem:[%s1865 + $0x30] sm:%s1858]
                %1880 = vst [vmem:[%s1866 + $0x30] sm:%s1858] %v1879
                %v1881 = vld [vmem:[%s1865 + $0x38] sm:%s1858]
                %1882 = vst [vmem:[%s1866 + $0x38] sm:%s1858] %v1881
                %v1883 = vld [vmem:[%s1865 + $0x40] sm:%s1858]
                %1884 = vst [vmem:[%s1866 + $0xc0] sm:%s1858] %v1883
                %v1885 = vld [vmem:[%s1865 + $0x48] sm:%s1858]
                %1886 = vst [vmem:[%s1866 + $0xc8] sm:%s1858] %v1885
                %v1887 = vld [vmem:[%s1865 + $0x50] sm:%s1858]
                %1888 = vst [vmem:[%s1866 + $0xd0] sm:%s1858] %v1887
                %v1889 = vld [vmem:[%s1865 + $0x58] sm:%s1858]
                %1890 = vst [vmem:[%s1866 + $0xd8] sm:%s1858] %v1889
                %v1891 = vld [vmem:[%s1865 + $0x60] sm:%s1858]
                %1892 = vst [vmem:[%s1866 + $0xe0] sm:%s1858] %v1891
                %v1893 = vld [vmem:[%s1865 + $0x68] sm:%s1858]
                %1894 = vst [vmem:[%s1866 + $0xe8] sm:%s1858] %v1893
                %v1895 = vld [vmem:[%s1865 + $0x70] sm:%s1858]
                %1896 = vst [vmem:[%s1866 + $0xf0] sm:%s1858] %v1895
                %v1897 = vld [vmem:[%s1865 + $0x78] sm:%s1858]
                %1898 = vst [vmem:[%s1866 + $0xf8] sm:%s1858] %v1897
                %v1899 = vld [vmem:[%s1865 + $0x80] sm:%s1858]
                %1900 = vst [vmem:[%s1866 + $0x180] sm:%s1858] %v1899
                %v1901 = vld [vmem:[%s1865 + $0x88] sm:%s1858]
                %1902 = vst [vmem:[%s1866 + $0x188] sm:%s1858] %v1901
                %v1903 = vld [vmem:[%s1865 + $0x90] sm:%s1858]
                %1904 = vst [vmem:[%s1866 + $0x190] sm:%s1858] %v1903
                %v1905 = vld [vmem:[%s1865 + $0x98] sm:%s1858]
                %1906 = vst [vmem:[%s1866 + $0x198] sm:%s1858] %v1905
                %v1907 = vld [vmem:[%s1865 + $0xa0] sm:%s1858]
                %1908 = vst [vmem:[%s1866 + $0x1a0] sm:%s1858] %v1907
                %v1909 = vld [vmem:[%s1865 + $0xa8] sm:%s1858]
                %1910 = vst [vmem:[%s1866 + $0x1a8] sm:%s1858] %v1909
                %v1911 = vld [vmem:[%s1865 + $0xb0] sm:%s1858]
                %1912 = vst [vmem:[%s1866 + $0x1b0] sm:%s1858] %v1911
                %v1913 = vld [vmem:[%s1865 + $0xb8] sm:%s1858]
                %1914 = vst [vmem:[%s1866 + $0x1b8] sm:%s1858] %v1913
                %v1915 = vld [vmem:[%s1865 + $0xc0] sm:%s1858]
                %1916 = vst [vmem:[%s1866 + $0x240] sm:%s1858] %v1915
                %v1917 = vld [vmem:[%s1865 + $0xc8] sm:%s1858]
                %1918 = vst [vmem:[%s1866 + $0x248] sm:%s1858] %v1917
                %v1919 = vld [vmem:[%s1865 + $0xd0] sm:%s1858]
                %1920 = vst [vmem:[%s1866 + $0x250] sm:%s1858] %v1919
                %v1921 = vld [vmem:[%s1865 + $0xd8] sm:%s1858]
                %1922 = vst [vmem:[%s1866 + $0x258] sm:%s1858] %v1921
                %v1923 = vld [vmem:[%s1865 + $0xe0] sm:%s1858]
                %1924 = vst [vmem:[%s1866 + $0x260] sm:%s1858] %v1923
                %v1925 = vld [vmem:[%s1865 + $0xe8] sm:%s1858]
                %1926 = vst [vmem:[%s1866 + $0x268] sm:%s1858] %v1925
                %v1927 = vld [vmem:[%s1865 + $0xf0] sm:%s1858]
                %1928 = vst [vmem:[%s1866 + $0x270] sm:%s1858] %v1927
                %v1929 = vld [vmem:[%s1865 + $0xf8] sm:%s1858]
                %1930 = vst [vmem:[%s1866 + $0x278] sm:%s1858] %v1929
              $region53: #{_lambda_.3} parent=47 // loop_footer
                %s1864 = sadd.s32 1, %s1860
              $region54: #{_lambda_.3} parent=47 // loop_footer_branch
                %1859 = sbr.rel target = $region50
              $region55: #{_lambda_.3} parent=47 // loop_exit
                _
            $region48: #{_lambda_.3} parent=39 // pred_fallthru
              _
          $region40: #{_lambda_.3} parent=35 // pred_fallthru
            _
          %2007 = vnop
        $region36: #{_lambda_.3} parent=31 // pred_fallthru
          _
      $region32: #{_lambda_.3} parent=5 // pred_fallthru
        _
      %p2008 = scmp.le.s32.totalorder 2, %s9
      // Predicated region
      $region71: #{_lambda_.3} parent=5 // pred_check
        %p2009 = pneg %p2008
      $region72: #{_lambda_.3} parent=5 // pred_check_branch
        %2011 = sbr.rel (%p2009) target = $region74
      $region73: #{_lambda_.3} parent=5 // pred_region
        %s2012 = ssub.s32 %s9, 2
        // Predicated region
        $region75: #{_lambda_.3} parent=73 // pred_check
          %p2013 = pneg %p139
        $region76: #{_lambda_.3} parent=73 // pred_check_branch
          %2015 = sbr.rel (%p2013) target = $region78
        $region77: #{_lambda_.3} parent=73 // pred_region
          %s2016 = sand.u32 %s124, 1
          %s2017 = sand.u32 %s124, 1
          %s2018 = smul.addr %s2017, 256
          %s2019 = scalar_lea.vmem [#allocation3], %s2018
        $region78: #{_lambda_.3} parent=73 // pred_fallthru
          _
      $region74: #{_lambda_.3} parent=5 // pred_fallthru
        _
    $region6: #{_lambda_.3} parent=1 // loop_footer
      %s13 = sadd.s32 1, %s9
    $region7: #{_lambda_.3} parent=1 // loop_footer_branch
      %8 = sbr.rel target = $region3
    $region8: #{_lambda_.3} parent=1 // loop_exit
      _

</llo_original>
